<compile_context>
chip_gen: v5e
topology: v5e:2x2
jax: 0.10.0
libtpu: 0.0.40
codegen_flags: <defaults>
</compile_context>

<pallas_src>
import functools
import math

import jax
import jax.numpy as jnp
from jax.experimental import pallas as pl
from jax.experimental.pallas import tpu as pltpu

EPS = 1e-5

_LAYER_KEYS = ("wq", "bq", "wk", "bk", "wv", "bv", "wo", "bo",
               "g1", "be1", "w1", "b1", "w2", "b2", "g2", "be2")
_BF16_KEYS = ("wq", "wk", "wv", "wo", "w1", "w2")   # matmul weights -> bf16


def _layernorm(x, gamma, beta):
    # PyTorch LayerNorm: biased variance, eps=1e-5, all in f32.
    mu = jnp.mean(x, axis=-1, keepdims=True)
    var = jnp.mean((x - mu) ** 2, axis=-1, keepdims=True)
    return (x - mu) * jax.lax.rsqrt(var + EPS) * gamma + beta


def _encoder_layer_math(x, wq, bq, wk, bk, wv, bv, wo, bo,
                        g1, be1, w1, b1, w2, b2, g2, be2, *, n_heads):
    """One EncoderLayer (MHA + residual/LN1 + FFN + residual/LN2). x: (L, D) f32."""
    L, D = x.shape
    dh = D // n_heads
    scale = 1.0 / math.sqrt(dh)

    x16 = x.astype(jnp.bfloat16)
    q = jnp.dot(x16, wq, preferred_element_type=jnp.float32) + bq
    k = jnp.dot(x16, wk, preferred_element_type=jnp.float32) + bk
    v = jnp.dot(x16, wv, preferred_element_type=jnp.float32) + bv

    # FullAttention (mask_flag=False, no attn_mask). Instead of concatenating
    # head outputs on the lane axis, accumulate each head through the matching
    # sublane slice of W_O.
    attn_out = jnp.zeros((L, D), jnp.float32) + bo
    for h in range(n_heads):                       # static unroll, n_heads small
        sl = slice(h * dh, (h + 1) * dh)
        qh = q[:, sl].astype(jnp.bfloat16)
        kh = k[:, sl].astype(jnp.bfloat16)
        vh = v[:, sl].astype(jnp.bfloat16)
        s = jnp.dot(qh, kh.T, preferred_element_type=jnp.float32) * scale
        s = s - jnp.max(s, axis=-1, keepdims=True)
        p = jnp.exp(s)
        p = p * pl.reciprocal(jnp.sum(p, axis=-1, keepdims=True), approx=True)
        oh = jnp.dot(p.astype(jnp.bfloat16), vh,
                     preferred_element_type=jnp.float32)
        attn_out = attn_out + jnp.dot(oh.astype(jnp.bfloat16), wo[sl, :],
                                      preferred_element_type=jnp.float32)

    # Residual + norm1
    xn = _layernorm(x + attn_out, g1, be1)

    # FFN (Conv1d k=1 == Linear), relu, residual + norm2
    y = jnp.dot(xn.astype(jnp.bfloat16), w1, preferred_element_type=jnp.float32) + b1
    y = jnp.maximum(y, 0.0)
    y = jnp.dot(y.astype(jnp.bfloat16), w2, preferred_element_type=jnp.float32) + b2
    return _layernorm(xn + y, g2, be2)


def encoder_kernel(x_ref,
                   wq_ref, bq_ref, wk_ref, bk_ref, wv_ref, bv_ref,
                   wo_ref, bo_ref, g1_ref, be1_ref,
                   w1_ref, b1_ref, w2_ref, b2_ref, g2_ref, be2_ref,
                   gf_ref, bf_ref,
                   out_ref, xs_ref, *, n_heads, final_norm):
    layer = pl.program_id(1)
    n_layers = pl.num_programs(1)

    # Bring the activation into the VMEM carry at the first layer of each batch.
    @pl.when(layer == 0)
    def _():
        xs_ref[...] = x_ref[0]

    new_x = _encoder_layer_math(
        xs_ref[...],
        wq_ref[0], bq_ref[0], wk_ref[0], bk_ref[0], wv_ref[0], bv_ref[0],
        wo_ref[0], bo_ref[0], g1_ref[0], be1_ref[0],
        w1_ref[0], b1_ref[0], w2_ref[0], b2_ref[0], g2_ref[0], be2_ref[0],
        n_heads=n_heads)
    xs_ref[...] = new_x

    # Fused final LayerNorm + single HBM writeback on the last layer.
    @pl.when(layer == n_layers - 1)
    def _():
        if final_norm:
            out_ref[0] = _layernorm(new_x, gf_ref[...], bf_ref[...])
        else:
            out_ref[0] = new_x


# ---------------------------------------------------------------------------
# Wrapper
# ---------------------------------------------------------------------------
def encoder_forward(x, layer_params, norm_params, n_heads):
    """Pallas implementation of Encoder.forward (conv_layers=None path)."""
    B, L, D = x.shape
    n_layers = len(layer_params)

    # Stack per-layer weights with a leading layer axis; matmul weights -> bf16.
    stacked = {k: jnp.stack([p[k] for p in layer_params], axis=0)
               for k in _LAYER_KEYS}
    for k in _BF16_KEYS:
        stacked[k] = stacked[k].astype(jnp.bfloat16)
    weights = [stacked[k] for k in _LAYER_KEYS]

    final_norm = norm_params is not None
    if final_norm:
        gf = norm_params["g"].astype(jnp.float32)
        bf = norm_params["b"].astype(jnp.float32)
    else:  # dummies (unused when final_norm=False)
        gf = jnp.ones((1, D), jnp.float32)
        bf = jnp.zeros((1, D), jnp.float32)

    def layer_spec(a):
        _, r, c = a.shape
        return pl.BlockSpec((1, r, c), lambda b, l: (l, 0, 0))

    def const_spec(a):
        r, c = a.shape
        return pl.BlockSpec((r, c), lambda b, l: (0, 0))

    in_specs = ([pl.BlockSpec((1, L, D), lambda b, l: (b, 0, 0))]
                + [layer_spec(a) for a in weights]
                + [const_spec(gf), const_spec(bf)])
    out_spec = pl.BlockSpec((1, L, D), lambda b, l: (b, 0, 0))

    kernel = functools.partial(encoder_kernel, n_heads=n_heads,
                               final_norm=final_norm)
    out = pl.pallas_call(
        kernel,
        out_shape=jax.ShapeDtypeStruct((B, L, D), jnp.float32),
        grid_spec=pltpu.PrefetchScalarGridSpec(
            num_scalar_prefetch=0,
            grid=(B, n_layers),                       # batch outer, layers inner
            in_specs=in_specs,
            out_specs=out_spec,
            scratch_shapes=[pltpu.VMEM((L, D), jnp.float32)]),
        compiler_params=pltpu.CompilerParams(
            dimension_semantics=("parallel", "arbitrary"),
            vmem_limit_bytes=32 * 1024 * 1024),
    )(x, *weights, gf, bf)

    attns = [None] * n_layers   # FullAttention(output_attention=False) -> None
    return out, attns


# ---------------------------------------------------------------------------
# Pure-JAX reference (mirrors the PyTorch forward; matmuls use the same bf16
# inputs / f32 accumulation precision as the kernel).
# ---------------------------------------------------------------------------
def ref_encoder(x, layer_params, norm_params, n_heads):
    def ln(z, g, b):
        mu = z.mean(-1, keepdims=True)
        var = ((z - mu) ** 2).mean(-1, keepdims=True)
        return (z - mu) / jnp.sqrt(var + EPS) * g + b

    def mm(a, w):
        return jnp.dot(a.astype(jnp.bfloat16), w.astype(jnp.bfloat16),
                       preferred_element_type=jnp.float32)

    B, L, D = x.shape
    dh = D // n_heads
    for p in layer_params:
        q = (mm(x, p["wq"]) + p["bq"][0]).reshape(B, L, n_heads, dh)
        k = (mm(x, p["wk"]) + p["bk"][0]).reshape(B, L, n_heads, dh)
        v = (mm(x, p["wv"]) + p["bv"][0]).reshape(B, L, n_heads, dh)
        s = jnp.einsum("blhe,bshe->bhls",
                       q.astype(jnp.bfloat16), k.astype(jnp.bfloat16),
                       preferred_element_type=jnp.float32) / math.sqrt(dh)
        a = jax.nn.softmax(s, axis=-1)
        o = jnp.einsum("bhls,bshe->blhe",
                       a.astype(jnp.bfloat16), v.astype(jnp.bfloat16),
                       preferred_element_type=jnp.float32).reshape(B, L, D)
        o = mm(o, p["wo"]) + p["bo"][0]
        xn = ln(x + o, p["g1"][0], p["be1"][0])
        y = jax.nn.relu(mm(xn, p["w1"]) + p["b1"][0])
        y = mm(y, p["w2"]) + p["b2"][0]
        x = ln(xn + y, p["g2"][0], p["be2"][0])
    if norm_params is not None:
        x = ln(x, norm_params["g"][0], norm_params["b"][0])
    return x


# ---------------------------------------------------------------------------
# Deterministic parameter construction
# ---------------------------------------------------------------------------
def make_params(key, d_model, d_ff, n_layers):
    layers = []
    for _ in range(n_layers):
        ks = jax.random.split(key, 14)
        key = ks[0]
        std = 0.05
        p = {
            "wq": jax.random.normal(ks[1], (d_model, d_model), jnp.float32) * std,
            "bq": jax.random.normal(ks[2], (1, d_model), jnp.float32) * std,
            "wk": jax.random.normal(ks[3], (d_model, d_model), jnp.float32) * std,
            "bk": jax.random.normal(ks[4], (1, d_model), jnp.float32) * std,
            "wv": jax.random.normal(ks[5], (d_model, d_model), jnp.float32) * std,
            "bv": jax.random.normal(ks[6], (1, d_model), jnp.float32) * std,
            "wo": jax.random.normal(ks[7], (d_model, d_model), jnp.float32) * std,
            "bo": jax.random.normal(ks[8], (1, d_model), jnp.float32) * std,
            "g1": 1.0 + jax.random.normal(ks[9], (1, d_model), jnp.float32) * 0.1,
            "be1": jax.random.normal(ks[10], (1, d_model), jnp.float32) * 0.1,
            "w1": jax.random.normal(ks[11], (d_model, d_ff), jnp.float32) * std,
            "b1": jax.random.normal(ks[12], (1, d_ff), jnp.float32) * std,
            "w2": jax.random.normal(ks[13], (d_ff, d_model), jnp.float32) * std,
            "b2": jnp.zeros((1, d_model), jnp.float32),
            "g2": jnp.ones((1, d_model), jnp.float32),
            "be2": jnp.zeros((1, d_model), jnp.float32),
        }
        layers.append(p)
    norm = {"g": jnp.ones((1, d_model), jnp.float32),
            "b": jnp.zeros((1, d_model), jnp.float32)}
    return layers, norm


if __name__ == "__main__":
    # Small but lane-dense config (d_model multiple of 128).
    B, L, D, H, D_FF, E_LAYERS = 2, 32, 128, 4, 256, 2

    key = jax.random.PRNGKey(0)
    k_x, k_p = jax.random.split(key)
    x = jax.random.normal(k_x, (B, L, D), jnp.float32)
    layer_params, norm_params = make_params(k_p, D, D_FF, E_LAYERS)

    out, attns = encoder_forward(x, layer_params, norm_params, H)
    out = jax.block_until_ready(out)

    ref = ref_encoder(x, layer_params, norm_params, H)
    assert out.shape == (B, L, D)
    assert all(a is None for a in attns)
    assert bool(jnp.all(jnp.isfinite(out))), "non-finite output"
    # bf16 matmuls + approx reciprocal -> moderate tolerance vs reference.
    assert jnp.allclose(out, ref, atol=2e-2, rtol=2e-2), "mismatch vs reference"

    print("KERNEL_OK")
</pallas_src>

<mosaic_0001>
module attributes {stable_mosaic.version = 11 : i64} {
  func.func @encoder_kernel(%arg0: i32, %arg1: i32, %arg2: memref<1x32x128xf32, #tpu.memory_space<vmem>>, %arg3: memref<1x128x128xbf16, #tpu.memory_space<vmem>>, %arg4: memref<1x1x128xf32, #tpu.memory_space<vmem>>, %arg5: memref<1x128x128xbf16, #tpu.memory_space<vmem>>, %arg6: memref<1x1x128xf32, #tpu.memory_space<vmem>>, %arg7: memref<1x128x128xbf16, #tpu.memory_space<vmem>>, %arg8: memref<1x1x128xf32, #tpu.memory_space<vmem>>, %arg9: memref<1x128x128xbf16, #tpu.memory_space<vmem>>, %arg10: memref<1x1x128xf32, #tpu.memory_space<vmem>>, %arg11: memref<1x1x128xf32, #tpu.memory_space<vmem>>, %arg12: memref<1x1x128xf32, #tpu.memory_space<vmem>>, %arg13: memref<1x128x256xbf16, #tpu.memory_space<vmem>>, %arg14: memref<1x1x256xf32, #tpu.memory_space<vmem>>, %arg15: memref<1x256x128xbf16, #tpu.memory_space<vmem>>, %arg16: memref<1x1x128xf32, #tpu.memory_space<vmem>>, %arg17: memref<1x1x128xf32, #tpu.memory_space<vmem>>, %arg18: memref<1x1x128xf32, #tpu.memory_space<vmem>>, %arg19: memref<1x128xf32, #tpu.memory_space<vmem>>, %arg20: memref<1x128xf32, #tpu.memory_space<vmem>>, %arg21: memref<1x32x128xf32, #tpu.memory_space<vmem>>, %arg22: memref<32x128xf32, #tpu.memory_space<vmem>>) attributes {dimension_semantics = [#tpu.dimension_semantics<parallel>, #tpu.dimension_semantics<arbitrary>], iteration_bounds = array<i64: 2, 2>, scalar_prefetch = 0 : i64, scratch_operands = 1 : i64, tpu.core_type = #tpu.core_type<tc>, window_params = [{transform_indices = @transform_0, window_bounds = array<i64: 1, 32, 128>}, {transform_indices = @transform_1, window_bounds = array<i64: 1, 128, 128>}, {transform_indices = @transform_2, window_bounds = array<i64: 1, 1, 128>}, {transform_indices = @transform_3, window_bounds = array<i64: 1, 128, 128>}, {transform_indices = @transform_4, window_bounds = array<i64: 1, 1, 128>}, {transform_indices = @transform_5, window_bounds = array<i64: 1, 128, 128>}, {transform_indices = @transform_6, window_bounds = array<i64: 1, 1, 128>}, {transform_indices = @transform_7, window_bounds = array<i64: 1, 128, 128>}, {transform_indices = @transform_8, window_bounds = array<i64: 1, 1, 128>}, {transform_indices = @transform_9, window_bounds = array<i64: 1, 1, 128>}, {transform_indices = @transform_10, window_bounds = array<i64: 1, 1, 128>}, {transform_indices = @transform_11, window_bounds = array<i64: 1, 128, 256>}, {transform_indices = @transform_12, window_bounds = array<i64: 1, 1, 256>}, {transform_indices = @transform_13, window_bounds = array<i64: 1, 256, 128>}, {transform_indices = @transform_14, window_bounds = array<i64: 1, 1, 128>}, {transform_indices = @transform_15, window_bounds = array<i64: 1, 1, 128>}, {transform_indices = @transform_16, window_bounds = array<i64: 1, 1, 128>}, {pipeline_mode = #tpu.pipeline_mode<synchronous>, transform_indices = @transform_17, window_bounds = array<i64: 1, 128>}, {pipeline_mode = #tpu.pipeline_mode<synchronous>, transform_indices = @transform_18, window_bounds = array<i64: 1, 128>}, {transform_indices = @transform_19, window_bounds = array<i64: 1, 32, 128>}]} {
    %c0_i32 = arith.constant 0 : i32
    %0 = arith.cmpi eq, %arg1, %c0_i32 : i32
    %1 = arith.extui %0 : i1 to i32
    %c0_i32_0 = arith.constant 0 : i32
    %2 = arith.cmpi ne, %1, %c0_i32_0 : i32
    scf.if %2 {
      %c0_93 = arith.constant 0 : index
      %c0_94 = arith.constant 0 : index
      %c0_95 = arith.constant 0 : index
      %213 = vector.load %arg2[%c0_93, %c0_94, %c0_95] : memref<1x32x128xf32, #tpu.memory_space<vmem>>, vector<1x32x128xf32>
      %214 = vector.shape_cast %213 : vector<1x32x128xf32> to vector<32x128xf32>
      %c0_96 = arith.constant 0 : index
      %c0_97 = arith.constant 0 : index
      %215 = vector.load %arg22[%c0_96, %c0_97] : memref<32x128xf32, #tpu.memory_space<vmem>>, vector<32x128xf32>
      tpu.vector_store %arg22[%c0_96, %c0_97], %214 {strides = array<i32>} : memref<32x128xf32, #tpu.memory_space<vmem>>, vector<32x128xf32>,
    } else {
    }
    %c0 = arith.constant 0 : index
    %c0_1 = arith.constant 0 : index
    %3 = vector.load %arg22[%c0, %c0_1] : memref<32x128xf32, #tpu.memory_space<vmem>>, vector<32x128xf32>
    %c0_2 = arith.constant 0 : index
    %c0_3 = arith.constant 0 : index
    %c0_4 = arith.constant 0 : index
    %4 = vector.load %arg3[%c0_2, %c0_3, %c0_4] : memref<1x128x128xbf16, #tpu.memory_space<vmem>>, vector<1x128x128xbf16>
    %5 = vector.shape_cast %4 : vector<1x128x128xbf16> to vector<128x128xbf16>
    %c0_5 = arith.constant 0 : index
    %c0_6 = arith.constant 0 : index
    %c0_7 = arith.constant 0 : index
    %6 = vector.load %arg4[%c0_5, %c0_6, %c0_7] : memref<1x1x128xf32, #tpu.memory_space<vmem>>, vector<1x1x128xf32>
    %7 = vector.shape_cast %6 : vector<1x1x128xf32> to vector<1x128xf32>
    %c0_8 = arith.constant 0 : index
    %c0_9 = arith.constant 0 : index
    %c0_10 = arith.constant 0 : index
    %8 = vector.load %arg5[%c0_8, %c0_9, %c0_10] : memref<1x128x128xbf16, #tpu.memory_space<vmem>>, vector<1x128x128xbf16>
    %9 = vector.shape_cast %8 : vector<1x128x128xbf16> to vector<128x128xbf16>
    %c0_11 = arith.constant 0 : index
    %c0_12 = arith.constant 0 : index
    %c0_13 = arith.constant 0 : index
    %10 = vector.load %arg6[%c0_11, %c0_12, %c0_13] : memref<1x1x128xf32, #tpu.memory_space<vmem>>, vector<1x1x128xf32>
    %11 = vector.shape_cast %10 : vector<1x1x128xf32> to vector<1x128xf32>
    %c0_14 = arith.constant 0 : index
    %c0_15 = arith.constant 0 : index
    %c0_16 = arith.constant 0 : index
    %12 = vector.load %arg7[%c0_14, %c0_15, %c0_16] : memref<1x128x128xbf16, #tpu.memory_space<vmem>>, vector<1x128x128xbf16>
    %13 = vector.shape_cast %12 : vector<1x128x128xbf16> to vector<128x128xbf16>
    %c0_17 = arith.constant 0 : index
    %c0_18 = arith.constant 0 : index
    %c0_19 = arith.constant 0 : index
    %14 = vector.load %arg8[%c0_17, %c0_18, %c0_19] : memref<1x1x128xf32, #tpu.memory_space<vmem>>, vector<1x1x128xf32>
    %15 = vector.shape_cast %14 : vector<1x1x128xf32> to vector<1x128xf32>
    %c0_20 = arith.constant 0 : index
    %c0_21 = arith.constant 0 : index
    %c0_22 = arith.constant 0 : index
    %16 = vector.load %arg9[%c0_20, %c0_21, %c0_22] : memref<1x128x128xbf16, #tpu.memory_space<vmem>>, vector<1x128x128xbf16>
    %17 = vector.shape_cast %16 : vector<1x128x128xbf16> to vector<128x128xbf16>
    %c0_23 = arith.constant 0 : index
    %c0_24 = arith.constant 0 : index
    %c0_25 = arith.constant 0 : index
    %18 = vector.load %arg10[%c0_23, %c0_24, %c0_25] : memref<1x1x128xf32, #tpu.memory_space<vmem>>, vector<1x1x128xf32>
    %19 = vector.shape_cast %18 : vector<1x1x128xf32> to vector<1x128xf32>
    %c0_26 = arith.constant 0 : index
    %c0_27 = arith.constant 0 : index
    %c0_28 = arith.constant 0 : index
    %20 = vector.load %arg11[%c0_26, %c0_27, %c0_28] : memref<1x1x128xf32, #tpu.memory_space<vmem>>, vector<1x1x128xf32>
    %21 = vector.shape_cast %20 : vector<1x1x128xf32> to vector<1x128xf32>
    %c0_29 = arith.constant 0 : index
    %c0_30 = arith.constant 0 : index
    %c0_31 = arith.constant 0 : index
    %22 = vector.load %arg12[%c0_29, %c0_30, %c0_31] : memref<1x1x128xf32, #tpu.memory_space<vmem>>, vector<1x1x128xf32>
    %23 = vector.shape_cast %22 : vector<1x1x128xf32> to vector<1x128xf32>
    %c0_32 = arith.constant 0 : index
    %c0_33 = arith.constant 0 : index
    %c0_34 = arith.constant 0 : index
    %24 = vector.load %arg13[%c0_32, %c0_33, %c0_34] : memref<1x128x256xbf16, #tpu.memory_space<vmem>>, vector<1x128x256xbf16>
    %25 = vector.shape_cast %24 : vector<1x128x256xbf16> to vector<128x256xbf16>
    %c0_35 = arith.constant 0 : index
    %c0_36 = arith.constant 0 : index
    %c0_37 = arith.constant 0 : index
    %26 = vector.load %arg14[%c0_35, %c0_36, %c0_37] : memref<1x1x256xf32, #tpu.memory_space<vmem>>, vector<1x1x256xf32>
    %27 = vector.shape_cast %26 : vector<1x1x256xf32> to vector<1x256xf32>
    %c0_38 = arith.constant 0 : index
    %c0_39 = arith.constant 0 : index
    %c0_40 = arith.constant 0 : index
    %28 = vector.load %arg15[%c0_38, %c0_39, %c0_40] : memref<1x256x128xbf16, #tpu.memory_space<vmem>>, vector<1x256x128xbf16>
    %29 = vector.shape_cast %28 : vector<1x256x128xbf16> to vector<256x128xbf16>
    %c0_41 = arith.constant 0 : index
    %c0_42 = arith.constant 0 : index
    %c0_43 = arith.constant 0 : index
    %30 = vector.load %arg16[%c0_41, %c0_42, %c0_43] : memref<1x1x128xf32, #tpu.memory_space<vmem>>, vector<1x1x128xf32>
    %31 = vector.shape_cast %30 : vector<1x1x128xf32> to vector<1x128xf32>
    %c0_44 = arith.constant 0 : index
    %c0_45 = arith.constant 0 : index
    %c0_46 = arith.constant 0 : index
    %32 = vector.load %arg17[%c0_44, %c0_45, %c0_46] : memref<1x1x128xf32, #tpu.memory_space<vmem>>, vector<1x1x128xf32>
    %33 = vector.shape_cast %32 : vector<1x1x128xf32> to vector<1x128xf32>
    %c0_47 = arith.constant 0 : index
    %c0_48 = arith.constant 0 : index
    %c0_49 = arith.constant 0 : index
    %34 = vector.load %arg18[%c0_47, %c0_48, %c0_49] : memref<1x1x128xf32, #tpu.memory_space<vmem>>, vector<1x1x128xf32>
    %35 = vector.shape_cast %34 : vector<1x1x128xf32> to vector<1x128xf32>
    %36 = arith.truncf %3 : vector<32x128xf32> to vector<32x128xbf16>
    %cst = arith.constant dense<0.000000e+00> : vector<32x128xf32>
    %37 = tpu.matmul %36, %5, %cst {dimension_numbers = #tpu.dot_dimension_numbers<[1], [0], [0], [1], [0, 0, 1, 1], [], []>} : vector<32x128xbf16>, vector<128x128xbf16>, vector<32x128xf32> -> vector<32x128xf32>
    %38 = vector.broadcast %7 : vector<1x128xf32> to vector<32x128xf32>
    %39 = arith.addf %37, %38 : vector<32x128xf32>
    %cst_50 = arith.constant dense<0.000000e+00> : vector<32x128xf32>
    %40 = tpu.matmul %36, %9, %cst_50 {dimension_numbers = #tpu.dot_dimension_numbers<[1], [0], [0], [1], [0, 0, 1, 1], [], []>} : vector<32x128xbf16>, vector<128x128xbf16>, vector<32x128xf32> -> vector<32x128xf32>
    %41 = vector.broadcast %11 : vector<1x128xf32> to vector<32x128xf32>
    %42 = arith.addf %40, %41 : vector<32x128xf32>
    %cst_51 = arith.constant dense<0.000000e+00> : vector<32x128xf32>
    %43 = tpu.matmul %36, %13, %cst_51 {dimension_numbers = #tpu.dot_dimension_numbers<[1], [0], [0], [1], [0, 0, 1, 1], [], []>} : vector<32x128xbf16>, vector<128x128xbf16>, vector<32x128xf32> -> vector<32x128xf32>
    %44 = vector.broadcast %15 : vector<1x128xf32> to vector<32x128xf32>
    %45 = arith.addf %43, %44 : vector<32x128xf32>
    %cst_52 = arith.constant 0.000000e+00 : f32
    %46 = vector.broadcast %cst_52 : f32 to vector<32x128xf32>
    %47 = vector.broadcast %19 : vector<1x128xf32> to vector<32x128xf32>
    %48 = arith.addf %46, %47 : vector<32x128xf32>
    %49 = vector.extract_strided_slice %39 {offsets = [0, 0], sizes = [32, 32], strides = [1, 1]} : vector<32x128xf32> to vector<32x32xf32>
    %50 = arith.truncf %49 : vector<32x32xf32> to vector<32x32xbf16>
    %51 = vector.extract_strided_slice %42 {offsets = [0, 0], sizes = [32, 32], strides = [1, 1]} : vector<32x128xf32> to vector<32x32xf32>
    %52 = arith.truncf %51 : vector<32x32xf32> to vector<32x32xbf16>
    %53 = vector.extract_strided_slice %45 {offsets = [0, 0], sizes = [32, 32], strides = [1, 1]} : vector<32x128xf32> to vector<32x32xf32>
    %54 = arith.truncf %53 : vector<32x32xf32> to vector<32x32xbf16>
    %55 = tpu.transpose %52, [1, 0] : vector<32x32xbf16> -> vector<32x32xbf16>
    %cst_53 = arith.constant dense<0.000000e+00> : vector<32x32xf32>
    %56 = tpu.matmul %50, %55, %cst_53 {dimension_numbers = #tpu.dot_dimension_numbers<[1], [0], [0], [1], [0, 0, 1, 1], [], []>} : vector<32x32xbf16>, vector<32x32xbf16>, vector<32x32xf32> -> vector<32x32xf32>
    %cst_54 = arith.constant 0.176776692 : f32
    %57 = vector.broadcast %cst_54 : f32 to vector<32x32xf32>
    %58 = arith.mulf %56, %57 : vector<32x32xf32>
    %cst_55 = arith.constant dense<0xFF800000> : vector<32xf32>
    %59 = vector.multi_reduction <maximumf>, %58, %cst_55 [1] : vector<32x32xf32> to vector<32xf32>
    %60 = vector.shape_cast %59 : vector<32xf32> to vector<32x1xf32>
    %61 = vector.broadcast %60 : vector<32x1xf32> to vector<32x32xf32>
    %62 = arith.subf %58, %61 : vector<32x32xf32>
    %63 = math.exp %62 : vector<32x32xf32>
    %cst_56 = arith.constant dense<0.000000e+00> : vector<32xf32>
    %64 = vector.multi_reduction <add>, %63, %cst_56 [1] : vector<32x32xf32> to vector<32xf32>
    %65 = vector.shape_cast %64 : vector<32xf32> to vector<32x1xf32>
    %66 = tpu.reciprocal %65 {approx = true} : vector<32x1xf32> -> vector<32x1xf32>
    %67 = vector.broadcast %66 : vector<32x1xf32> to vector<32x32xf32>
    %68 = arith.mulf %63, %67 : vector<32x32xf32>
    %69 = arith.truncf %68 : vector<32x32xf32> to vector<32x32xbf16>
    %cst_57 = arith.constant dense<0.000000e+00> : vector<32x32xf32>
    %70 = tpu.matmul %69, %54, %cst_57 {dimension_numbers = #tpu.dot_dimension_numbers<[1], [0], [0], [1], [0, 0, 1, 1], [], []>} : vector<32x32xbf16>, vector<32x32xbf16>, vector<32x32xf32> -> vector<32x32xf32>
    %71 = arith.truncf %70 : vector<32x32xf32> to vector<32x32xbf16>
    %72 = vector.extract_strided_slice %17 {offsets = [0, 0], sizes = [32, 128], strides = [1, 1]} : vector<128x128xbf16> to vector<32x128xbf16>
    %cst_58 = arith.constant dense<0.000000e+00> : vector<32x128xf32>
    %73 = tpu.matmul %71, %72, %cst_58 {dimension_numbers = #tpu.dot_dimension_numbers<[1], [0], [0], [1], [0, 0, 1, 1], [], []>} : vector<32x32xbf16>, vector<32x128xbf16>, vector<32x128xf32> -> vector<32x128xf32>
    %74 = arith.addf %48, %73 : vector<32x128xf32>
    %75 = vector.extract_strided_slice %39 {offsets = [0, 32], sizes = [32, 32], strides = [1, 1]} : vector<32x128xf32> to vector<32x32xf32>
    %76 = arith.truncf %75 : vector<32x32xf32> to vector<32x32xbf16>
    %77 = vector.extract_strided_slice %42 {offsets = [0, 32], sizes = [32, 32], strides = [1, 1]} : vector<32x128xf32> to vector<32x32xf32>
    %78 = arith.truncf %77 : vector<32x32xf32> to vector<32x32xbf16>
    %79 = vector.extract_strided_slice %45 {offsets = [0, 32], sizes = [32, 32], strides = [1, 1]} : vector<32x128xf32> to vector<32x32xf32>
    %80 = arith.truncf %79 : vector<32x32xf32> to vector<32x32xbf16>
    %81 = tpu.transpose %78, [1, 0] : vector<32x32xbf16> -> vector<32x32xbf16>
    %cst_59 = arith.constant dense<0.000000e+00> : vector<32x32xf32>
    %82 = tpu.matmul %76, %81, %cst_59 {dimension_numbers = #tpu.dot_dimension_numbers<[1], [0], [0], [1], [0, 0, 1, 1], [], []>} : vector<32x32xbf16>, vector<32x32xbf16>, vector<32x32xf32> -> vector<32x32xf32>
    %cst_60 = arith.constant 0.176776692 : f32
    %83 = vector.broadcast %cst_60 : f32 to vector<32x32xf32>
    %84 = arith.mulf %82, %83 : vector<32x32xf32>
    %cst_61 = arith.constant dense<0xFF800000> : vector<32xf32>
    %85 = vector.multi_reduction <maximumf>, %84, %cst_61 [1] : vector<32x32xf32> to vector<32xf32>
    %86 = vector.shape_cast %85 : vector<32xf32> to vector<32x1xf32>
    %87 = vector.broadcast %86 : vector<32x1xf32> to vector<32x32xf32>
    %88 = arith.subf %84, %87 : vector<32x32xf32>
    %89 = math.exp %88 : vector<32x32xf32>
    %cst_62 = arith.constant dense<0.000000e+00> : vector<32xf32>
    %90 = vector.multi_reduction <add>, %89, %cst_62 [1] : vector<32x32xf32> to vector<32xf32>
    %91 = vector.shape_cast %90 : vector<32xf32> to vector<32x1xf32>
    %92 = tpu.reciprocal %91 {approx = true} : vector<32x1xf32> -> vector<32x1xf32>
    %93 = vector.broadcast %92 : vector<32x1xf32> to vector<32x32xf32>
    %94 = arith.mulf %89, %93 : vector<32x32xf32>
    %95 = arith.truncf %94 : vector<32x32xf32> to vector<32x32xbf16>
    %cst_63 = arith.constant dense<0.000000e+00> : vector<32x32xf32>
    %96 = tpu.matmul %95, %80, %cst_63 {dimension_numbers = #tpu.dot_dimension_numbers<[1], [0], [0], [1], [0, 0, 1, 1], [], []>} : vector<32x32xbf16>, vector<32x32xbf16>, vector<32x32xf32> -> vector<32x32xf32>
    %97 = arith.truncf %96 : vector<32x32xf32> to vector<32x32xbf16>
    %98 = vector.extract_strided_slice %17 {offsets = [32, 0], sizes = [32, 128], strides = [1, 1]} : vector<128x128xbf16> to vector<32x128xbf16>
    %cst_64 = arith.constant dense<0.000000e+00> : vector<32x128xf32>
    %99 = tpu.matmul %97, %98, %cst_64 {dimension_numbers = #tpu.dot_dimension_numbers<[1], [0], [0], [1], [0, 0, 1, 1], [], []>} : vector<32x32xbf16>, vector<32x128xbf16>, vector<32x128xf32> -> vector<32x128xf32>
    %100 = arith.addf %74, %99 : vector<32x128xf32>
    %101 = vector.extract_strided_slice %39 {offsets = [0, 64], sizes = [32, 32], strides = [1, 1]} : vector<32x128xf32> to vector<32x32xf32>
    %102 = arith.truncf %101 : vector<32x32xf32> to vector<32x32xbf16>
    %103 = vector.extract_strided_slice %42 {offsets = [0, 64], sizes = [32, 32], strides = [1, 1]} : vector<32x128xf32> to vector<32x32xf32>
    %104 = arith.truncf %103 : vector<32x32xf32> to vector<32x32xbf16>
    %105 = vector.extract_strided_slice %45 {offsets = [0, 64], sizes = [32, 32], strides = [1, 1]} : vector<32x128xf32> to vector<32x32xf32>
    %106 = arith.truncf %105 : vector<32x32xf32> to vector<32x32xbf16>
    %107 = tpu.transpose %104, [1, 0] : vector<32x32xbf16> -> vector<32x32xbf16>
    %cst_65 = arith.constant dense<0.000000e+00> : vector<32x32xf32>
    %108 = tpu.matmul %102, %107, %cst_65 {dimension_numbers = #tpu.dot_dimension_numbers<[1], [0], [0], [1], [0, 0, 1, 1], [], []>} : vector<32x32xbf16>, vector<32x32xbf16>, vector<32x32xf32> -> vector<32x32xf32>
    %cst_66 = arith.constant 0.176776692 : f32
    %109 = vector.broadcast %cst_66 : f32 to vector<32x32xf32>
    %110 = arith.mulf %108, %109 : vector<32x32xf32>
    %cst_67 = arith.constant dense<0xFF800000> : vector<32xf32>
    %111 = vector.multi_reduction <maximumf>, %110, %cst_67 [1] : vector<32x32xf32> to vector<32xf32>
    %112 = vector.shape_cast %111 : vector<32xf32> to vector<32x1xf32>
    %113 = vector.broadcast %112 : vector<32x1xf32> to vector<32x32xf32>
    %114 = arith.subf %110, %113 : vector<32x32xf32>
    %115 = math.exp %114 : vector<32x32xf32>
    %cst_68 = arith.constant dense<0.000000e+00> : vector<32xf32>
    %116 = vector.multi_reduction <add>, %115, %cst_68 [1] : vector<32x32xf32> to vector<32xf32>
    %117 = vector.shape_cast %116 : vector<32xf32> to vector<32x1xf32>
    %118 = tpu.reciprocal %117 {approx = true} : vector<32x1xf32> -> vector<32x1xf32>
    %119 = vector.broadcast %118 : vector<32x1xf32> to vector<32x32xf32>
    %120 = arith.mulf %115, %119 : vector<32x32xf32>
    %121 = arith.truncf %120 : vector<32x32xf32> to vector<32x32xbf16>
    %cst_69 = arith.constant dense<0.000000e+00> : vector<32x32xf32>
    %122 = tpu.matmul %121, %106, %cst_69 {dimension_numbers = #tpu.dot_dimension_numbers<[1], [0], [0], [1], [0, 0, 1, 1], [], []>} : vector<32x32xbf16>, vector<32x32xbf16>, vector<32x32xf32> -> vector<32x32xf32>
    %123 = arith.truncf %122 : vector<32x32xf32> to vector<32x32xbf16>
    %124 = vector.extract_strided_slice %17 {offsets = [64, 0], sizes = [32, 128], strides = [1, 1]} : vector<128x128xbf16> to vector<32x128xbf16>
    %cst_70 = arith.constant dense<0.000000e+00> : vector<32x128xf32>
    %125 = tpu.matmul %123, %124, %cst_70 {dimension_numbers = #tpu.dot_dimension_numbers<[1], [0], [0], [1], [0, 0, 1, 1], [], []>} : vector<32x32xbf16>, vector<32x128xbf16>, vector<32x128xf32> -> vector<32x128xf32>
    %126 = arith.addf %100, %125 : vector<32x128xf32>
    %127 = vector.extract_strided_slice %39 {offsets = [0, 96], sizes = [32, 32], strides = [1, 1]} : vector<32x128xf32> to vector<32x32xf32>
    %128 = arith.truncf %127 : vector<32x32xf32> to vector<32x32xbf16>
    %129 = vector.extract_strided_slice %42 {offsets = [0, 96], sizes = [32, 32], strides = [1, 1]} : vector<32x128xf32> to vector<32x32xf32>
    %130 = arith.truncf %129 : vector<32x32xf32> to vector<32x32xbf16>
    %131 = vector.extract_strided_slice %45 {offsets = [0, 96], sizes = [32, 32], strides = [1, 1]} : vector<32x128xf32> to vector<32x32xf32>
    %132 = arith.truncf %131 : vector<32x32xf32> to vector<32x32xbf16>
    %133 = tpu.transpose %130, [1, 0] : vector<32x32xbf16> -> vector<32x32xbf16>
    %cst_71 = arith.constant dense<0.000000e+00> : vector<32x32xf32>
    %134 = tpu.matmul %128, %133, %cst_71 {dimension_numbers = #tpu.dot_dimension_numbers<[1], [0], [0], [1], [0, 0, 1, 1], [], []>} : vector<32x32xbf16>, vector<32x32xbf16>, vector<32x32xf32> -> vector<32x32xf32>
    %cst_72 = arith.constant 0.176776692 : f32
    %135 = vector.broadcast %cst_72 : f32 to vector<32x32xf32>
    %136 = arith.mulf %134, %135 : vector<32x32xf32>
    %cst_73 = arith.constant dense<0xFF800000> : vector<32xf32>
    %137 = vector.multi_reduction <maximumf>, %136, %cst_73 [1] : vector<32x32xf32> to vector<32xf32>
    %138 = vector.shape_cast %137 : vector<32xf32> to vector<32x1xf32>
    %139 = vector.broadcast %138 : vector<32x1xf32> to vector<32x32xf32>
    %140 = arith.subf %136, %139 : vector<32x32xf32>
    %141 = math.exp %140 : vector<32x32xf32>
    %cst_74 = arith.constant dense<0.000000e+00> : vector<32xf32>
    %142 = vector.multi_reduction <add>, %141, %cst_74 [1] : vector<32x32xf32> to vector<32xf32>
    %143 = vector.shape_cast %142 : vector<32xf32> to vector<32x1xf32>
    %144 = tpu.reciprocal %143 {approx = true} : vector<32x1xf32> -> vector<32x1xf32>
    %145 = vector.broadcast %144 : vector<32x1xf32> to vector<32x32xf32>
    %146 = arith.mulf %141, %145 : vector<32x32xf32>
    %147 = arith.truncf %146 : vector<32x32xf32> to vector<32x32xbf16>
    %cst_75 = arith.constant dense<0.000000e+00> : vector<32x32xf32>
    %148 = tpu.matmul %147, %132, %cst_75 {dimension_numbers = #tpu.dot_dimension_numbers<[1], [0], [0], [1], [0, 0, 1, 1], [], []>} : vector<32x32xbf16>, vector<32x32xbf16>, vector<32x32xf32> -> vector<32x32xf32>
    %149 = arith.truncf %148 : vector<32x32xf32> to vector<32x32xbf16>
    %150 = vector.extract_strided_slice %17 {offsets = [96, 0], sizes = [32, 128], strides = [1, 1]} : vector<128x128xbf16> to vector<32x128xbf16>
    %cst_76 = arith.constant dense<0.000000e+00> : vector<32x128xf32>
    %151 = tpu.matmul %149, %150, %cst_76 {dimension_numbers = #tpu.dot_dimension_numbers<[1], [0], [0], [1], [0, 0, 1, 1], [], []>} : vector<32x32xbf16>, vector<32x128xbf16>, vector<32x128xf32> -> vector<32x128xf32>
    %152 = arith.addf %126, %151 : vector<32x128xf32>
    %153 = arith.addf %3, %152 : vector<32x128xf32>
    %cst_77 = arith.constant dense<0.000000e+00> : vector<32xf32>
    %154 = vector.multi_reduction <add>, %153, %cst_77 [1] : vector<32x128xf32> to vector<32xf32>
    %155 = vector.shape_cast %154 : vector<32xf32> to vector<32x1xf32>
    %cst_78 = arith.constant 1.280000e+02 : f32
    %156 = vector.broadcast %cst_78 : f32 to vector<32x1xf32>
    %157 = arith.divf %155, %156 : vector<32x1xf32>
    %158 = vector.broadcast %157 : vector<32x1xf32> to vector<32x128xf32>
    %159 = arith.subf %153, %158 : vector<32x128xf32>
    %160 = arith.mulf %159, %159 : vector<32x128xf32>
    %cst_79 = arith.constant dense<0.000000e+00> : vector<32xf32>
    %161 = vector.multi_reduction <add>, %160, %cst_79 [1] : vector<32x128xf32> to vector<32xf32>
    %162 = vector.shape_cast %161 : vector<32xf32> to vector<32x1xf32>
    %cst_80 = arith.constant 1.280000e+02 : f32
    %163 = vector.broadcast %cst_80 : f32 to vector<32x1xf32>
    %164 = arith.divf %162, %163 : vector<32x1xf32>
    %165 = vector.broadcast %157 : vector<32x1xf32> to vector<32x128xf32>
    %166 = arith.subf %153, %165 : vector<32x128xf32>
    %cst_81 = arith.constant 9.99999974E-6 : f32
    %167 = vector.broadcast %cst_81 : f32 to vector<32x1xf32>
    %168 = arith.addf %164, %167 : vector<32x1xf32>
    %169 = math.rsqrt %168 : vector<32x1xf32>
    %170 = vector.broadcast %169 : vector<32x1xf32> to vector<32x128xf32>
    %171 = arith.mulf %166, %170 : vector<32x128xf32>
    %172 = vector.broadcast %21 : vector<1x128xf32> to vector<32x128xf32>
    %173 = arith.mulf %171, %172 : vector<32x128xf32>
    %174 = vector.broadcast %23 : vector<1x128xf32> to vector<32x128xf32>
    %175 = arith.addf %173, %174 : vector<32x128xf32>
    %176 = arith.truncf %175 : vector<32x128xf32> to vector<32x128xbf16>
    %cst_82 = arith.constant dense<0.000000e+00> : vector<32x256xf32>
    %177 = tpu.matmul %176, %25, %cst_82 {dimension_numbers = #tpu.dot_dimension_numbers<[1], [0], [0], [1], [0, 0, 1, 1], [], []>} : vector<32x128xbf16>, vector<128x256xbf16>, vector<32x256xf32> -> vector<32x256xf32>
    %178 = vector.broadcast %27 : vector<1x256xf32> to vector<32x256xf32>
    %179 = arith.addf %177, %178 : vector<32x256xf32>
    %cst_83 = arith.constant 0.000000e+00 : f32
    %180 = vector.broadcast %cst_83 : f32 to vector<32x256xf32>
    %181 = arith.maximumf %179, %180 : vector<32x256xf32>
    %182 = arith.truncf %181 : vector<32x256xf32> to vector<32x256xbf16>
    %cst_84 = arith.constant dense<0.000000e+00> : vector<32x128xf32>
    %183 = tpu.matmul %182, %29, %cst_84 {dimension_numbers = #tpu.dot_dimension_numbers<[1], [0], [0], [1], [0, 0, 1, 1], [], []>} : vector<32x256xbf16>, vector<256x128xbf16>, vector<32x128xf32> -> vector<32x128xf32>
    %184 = vector.broadcast %31 : vector<1x128xf32> to vector<32x128xf32>
    %185 = arith.addf %183, %184 : vector<32x128xf32>
    %186 = arith.addf %175, %185 : vector<32x128xf32>
    %cst_85 = arith.constant dense<0.000000e+00> : vector<32xf32>
    %187 = vector.multi_reduction <add>, %186, %cst_85 [1] : vector<32x128xf32> to vector<32xf32>
    %188 = vector.shape_cast %187 : vector<32xf32> to vector<32x1xf32>
    %cst_86 = arith.constant 1.280000e+02 : f32
    %189 = vector.broadcast %cst_86 : f32 to vector<32x1xf32>
    %190 = arith.divf %188, %189 : vector<32x1xf32>
    %191 = vector.broadcast %190 : vector<32x1xf32> to vector<32x128xf32>
    %192 = arith.subf %186, %191 : vector<32x128xf32>
    %193 = arith.mulf %192, %192 : vector<32x128xf32>
    %cst_87 = arith.constant dense<0.000000e+00> : vector<32xf32>
    %194 = vector.multi_reduction <add>, %193, %cst_87 [1] : vector<32x128xf32> to vector<32xf32>
    %195 = vector.shape_cast %194 : vector<32xf32> to vector<32x1xf32>
    %cst_88 = arith.constant 1.280000e+02 : f32
    %196 = vector.broadcast %cst_88 : f32 to vector<32x1xf32>
    %197 = arith.divf %195, %196 : vector<32x1xf32>
    %198 = vector.broadcast %190 : vector<32x1xf32> to vector<32x128xf32>
    %199 = arith.subf %186, %198 : vector<32x128xf32>
    %cst_89 = arith.constant 9.99999974E-6 : f32
    %200 = vector.broadcast %cst_89 : f32 to vector<32x1xf32>
    %201 = arith.addf %197, %200 : vector<32x1xf32>
    %202 = math.rsqrt %201 : vector<32x1xf32>
    %203 = vector.broadcast %202 : vector<32x1xf32> to vector<32x128xf32>
    %204 = arith.mulf %199, %203 : vector<32x128xf32>
    %205 = vector.broadcast %33 : vector<1x128xf32> to vector<32x128xf32>
    %206 = arith.mulf %204, %205 : vector<32x128xf32>
    %207 = vector.broadcast %35 : vector<1x128xf32> to vector<32x128xf32>
    %208 = arith.addf %206, %207 : vector<32x128xf32>
    %c0_90 = arith.constant 0 : index
    %c0_91 = arith.constant 0 : index
    %209 = vector.load %arg22[%c0_90, %c0_91] : memref<32x128xf32, #tpu.memory_space<vmem>>, vector<32x128xf32>
    tpu.vector_store %arg22[%c0_90, %c0_91], %208 {strides = array<i32>} : memref<32x128xf32, #tpu.memory_space<vmem>>, vector<32x128xf32>,
    %c1_i32 = arith.constant 1 : i32
    %210 = arith.cmpi eq, %arg1, %c1_i32 : i32
    %211 = arith.extui %210 : i1 to i32
    %c0_i32_92 = arith.constant 0 : i32
    %212 = arith.cmpi ne, %211, %c0_i32_92 : i32
    scf.if %212 {
      %c0_93 = arith.constant 0 : index
      %c0_94 = arith.constant 0 : index
      %213 = vector.load %arg19[%c0_93, %c0_94] : memref<1x128xf32, #tpu.memory_space<vmem>>, vector<1x128xf32>
      %c0_95 = arith.constant 0 : index
      %c0_96 = arith.constant 0 : index
      %214 = vector.load %arg20[%c0_95, %c0_96] : memref<1x128xf32, #tpu.memory_space<vmem>>, vector<1x128xf32>
      %cst_97 = arith.constant dense<0.000000e+00> : vector<32xf32>
      %215 = vector.multi_reduction <add>, %208, %cst_97 [1] : vector<32x128xf32> to vector<32xf32>
      %216 = vector.shape_cast %215 : vector<32xf32> to vector<32x1xf32>
      %cst_98 = arith.constant 1.280000e+02 : f32
      %217 = vector.broadcast %cst_98 : f32 to vector<32x1xf32>
      %218 = arith.divf %216, %217 : vector<32x1xf32>
      %219 = vector.broadcast %218 : vector<32x1xf32> to vector<32x128xf32>
      %220 = arith.subf %208, %219 : vector<32x128xf32>
      %221 = arith.mulf %220, %220 : vector<32x128xf32>
      %cst_99 = arith.constant dense<0.000000e+00> : vector<32xf32>
      %222 = vector.multi_reduction <add>, %221, %cst_99 [1] : vector<32x128xf32> to vector<32xf32>
      %223 = vector.shape_cast %222 : vector<32xf32> to vector<32x1xf32>
      %cst_100 = arith.constant 1.280000e+02 : f32
      %224 = vector.broadcast %cst_100 : f32 to vector<32x1xf32>
      %225 = arith.divf %223, %224 : vector<32x1xf32>
      %226 = vector.broadcast %218 : vector<32x1xf32> to vector<32x128xf32>
      %227 = arith.subf %208, %226 : vector<32x128xf32>
      %cst_101 = arith.constant 9.99999974E-6 : f32
      %228 = vector.broadcast %cst_101 : f32 to vector<32x1xf32>
      %229 = arith.addf %225, %228 : vector<32x1xf32>
      %230 = math.rsqrt %229 : vector<32x1xf32>
      %231 = vector.broadcast %230 : vector<32x1xf32> to vector<32x128xf32>
      %232 = arith.mulf %227, %231 : vector<32x128xf32>
      %233 = vector.broadcast %213 : vector<1x128xf32> to vector<32x128xf32>
      %234 = arith.mulf %232, %233 : vector<32x128xf32>
      %235 = vector.broadcast %214 : vector<1x128xf32> to vector<32x128xf32>
      %236 = arith.addf %234, %235 : vector<32x128xf32>
      %c0_102 = arith.constant 0 : index
      %c0_103 = arith.constant 0 : index
      %c0_104 = arith.constant 0 : index
      %237 = vector.load %arg21[%c0_102, %c0_103, %c0_104] : memref<1x32x128xf32, #tpu.memory_space<vmem>>, vector<1x32x128xf32>
      %238 = vector.shape_cast %237 : vector<1x32x128xf32> to vector<32x128xf32>
      %239 = vector.shape_cast %236 : vector<32x128xf32> to vector<1x32x128xf32>
      tpu.vector_store %arg21[%c0_102, %c0_103, %c0_104], %239 {strides = array<i32>} : memref<1x32x128xf32, #tpu.memory_space<vmem>>, vector<1x32x128xf32>,
    } else {
    }
    return
  }
  func.func @transform_0(%arg0: i32, %arg1: i32) -> (i32, i32, i32) {
    %c0_i32 = arith.constant 0 : i32
    %c0_i32_0 = arith.constant 0 : i32
    %c0_i32_1 = arith.constant 0 : i32
    return %arg0, %c0_i32, %c0_i32_0 : i32, i32, i32
  }
  func.func @transform_1(%arg0: i32, %arg1: i32) -> (i32, i32, i32) {
    %c0_i32 = arith.constant 0 : i32
    %c0_i32_0 = arith.constant 0 : i32
    %c0_i32_1 = arith.constant 0 : i32
    return %arg1, %c0_i32, %c0_i32_0 : i32, i32, i32
  }
  func.func @transform_2(%arg0: i32, %arg1: i32) -> (i32, i32, i32) {
    %c0_i32 = arith.constant 0 : i32
    %c0_i32_0 = arith.constant 0 : i32
    %c0_i32_1 = arith.constant 0 : i32
    return %arg1, %c0_i32, %c0_i32_0 : i32, i32, i32
  }
  func.func @transform_3(%arg0: i32, %arg1: i32) -> (i32, i32, i32) {
    %c0_i32 = arith.constant 0 : i32
    %c0_i32_0 = arith.constant 0 : i32
    %c0_i32_1 = arith.constant 0 : i32
    return %arg1, %c0_i32, %c0_i32_0 : i32, i32, i32
  }
  func.func @transform_4(%arg0: i32, %arg1: i32) -> (i32, i32, i32) {
    %c0_i32 = arith.constant 0 : i32
    %c0_i32_0 = arith.constant 0 : i32
    %c0_i32_1 = arith.constant 0 : i32
    return %arg1, %c0_i32, %c0_i32_0 : i32, i32, i32
  }
  func.func @transform_5(%arg0: i32, %arg1: i32) -> (i32, i32, i32) {
    %c0_i32 = arith.constant 0 : i32
    %c0_i32_0 = arith.constant 0 : i32
    %c0_i32_1 = arith.constant 0 : i32
    return %arg1, %c0_i32, %c0_i32_0 : i32, i32, i32
  }
  func.func @transform_6(%arg0: i32, %arg1: i32) -> (i32, i32, i32) {
    %c0_i32 = arith.constant 0 : i32
    %c0_i32_0 = arith.constant 0 : i32
    %c0_i32_1 = arith.constant 0 : i32
    return %arg1, %c0_i32, %c0_i32_0 : i32, i32, i32
  }
  func.func @transform_7(%arg0: i32, %arg1: i32) -> (i32, i32, i32) {
    %c0_i32 = arith.constant 0 : i32
    %c0_i32_0 = arith.constant 0 : i32
    %c0_i32_1 = arith.constant 0 : i32
    return %arg1, %c0_i32, %c0_i32_0 : i32, i32, i32
  }
  func.func @transform_8(%arg0: i32, %arg1: i32) -> (i32, i32, i32) {
    %c0_i32 = arith.constant 0 : i32
    %c0_i32_0 = arith.constant 0 : i32
    %c0_i32_1 = arith.constant 0 : i32
    return %arg1, %c0_i32, %c0_i32_0 : i32, i32, i32
  }
  func.func @transform_9(%arg0: i32, %arg1: i32) -> (i32, i32, i32) {
    %c0_i32 = arith.constant 0 : i32
    %c0_i32_0 = arith.constant 0 : i32
    %c0_i32_1 = arith.constant 0 : i32
    return %arg1, %c0_i32, %c0_i32_0 : i32, i32, i32
  }
  func.func @transform_10(%arg0: i32, %arg1: i32) -> (i32, i32, i32) {
    %c0_i32 = arith.constant 0 : i32
    %c0_i32_0 = arith.constant 0 : i32
    %c0_i32_1 = arith.constant 0 : i32
    return %arg1, %c0_i32, %c0_i32_0 : i32, i32, i32
  }
  func.func @transform_11(%arg0: i32, %arg1: i32) -> (i32, i32, i32) {
    %c0_i32 = arith.constant 0 : i32
    %c0_i32_0 = arith.constant 0 : i32
    %c0_i32_1 = arith.constant 0 : i32
    return %arg1, %c0_i32, %c0_i32_0 : i32, i32, i32
  }
  func.func @transform_12(%arg0: i32, %arg1: i32) -> (i32, i32, i32) {
    %c0_i32 = arith.constant 0 : i32
    %c0_i32_0 = arith.constant 0 : i32
    %c0_i32_1 = arith.constant 0 : i32
    return %arg1, %c0_i32, %c0_i32_0 : i32, i32, i32
  }
  func.func @transform_13(%arg0: i32, %arg1: i32) -> (i32, i32, i32) {
    %c0_i32 = arith.constant 0 : i32
    %c0_i32_0 = arith.constant 0 : i32
    %c0_i32_1 = arith.constant 0 : i32
    return %arg1, %c0_i32, %c0_i32_0 : i32, i32, i32
  }
  func.func @transform_14(%arg0: i32, %arg1: i32) -> (i32, i32, i32) {
    %c0_i32 = arith.constant 0 : i32
    %c0_i32_0 = arith.constant 0 : i32
    %c0_i32_1 = arith.constant 0 : i32
    return %arg1, %c0_i32, %c0_i32_0 : i32, i32, i32
  }
  func.func @transform_15(%arg0: i32, %arg1: i32) -> (i32, i32, i32) {
    %c0_i32 = arith.constant 0 : i32
    %c0_i32_0 = arith.constant 0 : i32
    %c0_i32_1 = arith.constant 0 : i32
    return %arg1, %c0_i32, %c0_i32_0 : i32, i32, i32
  }
  func.func @transform_16(%arg0: i32, %arg1: i32) -> (i32, i32, i32) {
    %c0_i32 = arith.constant 0 : i32
    %c0_i32_0 = arith.constant 0 : i32
    %c0_i32_1 = arith.constant 0 : i32
    return %arg1, %c0_i32, %c0_i32_0 : i32, i32, i32
  }
  func.func @transform_17(%arg0: i32, %arg1: i32) -> (i32, i32) {
    %c0_i32 = arith.constant 0 : i32
    %c0_i32_0 = arith.constant 0 : i32
    %c0_i32_1 = arith.constant 0 : i32
    return %c0_i32, %c0_i32_0 : i32, i32
  }
  func.func @transform_18(%arg0: i32, %arg1: i32) -> (i32, i32) {
    %c0_i32 = arith.constant 0 : i32
    %c0_i32_0 = arith.constant 0 : i32
    %c0_i32_1 = arith.constant 0 : i32
    return %c0_i32, %c0_i32_0 : i32, i32
  }
  func.func @transform_19(%arg0: i32, %arg1: i32) -> (i32, i32, i32) {
    %c0_i32 = arith.constant 0 : i32
    %c0_i32_0 = arith.constant 0 : i32
    %c0_i32_1 = arith.constant 0 : i32
    return %arg0, %c0_i32, %c0_i32_0 : i32, i32, i32
  }
}

</mosaic_0001>

<llo_original>
// kernel: tpu_custom_call.1
$region0: #{tpu_custom_call.1}
  #allocation0 [shape = 'u32[]', space=smem, size = 0x4, offset = 0x4, fixed_abs, tag = 'smem constant byte address 0x4 - core index']
  #allocation1 [shape = 'u32[72,128]{1,0:T(1,128)}', space=vmem, size = 0x9000, scoped, tag = 'internal scratch']
  #allocation2 [shape = 'f32[32,128]{1,0:T(8,128)}', space=vmem, size = 0x4000, scoped, tag = 'scratch operand']
  %s0 = inlined_call_operand.hbm [shape: f32[2,32,128], index: 0, kind: input, shape index: {}]
  %s1 = inlined_call_operand.hbm [shape: bf16[2,128,128], index: 1, kind: input, shape index: {}]
  %s2 = inlined_call_operand.hbm [shape: f32[2,1,128], index: 2, kind: input, shape index: {}]
  %s3 = inlined_call_operand.hbm [shape: bf16[2,128,128], index: 3, kind: input, shape index: {}]
  %s4 = inlined_call_operand.vmem [shape: f32[2,1,128], index: 4, kind: input, shape index: {}]
  %s5 = inlined_call_operand.hbm [shape: bf16[2,128,128], index: 5, kind: input, shape index: {}]
  %s6 = inlined_call_operand.hbm [shape: f32[2,1,128], index: 6, kind: input, shape index: {}]
  %s7 = inlined_call_operand.hbm [shape: bf16[2,128,128], index: 7, kind: input, shape index: {}]
  %s8 = inlined_call_operand.hbm [shape: f32[2,1,128], index: 8, kind: input, shape index: {}]
  %s9 = inlined_call_operand.vmem [shape: f32[2,1,128], index: 9, kind: input, shape index: {}]
  %s10 = inlined_call_operand.hbm [shape: f32[2,1,128], index: 10, kind: input, shape index: {}]
  %s11 = inlined_call_operand.hbm [shape: bf16[2,128,256], index: 11, kind: input, shape index: {}]
  %s12 = inlined_call_operand.vmem [shape: f32[2,1,256], index: 12, kind: input, shape index: {}]
  %s13 = inlined_call_operand.hbm [shape: bf16[2,256,128], index: 13, kind: input, shape index: {}]
  %s14 = inlined_call_operand.vmem [shape: f32[2,1,128], index: 14, kind: input, shape index: {}]
  %s15 = inlined_call_operand.vmem [shape: f32[2,1,128], index: 15, kind: input, shape index: {}]
  %s16 = inlined_call_operand.vmem [shape: f32[2,1,128], index: 16, kind: input, shape index: {}]
  %s17 = inlined_call_operand.vmem [shape: f32[1,128], index: 17, kind: input, shape index: {}]
  %s18 = inlined_call_operand.vmem [shape: f32[1,128], index: 18, kind: input, shape index: {}]
  %s19 = inlined_call_operand.hbm [shape: f32[2,32,128], index: 19, kind: output, shape index: {}]
  %s20 = sld [smem:[#allocation0]]
  $region161: #{tpu_custom_call.1} parent=0
    _
  %s22 = ssub.s32 1, %s20
  %s23 = scalar_select 0, %s22, %s20
  $region1: #{tpu_custom_call.1} parent=0
    #allocation3 [shape = 'u8[32768]{0}', space=vmem, size = 0x8000, scoped, tag = 'input window, operand 0']
    #allocation4 [shape = 's32[2]{0}', space=sflag, size = 0x8, scoped, tag = 'scoped memory for tpu_custom_call.1']
    #allocation5 [shape = 's32[2]{0}', space=sflag, size = 0x8, scoped, tag = 'scoped memory for tpu_custom_call.1']
    #allocation6 [shape = 'u8[65536]{0}', space=vmem, size = 0x10000, scoped, tag = 'input window, operand 1']
    #allocation7 [shape = 's32[2]{0}', space=sflag, size = 0x8, scoped, tag = 'scoped memory for tpu_custom_call.1']
    #allocation8 [shape = 'u8[1024]{0}', space=vmem, size = 0x400, scoped, tag = 'input window, operand 2']
    #allocation9 [shape = 'u8[65536]{0}', space=vmem, size = 0x10000, scoped, tag = 'input window, operand 3']
    #allocation10 [shape = 's32[2]{0}', space=sflag, size = 0x8, scoped, tag = 'scoped memory for tpu_custom_call.1']
    #allocation11 [shape = 'u8[65536]{0}', space=vmem, size = 0x10000, scoped, tag = 'input window, operand 5']
    #allocation12 [shape = 'u8[1024]{0}', space=vmem, size = 0x400, scoped, tag = 'input window, operand 6']
    #allocation13 [shape = 's32[2]{0}', space=sflag, size = 0x8, scoped, tag = 'scoped memory for tpu_custom_call.1']
    #allocation14 [shape = 'u8[65536]{0}', space=vmem, size = 0x10000, scoped, tag = 'input window, operand 7']
    #allocation15 [shape = 'u8[1024]{0}', space=vmem, size = 0x400, scoped, tag = 'input window, operand 8']
    #allocation16 [shape = 's32[2]{0}', space=sflag, size = 0x8, scoped, tag = 'scoped memory for tpu_custom_call.1']
    #allocation17 [shape = 'u8[1024]{0}', space=vmem, size = 0x400, scoped, tag = 'input window, operand 10']
    #allocation18 [shape = 'u8[131072]{0}', space=vmem, size = 0x20000, scoped, tag = 'input window, operand 11']
    #allocation19 [shape = 's32[2]{0}', space=sflag, size = 0x8, scoped, tag = 'scoped memory for tpu_custom_call.1']
    #allocation20 [shape = 'u8[131072]{0}', space=vmem, size = 0x20000, scoped, tag = 'input window, operand 13']
    #allocation21 [shape = 'u8[32768]{0}', space=vmem, size = 0x8000, scoped, tag = 'output window, operand 0']
    %24 = vsyncpa [#allocation4], 0
    %s25 = scalar_lea.sflag [#allocation4], 1
    %26 = vsyncpa %s25, 0
    %27 = vsyncpa [#allocation7], 0
    %s28 = scalar_lea.sflag [#allocation7], 1
    %29 = vsyncpa %s28, 0
    %30 = vsyncpa [#allocation10], 0
    %s31 = scalar_lea.sflag [#allocation10], 1
    %32 = vsyncpa %s31, 0
    %33 = vsyncpa [#allocation13], 0
    %s34 = scalar_lea.sflag [#allocation13], 1
    %35 = vsyncpa %s34, 0
    %36 = vsyncpa [#allocation16], 0
    %s37 = scalar_lea.sflag [#allocation16], 1
    %38 = vsyncpa %s37, 0
    %39 = vsyncpa [#allocation19], 0
    %s40 = scalar_lea.sflag [#allocation19], 1
    %41 = vsyncpa %s40, 0
    %42 = vsyncpa [#allocation5], 0
    %s43 = scalar_lea.sflag [#allocation5], 1
    %44 = vsyncpa %s43, 0
    loop: start=0, step=1, limit=6
    $region2: #{tpu_custom_call.1} parent=1 // loop_pre_header
      _
    $region3: #{tpu_custom_call.1} parent=1 // loop_header
      %s46 = sphi 0, %s50
      %p47 = scmp.ge.s32.totalorder %s46, 6
      %s53 = sphi 0, %s65
      %s54 = sphi 0, %s61
      %s55 = sphi 0, %s53
      %s56 = sphi 0, %s54
      %s57 = sphi 0, %s55
      %s58 = sphi 0, %s56
      %s68 = sphi 0, %s70
      %s71 = sphi 0, %s68
      %s72 = sphi 0, %s71
      %s88 = sphi 0, %s72
      %s94 = sphi 0, %s96
      %s97 = sphi 0, %s94
      %s98 = sphi 0, %s97
      %s114 = sphi 0, %s98
      %s120 = sphi 0, %s122
      %s123 = sphi 0, %s120
      %s124 = sphi 0, %s123
      %s140 = sphi 0, %s124
      %s146 = sphi 0, %s148
      %s149 = sphi 0, %s146
      %s150 = sphi 0, %s149
      %s166 = sphi 0, %s150
      %s172 = sphi 0, %s174
      %s175 = sphi 0, %s172
      %s176 = sphi 0, %s175
      %s192 = sphi 0, %s176
      %s198 = sphi 0, %s200
      %s201 = sphi 0, %s198
      %s202 = sphi 0, %s201
      %s218 = sphi 0, %s202
      %s224 = sphi 0, %s226
      %s227 = sphi 0, %s224
      %s228 = sphi 0, %s227
      %s244 = sphi 0, %s228
      %s250 = sphi 0, %s252
      %s253 = sphi 0, %s250
      %s254 = sphi 0, %s253
      %s270 = sphi 0, %s254
      %s276 = sphi 0, %s278
      %s279 = sphi 0, %s276
      %s280 = sphi 0, %s279
      %s296 = sphi 0, %s280
      %s302 = sphi 0, %s304
      %s305 = sphi 0, %s302
      %s306 = sphi 0, %s305
      %s322 = sphi 0, %s306
      %s328 = sphi 0, %s330
      %s331 = sphi 0, %s328
      %s332 = sphi 0, %s331
      %s348 = sphi 0, %s332
      %s354 = sphi 0, %s356
      %s357 = sphi 0, %s354
      %s358 = sphi 0, %s357
      %s374 = sphi 0, %s358
      %s380 = sphi 0, %s382
      %s383 = sphi 0, %s380
      %s384 = sphi 0, %s383
      %s400 = sphi 0, %s384
      %s406 = sphi 0, %s408
      %s409 = sphi 0, %s406
      %s410 = sphi 0, %s409
      %s426 = sphi 0, %s410
      %s432 = sphi 0, %s434
      %s435 = sphi 0, %s432
      %s436 = sphi 0, %s435
      %s452 = sphi 0, %s436
      %s458 = sphi 0, %s460
      %s461 = sphi 0, %s458
      %s462 = sphi 0, %s461
      %s478 = sphi 0, %s462
      %s484 = sphi 0, %s486
      %s487 = sphi 0, %s484
      %s488 = sphi 0, %s487
      %s504 = sphi 0, %s488
      %s508 = sphi 0, %s508
      %s510 = sphi 0, %s508
      %s511 = sphi 0, %s510
      %s525 = sphi 0, %s511
      %s529 = sphi 0, %s529
      %s531 = sphi 0, %s529
      %s532 = sphi 0, %s531
      %s546 = sphi 0, %s532
      %s552 = sphi 0, %s554
      %s555 = sphi 0, %s552
      %s556 = sphi 0, %s555
      %s572 = sphi 0, %s556
    $region4: #{tpu_custom_call.1} parent=1 // loop_header_branch
      %49 = sbr.rel (%p47) target = $region8
    $region5: #{tpu_custom_call.1} parent=1 // loop_body
      %s51 = ssub.s32 %s46, 1
      %s52 = ssub.s32 %s46, 2
      %s59 = sadd.s32 1, %s54
      %p60 = scmp.ge.s32.totalorder %s59, 2
      %s61 = scalar_select %p60, 0, %s59
      %s62 = sadd.s32 1, %s53
      %s63 = scalar_select %p60, %s62, %s53
      %p64 = scmp.ge.s32.totalorder %s63, 2
      %s65 = scalar_select %p64, 0, %s63
      %s66 = ssub.s32 %s53, %s65
      %p67 = scmp.eq.s32.totalorder %s66, 0
      %s69 = sadd.s32 %s68, 1
      %s70 = scalar_select %p67, %s68, %s69
      %p73 = pneg %p67
      %p74 = scmp.eq.s32.totalorder %s46, 3
      %p75 = por %p73, %p74
      %p76 = scmp.ne.s32.totalorder %s68, %s71
      %p77 = scmp.eq.s32.totalorder %s46, 0
      %p78 = por %p76, %p77
      %p79 = scmp.ne.s32.totalorder %s68, %s71
      %p80 = scmp.eq.s32.totalorder %s51, 3
      %p81 = por %p79, %p80
      %p82 = scmp.ne.s32.totalorder %s71, %s72
      %p83 = scmp.eq.s32.totalorder %s51, 0
      %p84 = por %p82, %p83
      %p85 = scmp.ne.s32.totalorder %s71, %s72
      %p86 = scmp.eq.s32.totalorder %s52, 3
      %p87 = por %p85, %p86
      %p89 = scmp.ne.s32.totalorder %s72, %s88
      %p90 = scmp.eq.s32.totalorder %s52, 0
      %p91 = por %p89, %p90
      %s92 = ssub.s32 %s54, %s61
      %p93 = scmp.eq.s32.totalorder %s92, 0
      %s95 = sadd.s32 %s94, 1
      %s96 = scalar_select %p93, %s94, %s95
      %p99 = pneg %p93
      %p100 = scmp.eq.s32.totalorder %s46, 3
      %p101 = por %p99, %p100
      %p102 = scmp.ne.s32.totalorder %s94, %s97
      %p103 = scmp.eq.s32.totalorder %s46, 0
      %p104 = por %p102, %p103
      %p105 = scmp.ne.s32.totalorder %s94, %s97
      %p106 = scmp.eq.s32.totalorder %s51, 3
      %p107 = por %p105, %p106
      %p108 = scmp.ne.s32.totalorder %s97, %s98
      %p109 = scmp.eq.s32.totalorder %s51, 0
      %p110 = por %p108, %p109
      %p111 = scmp.ne.s32.totalorder %s97, %s98
      %p112 = scmp.eq.s32.totalorder %s52, 3
      %p113 = por %p111, %p112
      %p115 = scmp.ne.s32.totalorder %s98, %s114
      %p116 = scmp.eq.s32.totalorder %s52, 0
      %p117 = por %p115, %p116
      %s118 = ssub.s32 %s54, %s61
      %p119 = scmp.eq.s32.totalorder %s118, 0
      %s121 = sadd.s32 %s120, 1
      %s122 = scalar_select %p119, %s120, %s121
      %p125 = pneg %p119
      %p126 = scmp.eq.s32.totalorder %s46, 3
      %p127 = por %p125, %p126
      %p128 = scmp.ne.s32.totalorder %s120, %s123
      %p129 = scmp.eq.s32.totalorder %s46, 0
      %p130 = por %p128, %p129
      %p131 = scmp.ne.s32.totalorder %s120, %s123
      %p132 = scmp.eq.s32.totalorder %s51, 3
      %p133 = por %p131, %p132
      %p134 = scmp.ne.s32.totalorder %s123, %s124
      %p135 = scmp.eq.s32.totalorder %s51, 0
      %p136 = por %p134, %p135
      %p137 = scmp.ne.s32.totalorder %s123, %s124
      %p138 = scmp.eq.s32.totalorder %s52, 3
      %p139 = por %p137, %p138
      %p141 = scmp.ne.s32.totalorder %s124, %s140
      %p142 = scmp.eq.s32.totalorder %s52, 0
      %p143 = por %p141, %p142
      %s144 = ssub.s32 %s54, %s61
      %p145 = scmp.eq.s32.totalorder %s144, 0
      %s147 = sadd.s32 %s146, 1
      %s148 = scalar_select %p145, %s146, %s147
      %p151 = pneg %p145
      %p152 = scmp.eq.s32.totalorder %s46, 3
      %p153 = por %p151, %p152
      %p154 = scmp.ne.s32.totalorder %s146, %s149
      %p155 = scmp.eq.s32.totalorder %s46, 0
      %p156 = por %p154, %p155
      %p157 = scmp.ne.s32.totalorder %s146, %s149
      %p158 = scmp.eq.s32.totalorder %s51, 3
      %p159 = por %p157, %p158
      %p160 = scmp.ne.s32.totalorder %s149, %s150
      %p161 = scmp.eq.s32.totalorder %s51, 0
      %p162 = por %p160, %p161
      %p163 = scmp.ne.s32.totalorder %s149, %s150
      %p164 = scmp.eq.s32.totalorder %s52, 3
      %p165 = por %p163, %p164
      %p167 = scmp.ne.s32.totalorder %s150, %s166
      %p168 = scmp.eq.s32.totalorder %s52, 0
      %p169 = por %p167, %p168
      %s170 = ssub.s32 %s54, %s61
      %p171 = scmp.eq.s32.totalorder %s170, 0
      %s173 = sadd.s32 %s172, 1
      %s174 = scalar_select %p171, %s172, %s173
      %p177 = pneg %p171
      %p178 = scmp.eq.s32.totalorder %s46, 3
      %p179 = por %p177, %p178
      %p180 = scmp.ne.s32.totalorder %s172, %s175
      %p181 = scmp.eq.s32.totalorder %s46, 0
      %p182 = por %p180, %p181
      %p183 = scmp.ne.s32.totalorder %s172, %s175
      %p184 = scmp.eq.s32.totalorder %s51, 3
      %p185 = por %p183, %p184
      %p186 = scmp.ne.s32.totalorder %s175, %s176
      %p187 = scmp.eq.s32.totalorder %s51, 0
      %p188 = por %p186, %p187
      %p189 = scmp.ne.s32.totalorder %s175, %s176
      %p190 = scmp.eq.s32.totalorder %s52, 3
      %p191 = por %p189, %p190
      %p193 = scmp.ne.s32.totalorder %s176, %s192
      %p194 = scmp.eq.s32.totalorder %s52, 0
      %p195 = por %p193, %p194
      %s196 = ssub.s32 %s54, %s61
      %p197 = scmp.eq.s32.totalorder %s196, 0
      %s199 = sadd.s32 %s198, 1
      %s200 = scalar_select %p197, %s198, %s199
      %p203 = pneg %p197
      %p204 = scmp.eq.s32.totalorder %s46, 3
      %p205 = por %p203, %p204
      %p206 = scmp.ne.s32.totalorder %s198, %s201
      %p207 = scmp.eq.s32.totalorder %s46, 0
      %p208 = por %p206, %p207
      %p209 = scmp.ne.s32.totalorder %s198, %s201
      %p210 = scmp.eq.s32.totalorder %s51, 3
      %p211 = por %p209, %p210
      %p212 = scmp.ne.s32.totalorder %s201, %s202
      %p213 = scmp.eq.s32.totalorder %s51, 0
      %p214 = por %p212, %p213
      %p215 = scmp.ne.s32.totalorder %s201, %s202
      %p216 = scmp.eq.s32.totalorder %s52, 3
      %p217 = por %p215, %p216
      %p219 = scmp.ne.s32.totalorder %s202, %s218
      %p220 = scmp.eq.s32.totalorder %s52, 0
      %p221 = por %p219, %p220
      %s222 = ssub.s32 %s54, %s61
      %p223 = scmp.eq.s32.totalorder %s222, 0
      %s225 = sadd.s32 %s224, 1
      %s226 = scalar_select %p223, %s224, %s225
      %p229 = pneg %p223
      %p230 = scmp.eq.s32.totalorder %s46, 3
      %p231 = por %p229, %p230
      %p232 = scmp.ne.s32.totalorder %s224, %s227
      %p233 = scmp.eq.s32.totalorder %s46, 0
      %p234 = por %p232, %p233
      %p235 = scmp.ne.s32.totalorder %s224, %s227
      %p236 = scmp.eq.s32.totalorder %s51, 3
      %p237 = por %p235, %p236
      %p238 = scmp.ne.s32.totalorder %s227, %s228
      %p239 = scmp.eq.s32.totalorder %s51, 0
      %p240 = por %p238, %p239
      %p241 = scmp.ne.s32.totalorder %s227, %s228
      %p242 = scmp.eq.s32.totalorder %s52, 3
      %p243 = por %p241, %p242
      %p245 = scmp.ne.s32.totalorder %s228, %s244
      %p246 = scmp.eq.s32.totalorder %s52, 0
      %p247 = por %p245, %p246
      %s248 = ssub.s32 %s54, %s61
      %p249 = scmp.eq.s32.totalorder %s248, 0
      %s251 = sadd.s32 %s250, 1
      %s252 = scalar_select %p249, %s250, %s251
      %p255 = pneg %p249
      %p256 = scmp.eq.s32.totalorder %s46, 3
      %p257 = por %p255, %p256
      %p258 = scmp.ne.s32.totalorder %s250, %s253
      %p259 = scmp.eq.s32.totalorder %s46, 0
      %p260 = por %p258, %p259
      %p261 = scmp.ne.s32.totalorder %s250, %s253
      %p262 = scmp.eq.s32.totalorder %s51, 3
      %p263 = por %p261, %p262
      %p264 = scmp.ne.s32.totalorder %s253, %s254
      %p265 = scmp.eq.s32.totalorder %s51, 0
      %p266 = por %p264, %p265
      %p267 = scmp.ne.s32.totalorder %s253, %s254
      %p268 = scmp.eq.s32.totalorder %s52, 3
      %p269 = por %p267, %p268
      %p271 = scmp.ne.s32.totalorder %s254, %s270
      %p272 = scmp.eq.s32.totalorder %s52, 0
      %p273 = por %p271, %p272
      %s274 = ssub.s32 %s54, %s61
      %p275 = scmp.eq.s32.totalorder %s274, 0
      %s277 = sadd.s32 %s276, 1
      %s278 = scalar_select %p275, %s276, %s277
      %p281 = pneg %p275
      %p282 = scmp.eq.s32.totalorder %s46, 3
      %p283 = por %p281, %p282
      %p284 = scmp.ne.s32.totalorder %s276, %s279
      %p285 = scmp.eq.s32.totalorder %s46, 0
      %p286 = por %p284, %p285
      %p287 = scmp.ne.s32.totalorder %s276, %s279
      %p288 = scmp.eq.s32.totalorder %s51, 3
      %p289 = por %p287, %p288
      %p290 = scmp.ne.s32.totalorder %s279, %s280
      %p291 = scmp.eq.s32.totalorder %s51, 0
      %p292 = por %p290, %p291
      %p293 = scmp.ne.s32.totalorder %s279, %s280
      %p294 = scmp.eq.s32.totalorder %s52, 3
      %p295 = por %p293, %p294
      %p297 = scmp.ne.s32.totalorder %s280, %s296
      %p298 = scmp.eq.s32.totalorder %s52, 0
      %p299 = por %p297, %p298
      %s300 = ssub.s32 %s54, %s61
      %p301 = scmp.eq.s32.totalorder %s300, 0
      %s303 = sadd.s32 %s302, 1
      %s304 = scalar_select %p301, %s302, %s303
      %p307 = pneg %p301
      %p308 = scmp.eq.s32.totalorder %s46, 3
      %p309 = por %p307, %p308
      %p310 = scmp.ne.s32.totalorder %s302, %s305
      %p311 = scmp.eq.s32.totalorder %s46, 0
      %p312 = por %p310, %p311
      %p313 = scmp.ne.s32.totalorder %s302, %s305
      %p314 = scmp.eq.s32.totalorder %s51, 3
      %p315 = por %p313, %p314
      %p316 = scmp.ne.s32.totalorder %s305, %s306
      %p317 = scmp.eq.s32.totalorder %s51, 0
      %p318 = por %p316, %p317
      %p319 = scmp.ne.s32.totalorder %s305, %s306
      %p320 = scmp.eq.s32.totalorder %s52, 3
      %p321 = por %p319, %p320
      %p323 = scmp.ne.s32.totalorder %s306, %s322
      %p324 = scmp.eq.s32.totalorder %s52, 0
      %p325 = por %p323, %p324
      %s326 = ssub.s32 %s54, %s61
      %p327 = scmp.eq.s32.totalorder %s326, 0
      %s329 = sadd.s32 %s328, 1
      %s330 = scalar_select %p327, %s328, %s329
      %p333 = pneg %p327
      %p334 = scmp.eq.s32.totalorder %s46, 3
      %p335 = por %p333, %p334
      %p336 = scmp.ne.s32.totalorder %s328, %s331
      %p337 = scmp.eq.s32.totalorder %s46, 0
      %p338 = por %p336, %p337
      %p339 = scmp.ne.s32.totalorder %s328, %s331
      %p340 = scmp.eq.s32.totalorder %s51, 3
      %p341 = por %p339, %p340
      %p342 = scmp.ne.s32.totalorder %s331, %s332
      %p343 = scmp.eq.s32.totalorder %s51, 0
      %p344 = por %p342, %p343
      %p345 = scmp.ne.s32.totalorder %s331, %s332
      %p346 = scmp.eq.s32.totalorder %s52, 3
      %p347 = por %p345, %p346
      %p349 = scmp.ne.s32.totalorder %s332, %s348
      %p350 = scmp.eq.s32.totalorder %s52, 0
      %p351 = por %p349, %p350
      %s352 = ssub.s32 %s54, %s61
      %p353 = scmp.eq.s32.totalorder %s352, 0
      %s355 = sadd.s32 %s354, 1
      %s356 = scalar_select %p353, %s354, %s355
      %p359 = pneg %p353
      %p360 = scmp.eq.s32.totalorder %s46, 3
      %p361 = por %p359, %p360
      %p362 = scmp.ne.s32.totalorder %s354, %s357
      %p363 = scmp.eq.s32.totalorder %s46, 0
      %p364 = por %p362, %p363
      %p365 = scmp.ne.s32.totalorder %s354, %s357
      %p366 = scmp.eq.s32.totalorder %s51, 3
      %p367 = por %p365, %p366
      %p368 = scmp.ne.s32.totalorder %s357, %s358
      %p369 = scmp.eq.s32.totalorder %s51, 0
      %p370 = por %p368, %p369
      %p371 = scmp.ne.s32.totalorder %s357, %s358
      %p372 = scmp.eq.s32.totalorder %s52, 3
      %p373 = por %p371, %p372
      %p375 = scmp.ne.s32.totalorder %s358, %s374
      %p376 = scmp.eq.s32.totalorder %s52, 0
      %p377 = por %p375, %p376
      %s378 = ssub.s32 %s54, %s61
      %p379 = scmp.eq.s32.totalorder %s378, 0
      %s381 = sadd.s32 %s380, 1
      %s382 = scalar_select %p379, %s380, %s381
      %p385 = pneg %p379
      %p386 = scmp.eq.s32.totalorder %s46, 3
      %p387 = por %p385, %p386
      %p388 = scmp.ne.s32.totalorder %s380, %s383
      %p389 = scmp.eq.s32.totalorder %s46, 0
      %p390 = por %p388, %p389
      %p391 = scmp.ne.s32.totalorder %s380, %s383
      %p392 = scmp.eq.s32.totalorder %s51, 3
      %p393 = por %p391, %p392
      %p394 = scmp.ne.s32.totalorder %s383, %s384
      %p395 = scmp.eq.s32.totalorder %s51, 0
      %p396 = por %p394, %p395
      %p397 = scmp.ne.s32.totalorder %s383, %s384
      %p398 = scmp.eq.s32.totalorder %s52, 3
      %p399 = por %p397, %p398
      %p401 = scmp.ne.s32.totalorder %s384, %s400
      %p402 = scmp.eq.s32.totalorder %s52, 0
      %p403 = por %p401, %p402
      %s404 = ssub.s32 %s54, %s61
      %p405 = scmp.eq.s32.totalorder %s404, 0
      %s407 = sadd.s32 %s406, 1
      %s408 = scalar_select %p405, %s406, %s407
      %p411 = pneg %p405
      %p412 = scmp.eq.s32.totalorder %s46, 3
      %p413 = por %p411, %p412
      %p414 = scmp.ne.s32.totalorder %s406, %s409
      %p415 = scmp.eq.s32.totalorder %s46, 0
      %p416 = por %p414, %p415
      %p417 = scmp.ne.s32.totalorder %s406, %s409
      %p418 = scmp.eq.s32.totalorder %s51, 3
      %p419 = por %p417, %p418
      %p420 = scmp.ne.s32.totalorder %s409, %s410
      %p421 = scmp.eq.s32.totalorder %s51, 0
      %p422 = por %p420, %p421
      %p423 = scmp.ne.s32.totalorder %s409, %s410
      %p424 = scmp.eq.s32.totalorder %s52, 3
      %p425 = por %p423, %p424
      %p427 = scmp.ne.s32.totalorder %s410, %s426
      %p428 = scmp.eq.s32.totalorder %s52, 0
      %p429 = por %p427, %p428
      %s430 = ssub.s32 %s54, %s61
      %p431 = scmp.eq.s32.totalorder %s430, 0
      %s433 = sadd.s32 %s432, 1
      %s434 = scalar_select %p431, %s432, %s433
      %p437 = pneg %p431
      %p438 = scmp.eq.s32.totalorder %s46, 3
      %p439 = por %p437, %p438
      %p440 = scmp.ne.s32.totalorder %s432, %s435
      %p441 = scmp.eq.s32.totalorder %s46, 0
      %p442 = por %p440, %p441
      %p443 = scmp.ne.s32.totalorder %s432, %s435
      %p444 = scmp.eq.s32.totalorder %s51, 3
      %p445 = por %p443, %p444
      %p446 = scmp.ne.s32.totalorder %s435, %s436
      %p447 = scmp.eq.s32.totalorder %s51, 0
      %p448 = por %p446, %p447
      %p449 = scmp.ne.s32.totalorder %s435, %s436
      %p450 = scmp.eq.s32.totalorder %s52, 3
      %p451 = por %p449, %p450
      %p453 = scmp.ne.s32.totalorder %s436, %s452
      %p454 = scmp.eq.s32.totalorder %s52, 0
      %p455 = por %p453, %p454
      %s456 = ssub.s32 %s54, %s61
      %p457 = scmp.eq.s32.totalorder %s456, 0
      %s459 = sadd.s32 %s458, 1
      %s460 = scalar_select %p457, %s458, %s459
      %p463 = pneg %p457
      %p464 = scmp.eq.s32.totalorder %s46, 3
      %p465 = por %p463, %p464
      %p466 = scmp.ne.s32.totalorder %s458, %s461
      %p467 = scmp.eq.s32.totalorder %s46, 0
      %p468 = por %p466, %p467
      %p469 = scmp.ne.s32.totalorder %s458, %s461
      %p470 = scmp.eq.s32.totalorder %s51, 3
      %p471 = por %p469, %p470
      %p472 = scmp.ne.s32.totalorder %s461, %s462
      %p473 = scmp.eq.s32.totalorder %s51, 0
      %p474 = por %p472, %p473
      %p475 = scmp.ne.s32.totalorder %s461, %s462
      %p476 = scmp.eq.s32.totalorder %s52, 3
      %p477 = por %p475, %p476
      %p479 = scmp.ne.s32.totalorder %s462, %s478
      %p480 = scmp.eq.s32.totalorder %s52, 0
      %p481 = por %p479, %p480
      %s482 = ssub.s32 %s54, %s61
      %p483 = scmp.eq.s32.totalorder %s482, 0
      %s485 = sadd.s32 %s484, 1
      %s486 = scalar_select %p483, %s484, %s485
      %p489 = pneg %p483
      %p490 = scmp.eq.s32.totalorder %s46, 3
      %p491 = por %p489, %p490
      %p492 = scmp.ne.s32.totalorder %s484, %s487
      %p493 = scmp.eq.s32.totalorder %s46, 0
      %p494 = por %p492, %p493
      %p495 = scmp.ne.s32.totalorder %s484, %s487
      %p496 = scmp.eq.s32.totalorder %s51, 3
      %p497 = por %p495, %p496
      %p498 = scmp.ne.s32.totalorder %s487, %s488
      %p499 = scmp.eq.s32.totalorder %s51, 0
      %p500 = por %p498, %p499
      %p501 = scmp.ne.s32.totalorder %s487, %s488
      %p502 = scmp.eq.s32.totalorder %s52, 3
      %p503 = por %p501, %p502
      %p505 = scmp.ne.s32.totalorder %s488, %s504
      %p506 = scmp.eq.s32.totalorder %s52, 0
      %p507 = por %p505, %p506
      %s509 = sadd.s32 %s508, 1
      %p512 = scmp.eq.s32.totalorder %s46, 3
      %p513 = scmp.ne.s32.totalorder %s508, %s510
      %p514 = scmp.eq.s32.totalorder %s46, 0
      %p515 = por %p513, %p514
      %p516 = scmp.ne.s32.totalorder %s508, %s510
      %p517 = scmp.eq.s32.totalorder %s51, 3
      %p518 = por %p516, %p517
      %p519 = scmp.ne.s32.totalorder %s510, %s511
      %p520 = scmp.eq.s32.totalorder %s51, 0
      %p521 = por %p519, %p520
      %p522 = scmp.ne.s32.totalorder %s510, %s511
      %p523 = scmp.eq.s32.totalorder %s52, 3
      %p524 = por %p522, %p523
      %p526 = scmp.ne.s32.totalorder %s511, %s525
      %p527 = scmp.eq.s32.totalorder %s52, 0
      %p528 = por %p526, %p527
      %s530 = sadd.s32 %s529, 1
      %p533 = scmp.eq.s32.totalorder %s46, 3
      %p534 = scmp.ne.s32.totalorder %s529, %s531
      %p535 = scmp.eq.s32.totalorder %s46, 0
      %p536 = por %p534, %p535
      %p537 = scmp.ne.s32.totalorder %s529, %s531
      %p538 = scmp.eq.s32.totalorder %s51, 3
      %p539 = por %p537, %p538
      %p540 = scmp.ne.s32.totalorder %s531, %s532
      %p541 = scmp.eq.s32.totalorder %s51, 0
      %p542 = por %p540, %p541
      %p543 = scmp.ne.s32.totalorder %s531, %s532
      %p544 = scmp.eq.s32.totalorder %s52, 3
      %p545 = por %p543, %p544
      %p547 = scmp.ne.s32.totalorder %s532, %s546
      %p548 = scmp.eq.s32.totalorder %s52, 0
      %p549 = por %p547, %p548
      %s550 = ssub.s32 %s53, %s65
      %p551 = scmp.eq.s32.totalorder %s550, 0
      %s553 = sadd.s32 %s552, 1
      %s554 = scalar_select %p551, %s552, %s553
      %p557 = pneg %p551
      %p558 = scmp.eq.s32.totalorder %s46, 3
      %p559 = por %p557, %p558
      %p560 = scmp.ne.s32.totalorder %s552, %s555
      %p561 = scmp.eq.s32.totalorder %s46, 0
      %p562 = por %p560, %p561
      %p563 = scmp.ne.s32.totalorder %s552, %s555
      %p564 = scmp.eq.s32.totalorder %s51, 3
      %p565 = por %p563, %p564
      %p566 = scmp.ne.s32.totalorder %s555, %s556
      %p567 = scmp.eq.s32.totalorder %s51, 0
      %p568 = por %p566, %p567
      %p569 = scmp.ne.s32.totalorder %s555, %s556
      %p570 = scmp.eq.s32.totalorder %s52, 3
      %p571 = por %p569, %p570
      %p573 = scmp.ne.s32.totalorder %s556, %s572
      %p574 = scmp.eq.s32.totalorder %s52, 0
      %p575 = por %p573, %p574
      %p576 = scmp.le.s32.totalorder 1, %s46
      %p577 = scmp.lt.s32.totalorder %s46, 5
      %p578 = pnand %p576, %p577
      %p579 = pneg %p578
      // Predicated region
      $region9: #{tpu_custom_call.1} parent=5 // pred_check
        _
      $region10: #{tpu_custom_call.1} parent=5 // pred_check_branch
        %581 = sbr.rel (%p578) target = $region12
      $region11: #{tpu_custom_call.1} parent=5 // pred_region
        %s582 = ssub.s32 %s46, 1
        // Predicated region
        $region13: #{tpu_custom_call.1} parent=11 // pred_check
          %p583 = pneg %p521
        $region14: #{tpu_custom_call.1} parent=11 // pred_check_branch
          %585 = sbr.rel (%p583) target = $region16
        $region15: #{tpu_custom_call.1} parent=11 // pred_region
          _
        $region16: #{tpu_custom_call.1} parent=11 // pred_fallthru
          _
        // Predicated region
        $region17: #{tpu_custom_call.1} parent=11 // pred_check
          %p586 = pneg %p542
        $region18: #{tpu_custom_call.1} parent=11 // pred_check_branch
          %588 = sbr.rel (%p586) target = $region20
        $region19: #{tpu_custom_call.1} parent=11 // pred_region
          _
        $region20: #{tpu_custom_call.1} parent=11 // pred_fallthru
          _
      $region12: #{tpu_custom_call.1} parent=5 // pred_fallthru
        _
      %p589 = scmp.lt.s32.totalorder %s46, 4
      // Predicated region
      $region21: #{tpu_custom_call.1} parent=5 // pred_check
        %p590 = pneg %p589
      $region22: #{tpu_custom_call.1} parent=5 // pred_check_branch
        %592 = sbr.rel (%p590) target = $region24
      $region23: #{tpu_custom_call.1} parent=5 // pred_region
        // Predicated region
        $region25: #{tpu_custom_call.1} parent=23 // pred_check
          %p593 = pneg %p78
        $region26: #{tpu_custom_call.1} parent=23 // pred_check_branch
          %595 = sbr.rel (%p593) target = $region28
        $region27: #{tpu_custom_call.1} parent=23 // pred_region
          %s596 = sand.u32 %s68, 1
          %s597 = scalar_lea.sflag [#allocation4], %s596
          %s598 = sand.u32 %s68, 1
          %s599 = smul.addr %s598, 32
          %s600 = scalar_lea.vmem [#allocation3], %s599
          %602 = vsyncadd %s597, 0
          %s603 = smul.addr %s53, 4
          %s604 = smul.addr %s603, 8
          %s605 = scalar_lea.hbm %s0, %s604
          %s606 = sshll.u32 %s605, 4
          %s607 = int_to_ptr.hbm [resolvable:$true] %s606
          %s608 = sshll.u32 %s600, 4
          %s609 = int_to_ptr.vmem [resolvable:$true] %s608
          %614 = dma.hbm_to_vmem [thread:$0]  %s607, 512, %s609, %s597, 128, 128, 8
        $region28: #{tpu_custom_call.1} parent=23 // pred_fallthru
          _
        // Predicated region
        $region29: #{tpu_custom_call.1} parent=23 // pred_check
          %p615 = pneg %p104
        $region30: #{tpu_custom_call.1} parent=23 // pred_check_branch
          %617 = sbr.rel (%p615) target = $region32
        $region31: #{tpu_custom_call.1} parent=23 // pred_region
          %s618 = sand.u32 %s46, 1
          %s619 = scalar_lea.sflag [#allocation7], %s618
          %s620 = sand.u32 %s94, 1
          %s621 = smul.addr %s620, 64
          %s622 = scalar_lea.vmem [#allocation6], %s621
          %624 = vsyncadd %s619, 0
          %s625 = smul.addr %s54, 16
          %s626 = smul.addr %s625, 4
          %s627 = scalar_lea.hbm %s1, %s626
          %s628 = sshll.u32 %s627, 4
          %s629 = int_to_ptr.hbm [resolvable:$true] %s628
          %s630 = sshll.u32 %s622, 4
          %s631 = int_to_ptr.vmem [resolvable:$true] %s630
          %636 = dma.hbm_to_vmem [thread:$0]  %s629, 1024, %s631, %s619, 64, 64, 4
        $region32: #{tpu_custom_call.1} parent=23 // pred_fallthru
          _
        // Predicated region
        $region33: #{tpu_custom_call.1} parent=23 // pred_check
          %p637 = pneg %p130
        $region34: #{tpu_custom_call.1} parent=23 // pred_check_branch
          %639 = sbr.rel (%p637) target = $region36
        $region35: #{tpu_custom_call.1} parent=23 // pred_region
          %s640 = sand.u32 %s46, 1
          %s641 = scalar_lea.sflag [#allocation7], %s640
          %s642 = sand.u32 %s120, 1
          %s643 = scalar_lea.vmem [#allocation8], %s642
          %645 = vsyncadd %s641, 0
          %s646 = scalar_lea.hbm %s2, %s54
          %s648 = sshll.u32 %s646, 4
          %s649 = int_to_ptr.hbm [resolvable:$true] %s648
          %s650 = sshll.u32 %s643, 4
          %s651 = int_to_ptr.vmem [resolvable:$true] %s650
          %653 = dma.hbm_to_vmem [thread:$0]  %s649, 16, %s651, %s641
        $region36: #{tpu_custom_call.1} parent=23 // pred_fallthru
          _
        // Predicated region
        $region37: #{tpu_custom_call.1} parent=23 // pred_check
          %p654 = pneg %p156
        $region38: #{tpu_custom_call.1} parent=23 // pred_check_branch
          %656 = sbr.rel (%p654) target = $region40
        $region39: #{tpu_custom_call.1} parent=23 // pred_region
          %s657 = sand.u32 %s46, 1
          %s658 = scalar_lea.sflag [#allocation10], %s657
          %s659 = sand.u32 %s146, 1
          %s660 = smul.addr %s659, 64
          %s661 = scalar_lea.vmem [#allocation9], %s660
          %663 = vsyncadd %s658, 0
          %s664 = smul.addr %s54, 16
          %s665 = smul.addr %s664, 4
          %s666 = scalar_lea.hbm %s3, %s665
          %s667 = sshll.u32 %s666, 4
          %s668 = int_to_ptr.hbm [resolvable:$true] %s667
          %s669 = sshll.u32 %s661, 4
          %s670 = int_to_ptr.vmem [resolvable:$true] %s669
          %675 = dma.hbm_to_vmem [thread:$0]  %s668, 1024, %s670, %s658, 64, 64, 4
        $region40: #{tpu_custom_call.1} parent=23 // pred_fallthru
          _
        // Predicated region
        $region41: #{tpu_custom_call.1} parent=23 // pred_check
          %p676 = pneg %p182
        $region42: #{tpu_custom_call.1} parent=23 // pred_check_branch
          %678 = sbr.rel (%p676) target = $region44
        $region43: #{tpu_custom_call.1} parent=23 // pred_region
          %p679 = scmp.lt.s32.totalorder %s54, 1
          %s680 = scalar_select %p679, %s54, 1
          %s681 = scalar_lea.vmem %s4, %s680
        $region44: #{tpu_custom_call.1} parent=23 // pred_fallthru
          _
        // Predicated region
        $region45: #{tpu_custom_call.1} parent=23 // pred_check
          %p682 = pneg %p208
        $region46: #{tpu_custom_call.1} parent=23 // pred_check_branch
          %684 = sbr.rel (%p682) target = $region48
        $region47: #{tpu_custom_call.1} parent=23 // pred_region
          %s685 = sand.u32 %s46, 1
          %s686 = scalar_lea.sflag [#allocation10], %s685
          %s687 = sand.u32 %s198, 1
          %s688 = smul.addr %s687, 64
          %s689 = scalar_lea.vmem [#allocation11], %s688
          %691 = vsyncadd %s686, 0
          %s692 = smul.addr %s54, 16
          %s693 = smul.addr %s692, 4
          %s694 = scalar_lea.hbm %s5, %s693
          %s695 = sshll.u32 %s694, 4
          %s696 = int_to_ptr.hbm [resolvable:$true] %s695
          %s697 = sshll.u32 %s689, 4
          %s698 = int_to_ptr.vmem [resolvable:$true] %s697
          %703 = dma.hbm_to_vmem [thread:$0]  %s696, 1024, %s698, %s686, 64, 64, 4
        $region48: #{tpu_custom_call.1} parent=23 // pred_fallthru
          _
        // Predicated region
        $region49: #{tpu_custom_call.1} parent=23 // pred_check
          %p704 = pneg %p234
        $region50: #{tpu_custom_call.1} parent=23 // pred_check_branch
          %706 = sbr.rel (%p704) target = $region52
        $region51: #{tpu_custom_call.1} parent=23 // pred_region
          %s707 = sand.u32 %s46, 1
          %s708 = scalar_lea.sflag [#allocation13], %s707
          %s709 = sand.u32 %s224, 1
          %s710 = scalar_lea.vmem [#allocation12], %s709
          %712 = vsyncadd %s708, 0
          %s713 = scalar_lea.hbm %s6, %s54
          %s715 = sshll.u32 %s713, 4
          %s716 = int_to_ptr.hbm [resolvable:$true] %s715
          %s717 = sshll.u32 %s710, 4
          %s718 = int_to_ptr.vmem [resolvable:$true] %s717
          %720 = dma.hbm_to_vmem [thread:$0]  %s716, 16, %s718, %s708
        $region52: #{tpu_custom_call.1} parent=23 // pred_fallthru
          _
        // Predicated region
        $region53: #{tpu_custom_call.1} parent=23 // pred_check
          %p721 = pneg %p260
        $region54: #{tpu_custom_call.1} parent=23 // pred_check_branch
          %723 = sbr.rel (%p721) target = $region56
        $region55: #{tpu_custom_call.1} parent=23 // pred_region
          %s724 = sand.u32 %s46, 1
          %s725 = scalar_lea.sflag [#allocation13], %s724
          %s726 = sand.u32 %s250, 1
          %s727 = smul.addr %s726, 64
          %s728 = scalar_lea.vmem [#allocation14], %s727
          %730 = vsyncadd %s725, 0
          %s731 = smul.addr %s54, 16
          %s732 = smul.addr %s731, 4
          %s733 = scalar_lea.hbm %s7, %s732
          %s734 = sshll.u32 %s733, 4
          %s735 = int_to_ptr.hbm [resolvable:$true] %s734
          %s736 = sshll.u32 %s728, 4
          %s737 = int_to_ptr.vmem [resolvable:$true] %s736
          %742 = dma.hbm_to_vmem [thread:$0]  %s735, 1024, %s737, %s725, 64, 64, 4
        $region56: #{tpu_custom_call.1} parent=23 // pred_fallthru
          _
        // Predicated region
        $region57: #{tpu_custom_call.1} parent=23 // pred_check
          %p743 = pneg %p286
        $region58: #{tpu_custom_call.1} parent=23 // pred_check_branch
          %745 = sbr.rel (%p743) target = $region60
        $region59: #{tpu_custom_call.1} parent=23 // pred_region
          %s746 = sand.u32 %s46, 1
          %s747 = scalar_lea.sflag [#allocation16], %s746
          %s748 = sand.u32 %s276, 1
          %s749 = scalar_lea.vmem [#allocation15], %s748
          %751 = vsyncadd %s747, 0
          %s752 = scalar_lea.hbm %s8, %s54
          %s754 = sshll.u32 %s752, 4
          %s755 = int_to_ptr.hbm [resolvable:$true] %s754
          %s756 = sshll.u32 %s749, 4
          %s757 = int_to_ptr.vmem [resolvable:$true] %s756
          %759 = dma.hbm_to_vmem [thread:$0]  %s755, 16, %s757, %s747
        $region60: #{tpu_custom_call.1} parent=23 // pred_fallthru
          _
        // Predicated region
        $region61: #{tpu_custom_call.1} parent=23 // pred_check
          %p760 = pneg %p312
        $region62: #{tpu_custom_call.1} parent=23 // pred_check_branch
          %762 = sbr.rel (%p760) target = $region64
        $region63: #{tpu_custom_call.1} parent=23 // pred_region
          %p763 = scmp.lt.s32.totalorder %s54, 1
          %s764 = scalar_select %p763, %s54, 1
          %s765 = scalar_lea.vmem %s9, %s764
        $region64: #{tpu_custom_call.1} parent=23 // pred_fallthru
          _
        // Predicated region
        $region65: #{tpu_custom_call.1} parent=23 // pred_check
          %p766 = pneg %p338
        $region66: #{tpu_custom_call.1} parent=23 // pred_check_branch
          %768 = sbr.rel (%p766) target = $region68
        $region67: #{tpu_custom_call.1} parent=23 // pred_region
          %s769 = sand.u32 %s46, 1
          %s770 = scalar_lea.sflag [#allocation16], %s769
          %s771 = sand.u32 %s328, 1
          %s772 = scalar_lea.vmem [#allocation17], %s771
          %774 = vsyncadd %s770, 0
          %s775 = scalar_lea.hbm %s10, %s54
          %s777 = sshll.u32 %s775, 4
          %s778 = int_to_ptr.hbm [resolvable:$true] %s777
          %s779 = sshll.u32 %s772, 4
          %s780 = int_to_ptr.vmem [resolvable:$true] %s779
          %782 = dma.hbm_to_vmem [thread:$0]  %s778, 16, %s780, %s770
        $region68: #{tpu_custom_call.1} parent=23 // pred_fallthru
          _
        // Predicated region
        $region69: #{tpu_custom_call.1} parent=23 // pred_check
          %p783 = pneg %p364
        $region70: #{tpu_custom_call.1} parent=23 // pred_check_branch
          %785 = sbr.rel (%p783) target = $region72
        $region71: #{tpu_custom_call.1} parent=23 // pred_region
          %s786 = sand.u32 %s46, 1
          %s787 = scalar_lea.sflag [#allocation19], %s786
          %s788 = sand.u32 %s354, 1
          %s789 = smul.addr %s788, 128
          %s790 = scalar_lea.vmem [#allocation18], %s789
          %792 = vsyncadd %s787, 0
          %s793 = smul.addr %s54, 32
          %s794 = smul.addr %s793, 4
          %s795 = scalar_lea.hbm %s11, %s794
          %s796 = sshll.u32 %s795, 4
          %s797 = int_to_ptr.hbm [resolvable:$true] %s796
          %s798 = sshll.u32 %s790, 4
          %s799 = int_to_ptr.vmem [resolvable:$true] %s798
          %804 = dma.hbm_to_vmem [thread:$0]  %s797, 2048, %s799, %s787, 128, 128, 8
        $region72: #{tpu_custom_call.1} parent=23 // pred_fallthru
          _
        // Predicated region
        $region73: #{tpu_custom_call.1} parent=23 // pred_check
          %p805 = pneg %p390
        $region74: #{tpu_custom_call.1} parent=23 // pred_check_branch
          %807 = sbr.rel (%p805) target = $region76
        $region75: #{tpu_custom_call.1} parent=23 // pred_region
          %p808 = scmp.lt.s32.totalorder %s54, 1
          %s809 = scalar_select %p808, %s54, 1
          %s810 = smul.addr %s809, 2
          %s811 = scalar_lea.vmem %s12, %s810
        $region76: #{tpu_custom_call.1} parent=23 // pred_fallthru
          _
        // Predicated region
        $region77: #{tpu_custom_call.1} parent=23 // pred_check
          %p812 = pneg %p416
        $region78: #{tpu_custom_call.1} parent=23 // pred_check_branch
          %814 = sbr.rel (%p812) target = $region80
        $region79: #{tpu_custom_call.1} parent=23 // pred_region
          %s815 = sand.u32 %s46, 1
          %s816 = scalar_lea.sflag [#allocation19], %s815
          %s817 = sand.u32 %s406, 1
          %s818 = smul.addr %s817, 128
          %s819 = scalar_lea.vmem [#allocation20], %s818
          %821 = vsyncadd %s816, 0
          %s822 = smul.addr %s54, 32
          %s823 = smul.addr %s822, 4
          %s824 = scalar_lea.hbm %s13, %s823
          %s825 = sshll.u32 %s824, 4
          %s826 = int_to_ptr.hbm [resolvable:$true] %s825
          %s827 = sshll.u32 %s819, 4
          %s828 = int_to_ptr.vmem [resolvable:$true] %s827
          %833 = dma.hbm_to_vmem [thread:$0]  %s826, 2048, %s828, %s816, 64, 64, 4
        $region80: #{tpu_custom_call.1} parent=23 // pred_fallthru
          _
        // Predicated region
        $region81: #{tpu_custom_call.1} parent=23 // pred_check
          %p834 = pneg %p442
        $region82: #{tpu_custom_call.1} parent=23 // pred_check_branch
          %836 = sbr.rel (%p834) target = $region84
        $region83: #{tpu_custom_call.1} parent=23 // pred_region
          %p837 = scmp.lt.s32.totalorder %s54, 1
          %s838 = scalar_select %p837, %s54, 1
          %s839 = scalar_lea.vmem %s14, %s838
        $region84: #{tpu_custom_call.1} parent=23 // pred_fallthru
          _
        // Predicated region
        $region85: #{tpu_custom_call.1} parent=23 // pred_check
          %p840 = pneg %p468
        $region86: #{tpu_custom_call.1} parent=23 // pred_check_branch
          %842 = sbr.rel (%p840) target = $region88
        $region87: #{tpu_custom_call.1} parent=23 // pred_region
          %p843 = scmp.lt.s32.totalorder %s54, 1
          %s844 = scalar_select %p843, %s54, 1
          %s845 = scalar_lea.vmem %s15, %s844
        $region88: #{tpu_custom_call.1} parent=23 // pred_fallthru
          _
        // Predicated region
        $region89: #{tpu_custom_call.1} parent=23 // pred_check
          %p846 = pneg %p494
        $region90: #{tpu_custom_call.1} parent=23 // pred_check_branch
          %848 = sbr.rel (%p846) target = $region92
        $region91: #{tpu_custom_call.1} parent=23 // pred_region
          %p849 = scmp.lt.s32.totalorder %s54, 1
          %s850 = scalar_select %p849, %s54, 1
          %s851 = scalar_lea.vmem %s16, %s850
        $region92: #{tpu_custom_call.1} parent=23 // pred_fallthru
          _
      $region24: #{tpu_custom_call.1} parent=5 // pred_fallthru
        _
      %p852 = scmp.le.s32.totalorder 1, %s46
      %p853 = scmp.lt.s32.totalorder %s46, 5
      %p854 = pnand %p852, %p853
      %p855 = pneg %p854
      // Predicated region
      $region93: #{tpu_custom_call.1} parent=5 // pred_check
        _
      $region94: #{tpu_custom_call.1} parent=5 // pred_check_branch
        %857 = sbr.rel (%p854) target = $region96
      $region95: #{tpu_custom_call.1} parent=5 // pred_region
        %s858 = ssub.s32 %s46, 1
        %s859 = sand.u32 %s71, 1
        %s860 = scalar_lea.sflag [#allocation4], %s859
        %s861 = sand.u32 %s71, 1
        %s862 = smul.addr %s861, 32
        %s863 = scalar_lea.vmem [#allocation3], %s862
        // Predicated region
        $region97: #{tpu_custom_call.1} parent=95 // pred_check
          %p864 = pneg %p84
        $region98: #{tpu_custom_call.1} parent=95 // pred_check_branch
          %866 = sbr.rel (%p864) target = $region100
        $region99: #{tpu_custom_call.1} parent=95 // pred_region
          %868 = dma.done %s860, 512
        $region100: #{tpu_custom_call.1} parent=95 // pred_fallthru
          _
        %s869 = sand.u32 %s51, 1
        %s870 = scalar_lea.sflag [#allocation7], %s869
        %s871 = sand.u32 %s97, 1
        %s872 = smul.addr %s871, 64
        %s873 = scalar_lea.vmem [#allocation6], %s872
        // Predicated region
        $region101: #{tpu_custom_call.1} parent=95 // pred_check
          %p874 = pneg %p110
        $region102: #{tpu_custom_call.1} parent=95 // pred_check_branch
          %876 = sbr.rel (%p874) target = $region104
        $region103: #{tpu_custom_call.1} parent=95 // pred_region
          %878 = dma.done %s870, 1024
        $region104: #{tpu_custom_call.1} parent=95 // pred_fallthru
          _
        %s879 = sand.u32 %s51, 1
        %s880 = scalar_lea.sflag [#allocation7], %s879
        %s881 = sand.u32 %s123, 1
        %s882 = scalar_lea.vmem [#allocation8], %s881
        // Predicated region
        $region105: #{tpu_custom_call.1} parent=95 // pred_check
          %p883 = pneg %p136
        $region106: #{tpu_custom_call.1} parent=95 // pred_check_branch
          %885 = sbr.rel (%p883) target = $region108
        $region107: #{tpu_custom_call.1} parent=95 // pred_region
          %887 = dma.done %s880, 16
        $region108: #{tpu_custom_call.1} parent=95 // pred_fallthru
          _
        %s888 = sand.u32 %s51, 1
        %s889 = scalar_lea.sflag [#allocation10], %s888
        %s890 = sand.u32 %s149, 1
        %s891 = smul.addr %s890, 64
        %s892 = scalar_lea.vmem [#allocation9], %s891
        // Predicated region
        $region109: #{tpu_custom_call.1} parent=95 // pred_check
          %p893 = pneg %p162
        $region110: #{tpu_custom_call.1} parent=95 // pred_check_branch
          %895 = sbr.rel (%p893) target = $region112
        $region111: #{tpu_custom_call.1} parent=95 // pred_region
          %897 = dma.done %s889, 1024
        $region112: #{tpu_custom_call.1} parent=95 // pred_fallthru
          _
        %s898 = sand.u32 %s51, 1
        %s899 = scalar_lea.sflag [#allocation10], %s898
        %s900 = sand.u32 %s201, 1
        %s901 = smul.addr %s900, 64
        %s902 = scalar_lea.vmem [#allocation11], %s901
        // Predicated region
        $region113: #{tpu_custom_call.1} parent=95 // pred_check
          %p903 = pneg %p214
        $region114: #{tpu_custom_call.1} parent=95 // pred_check_branch
          %905 = sbr.rel (%p903) target = $region116
        $region115: #{tpu_custom_call.1} parent=95 // pred_region
          %907 = dma.done %s899, 1024
        $region116: #{tpu_custom_call.1} parent=95 // pred_fallthru
          _
        %s908 = sand.u32 %s51, 1
        %s909 = scalar_lea.sflag [#allocation13], %s908
        %s910 = sand.u32 %s227, 1
        %s911 = scalar_lea.vmem [#allocation12], %s910
        // Predicated region
        $region117: #{tpu_custom_call.1} parent=95 // pred_check
          %p912 = pneg %p240
        $region118: #{tpu_custom_call.1} parent=95 // pred_check_branch
          %914 = sbr.rel (%p912) target = $region120
        $region119: #{tpu_custom_call.1} parent=95 // pred_region
          %916 = dma.done %s909, 16
        $region120: #{tpu_custom_call.1} parent=95 // pred_fallthru
          _
        %s917 = sand.u32 %s51, 1
        %s918 = scalar_lea.sflag [#allocation13], %s917
        %s919 = sand.u32 %s253, 1
        %s920 = smul.addr %s919, 64
        %s921 = scalar_lea.vmem [#allocation14], %s920
        // Predicated region
        $region121: #{tpu_custom_call.1} parent=95 // pred_check
          %p922 = pneg %p266
        $region122: #{tpu_custom_call.1} parent=95 // pred_check_branch
          %924 = sbr.rel (%p922) target = $region124
        $region123: #{tpu_custom_call.1} parent=95 // pred_region
          %926 = dma.done %s918, 1024
        $region124: #{tpu_custom_call.1} parent=95 // pred_fallthru
          _
        %s927 = sand.u32 %s51, 1
        %s928 = scalar_lea.sflag [#allocation16], %s927
        %s929 = sand.u32 %s279, 1
        %s930 = scalar_lea.vmem [#allocation15], %s929
        // Predicated region
        $region125: #{tpu_custom_call.1} parent=95 // pred_check
          %p931 = pneg %p292
        $region126: #{tpu_custom_call.1} parent=95 // pred_check_branch
          %933 = sbr.rel (%p931) target = $region128
        $region127: #{tpu_custom_call.1} parent=95 // pred_region
          %935 = dma.done %s928, 16
        $region128: #{tpu_custom_call.1} parent=95 // pred_fallthru
          _
        %s936 = sand.u32 %s51, 1
        %s937 = scalar_lea.sflag [#allocation16], %s936
        %s938 = sand.u32 %s331, 1
        %s939 = scalar_lea.vmem [#allocation17], %s938
        // Predicated region
        $region129: #{tpu_custom_call.1} parent=95 // pred_check
          %p940 = pneg %p344
        $region130: #{tpu_custom_call.1} parent=95 // pred_check_branch
          %942 = sbr.rel (%p940) target = $region132
        $region131: #{tpu_custom_call.1} parent=95 // pred_region
          %944 = dma.done %s937, 16
        $region132: #{tpu_custom_call.1} parent=95 // pred_fallthru
          _
        %s945 = sand.u32 %s51, 1
        %s946 = scalar_lea.sflag [#allocation19], %s945
        %s947 = sand.u32 %s357, 1
        %s948 = smul.addr %s947, 128
        %s949 = scalar_lea.vmem [#allocation18], %s948
        // Predicated region
        $region133: #{tpu_custom_call.1} parent=95 // pred_check
          %p950 = pneg %p370
        $region134: #{tpu_custom_call.1} parent=95 // pred_check_branch
          %952 = sbr.rel (%p950) target = $region136
        $region135: #{tpu_custom_call.1} parent=95 // pred_region
          %954 = dma.done %s946, 2048
        $region136: #{tpu_custom_call.1} parent=95 // pred_fallthru
          _
        %s955 = sand.u32 %s51, 1
        %s956 = scalar_lea.sflag [#allocation19], %s955
        %s957 = sand.u32 %s409, 1
        %s958 = smul.addr %s957, 128
        %s959 = scalar_lea.vmem [#allocation20], %s958
        // Predicated region
        $region137: #{tpu_custom_call.1} parent=95 // pred_check
          %p960 = pneg %p422
        $region138: #{tpu_custom_call.1} parent=95 // pred_check_branch
          %962 = sbr.rel (%p960) target = $region140
        $region139: #{tpu_custom_call.1} parent=95 // pred_region
          %964 = dma.done %s956, 2048
        $region140: #{tpu_custom_call.1} parent=95 // pred_fallthru
          _
        %s965 = sand.u32 %s71, 1
        %s966 = scalar_lea.sflag [#allocation4], %s965
        %s967 = sand.u32 %s71, 1
        %s968 = smul.addr %s967, 32
        %s969 = scalar_lea.vmem [#allocation3], %s968
        %p970 = pneg %p84
        %p971 = pneg %p81
        %s972 = sand.u32 %s51, 1
        %s973 = scalar_lea.sflag [#allocation7], %s972
        %s974 = sand.u32 %s97, 1
        %s975 = smul.addr %s974, 64
        %s976 = scalar_lea.vmem [#allocation6], %s975
        %p977 = pneg %p110
        %p978 = pneg %p107
        %s979 = sand.u32 %s51, 1
        %s980 = scalar_lea.sflag [#allocation7], %s979
        %s981 = sand.u32 %s123, 1
        %s982 = scalar_lea.vmem [#allocation8], %s981
        %p983 = pneg %p136
        %p984 = pneg %p133
        %s985 = sand.u32 %s51, 1
        %s986 = scalar_lea.sflag [#allocation10], %s985
        %s987 = sand.u32 %s149, 1
        %s988 = smul.addr %s987, 64
        %s989 = scalar_lea.vmem [#allocation9], %s988
        %p990 = pneg %p162
        %p991 = pneg %p159
        %p992 = scmp.lt.s32.totalorder %s56, 1
        %s993 = scalar_select %p992, %s56, 1
        %s994 = scalar_lea.vmem %s4, %s993
        %p995 = pneg %p188
        %p996 = pneg %p185
        %s997 = sand.u32 %s51, 1
        %s998 = scalar_lea.sflag [#allocation10], %s997
        %s999 = sand.u32 %s201, 1
        %s1000 = smul.addr %s999, 64
        %s1001 = scalar_lea.vmem [#allocation11], %s1000
        %p1002 = pneg %p214
        %p1003 = pneg %p211
        %s1004 = sand.u32 %s51, 1
        %s1005 = scalar_lea.sflag [#allocation13], %s1004
        %s1006 = sand.u32 %s227, 1
        %s1007 = scalar_lea.vmem [#allocation12], %s1006
        %p1008 = pneg %p240
        %p1009 = pneg %p237
        %s1010 = sand.u32 %s51, 1
        %s1011 = scalar_lea.sflag [#allocation13], %s1010
        %s1012 = sand.u32 %s253, 1
        %s1013 = smul.addr %s1012, 64
        %s1014 = scalar_lea.vmem [#allocation14], %s1013
        %p1015 = pneg %p266
        %p1016 = pneg %p263
        %s1017 = sand.u32 %s51, 1
        %s1018 = scalar_lea.sflag [#allocation16], %s1017
        %s1019 = sand.u32 %s279, 1
        %s1020 = scalar_lea.vmem [#allocation15], %s1019
        %p1021 = pneg %p292
        %p1022 = pneg %p289
        %p1023 = scmp.lt.s32.totalorder %s56, 1
        %s1024 = scalar_select %p1023, %s56, 1
        %s1025 = scalar_lea.vmem %s9, %s1024
        %p1026 = pneg %p318
        %p1027 = pneg %p315
        %s1028 = sand.u32 %s51, 1
        %s1029 = scalar_lea.sflag [#allocation16], %s1028
        %s1030 = sand.u32 %s331, 1
        %s1031 = scalar_lea.vmem [#allocation17], %s1030
        %p1032 = pneg %p344
        %p1033 = pneg %p341
        %s1034 = sand.u32 %s51, 1
        %s1035 = scalar_lea.sflag [#allocation19], %s1034
        %s1036 = sand.u32 %s357, 1
        %s1037 = smul.addr %s1036, 128
        %s1038 = scalar_lea.vmem [#allocation18], %s1037
        %p1039 = pneg %p370
        %p1040 = pneg %p367
        %p1041 = scmp.lt.s32.totalorder %s56, 1
        %s1042 = scalar_select %p1041, %s56, 1
        %s1043 = smul.addr %s1042, 2
        %s1044 = scalar_lea.vmem %s12, %s1043
        %p1045 = pneg %p396
        %p1046 = pneg %p393
        %s1047 = sand.u32 %s51, 1
        %s1048 = scalar_lea.sflag [#allocation19], %s1047
        %s1049 = sand.u32 %s409, 1
        %s1050 = smul.addr %s1049, 128
        %s1051 = scalar_lea.vmem [#allocation20], %s1050
        %p1052 = pneg %p422
        %p1053 = pneg %p419
        %p1054 = scmp.lt.s32.totalorder %s56, 1
        %s1055 = scalar_select %p1054, %s56, 1
        %s1056 = scalar_lea.vmem %s14, %s1055
        %p1057 = pneg %p448
        %p1058 = pneg %p445
        %p1059 = scmp.lt.s32.totalorder %s56, 1
        %s1060 = scalar_select %p1059, %s56, 1
        %s1061 = scalar_lea.vmem %s15, %s1060
        %p1062 = pneg %p474
        %p1063 = pneg %p471
        %p1064 = scmp.lt.s32.totalorder %s56, 1
        %s1065 = scalar_select %p1064, %s56, 1
        %s1066 = scalar_lea.vmem %s16, %s1065
        %p1067 = pneg %p500
        %p1068 = pneg %p497
        %p1069 = pneg %p521
        %p1070 = pneg %p518
        %p1071 = pneg %p542
        %p1072 = pneg %p539
        %p1073 = pneg %p568
        %p1074 = pneg %p565
        %s1075 = sand.u32 %s555, 1
        %s1076 = scalar_lea.sflag [#allocation5], %s1075
        %s1077 = sand.u32 %s555, 1
        %s1078 = smul.addr %s1077, 32
        %s1079 = scalar_lea.vmem [#allocation21], %s1078
        %p1080 = scmp.lt.s32.totalorder %s56, 1
        %s1081 = scalar_select %p1080, %s56, 1
        %s1082 = scalar_lea.vmem %s4, %s1081
        %p1083 = scmp.lt.s32.totalorder %s56, 1
        %s1084 = scalar_select %p1083, %s56, 1
        %s1085 = scalar_lea.vmem %s9, %s1084
        %p1086 = scmp.lt.s32.totalorder %s56, 1
        %s1087 = scalar_select %p1086, %s56, 1
        %s1088 = smul.addr %s1087, 2
        %s1089 = scalar_lea.vmem %s12, %s1088
        %p1090 = scmp.lt.s32.totalorder %s56, 1
        %s1091 = scalar_select %p1090, %s56, 1
        %s1092 = scalar_lea.vmem %s14, %s1091
        %p1093 = scmp.lt.s32.totalorder %s56, 1
        %s1094 = scalar_select %p1093, %s56, 1
        %s1095 = scalar_lea.vmem %s15, %s1094
        %p1096 = scmp.lt.s32.totalorder %s56, 1
        %s1097 = scalar_select %p1096, %s56, 1
        %s1098 = scalar_lea.vmem %s16, %s1097
        %p1100 = scmp.eq.s32.totalorder %s56, 0
        // Predicated region
        $region141: #{tpu_custom_call.1} parent=95 // pred_check
          %p1101 = pneg %p1100
        $region142: #{tpu_custom_call.1} parent=95 // pred_check_branch
          %1103 = sbr.rel (%p1101) target = $region144
        $region143: #{tpu_custom_call.1} parent=95 // pred_region
          %v1104 = vld [vmem:[%s863] sm:$0xff]
          %v1105 = vld [vmem:[%s863 + $0x8] sm:$0xff]
          %v1106 = vld [vmem:[%s863 + $0x10] sm:$0xff]
          %v1107 = vld [vmem:[%s863 + $0x18] sm:$0xff]
          %1108 = vst [vmem:[#allocation2] sm:$0xff] %v1104
          %1109 = vst [vmem:[#allocation2 + $0x8] sm:$0xff] %v1105
          %1110 = vst [vmem:[#allocation2 + $0x10] sm:$0xff] %v1106
          %1111 = vst [vmem:[#allocation2 + $0x18] sm:$0xff] %v1107
        $region144: #{tpu_custom_call.1} parent=95 // pred_fallthru
          _
        %v1112 = vld [vmem:[#allocation2] sm:$0xff]
        %v1113 = vld [vmem:[#allocation2 + $0x8] sm:$0xff]
        %v1114 = vld [vmem:[#allocation2 + $0x10] sm:$0xff]
        %v1115 = vld [vmem:[#allocation2 + $0x18] sm:$0xff]
        %v1116 = vld [vmem:[%s873] sm:$0xf]
        %v1117 = vld [vmem:[%s873 + $0x4] sm:$0xf]
        %v1118 = vld [vmem:[%s873 + $0x8] sm:$0xf]
        %v1119 = vld [vmem:[%s873 + $0xc] sm:$0xf]
        %v1120 = vld [vmem:[%s873 + $0x10] sm:$0xf]
        %v1121 = vld [vmem:[%s873 + $0x14] sm:$0xf]
        %v1122 = vld [vmem:[%s873 + $0x18] sm:$0xf]
        %v1123 = vld [vmem:[%s873 + $0x1c] sm:$0xf]
        %v1124 = vld [vmem:[%s873 + $0x20] sm:$0xf]
        %v1125 = vld [vmem:[%s873 + $0x24] sm:$0xf]
        %v1126 = vld [vmem:[%s873 + $0x28] sm:$0xf]
        %v1127 = vld [vmem:[%s873 + $0x2c] sm:$0xf]
        %v1128 = vld [vmem:[%s873 + $0x30] sm:$0xf]
        %v1129 = vld [vmem:[%s873 + $0x34] sm:$0xf]
        %v1130 = vld [vmem:[%s873 + $0x38] sm:$0xf]
        %v1131 = vld [vmem:[%s873 + $0x3c] sm:$0xf]
        %v1132 = vld [vmem:[%s882] sm:$0x1]
        %v1133 = vld [vmem:[%s892] sm:$0xf]
        %v1134 = vld [vmem:[%s892 + $0x4] sm:$0xf]
        %v1135 = vld [vmem:[%s892 + $0x8] sm:$0xf]
        %v1136 = vld [vmem:[%s892 + $0xc] sm:$0xf]
        %v1137 = vld [vmem:[%s892 + $0x10] sm:$0xf]
        %v1138 = vld [vmem:[%s892 + $0x14] sm:$0xf]
        %v1139 = vld [vmem:[%s892 + $0x18] sm:$0xf]
        %v1140 = vld [vmem:[%s892 + $0x1c] sm:$0xf]
        %v1141 = vld [vmem:[%s892 + $0x20] sm:$0xf]
        %v1142 = vld [vmem:[%s892 + $0x24] sm:$0xf]
        %v1143 = vld [vmem:[%s892 + $0x28] sm:$0xf]
        %v1144 = vld [vmem:[%s892 + $0x2c] sm:$0xf]
        %v1145 = vld [vmem:[%s892 + $0x30] sm:$0xf]
        %v1146 = vld [vmem:[%s892 + $0x34] sm:$0xf]
        %v1147 = vld [vmem:[%s892 + $0x38] sm:$0xf]
        %v1148 = vld [vmem:[%s892 + $0x3c] sm:$0xf]
        %v1149 = vld [vmem:[%s1082] sm:$0x1]
        %v1150 = vld [vmem:[%s902] sm:$0xf]
        %v1151 = vld [vmem:[%s902 + $0x4] sm:$0xf]
        %v1152 = vld [vmem:[%s902 + $0x8] sm:$0xf]
        %v1153 = vld [vmem:[%s902 + $0xc] sm:$0xf]
        %v1154 = vld [vmem:[%s902 + $0x10] sm:$0xf]
        %v1155 = vld [vmem:[%s902 + $0x14] sm:$0xf]
        %v1156 = vld [vmem:[%s902 + $0x18] sm:$0xf]
        %v1157 = vld [vmem:[%s902 + $0x1c] sm:$0xf]
        %v1158 = vld [vmem:[%s902 + $0x20] sm:$0xf]
        %v1159 = vld [vmem:[%s902 + $0x24] sm:$0xf]
        %v1160 = vld [vmem:[%s902 + $0x28] sm:$0xf]
        %v1161 = vld [vmem:[%s902 + $0x2c] sm:$0xf]
        %v1162 = vld [vmem:[%s902 + $0x30] sm:$0xf]
        %v1163 = vld [vmem:[%s902 + $0x34] sm:$0xf]
        %v1164 = vld [vmem:[%s902 + $0x38] sm:$0xf]
        %v1165 = vld [vmem:[%s902 + $0x3c] sm:$0xf]
        %v1166 = vld [vmem:[%s911] sm:$0x1]
        %v1167 = vld [vmem:[%s921] sm:$0xf]
        %v1168 = vld [vmem:[%s921 + $0x4] sm:$0xf]
        %v1169 = vld [vmem:[%s921 + $0x8] sm:$0xf]
        %v1170 = vld [vmem:[%s921 + $0xc] sm:$0xf]
        %v1171 = vld [vmem:[%s921 + $0x10] sm:$0xf]
        %v1172 = vld [vmem:[%s921 + $0x14] sm:$0xf]
        %v1173 = vld [vmem:[%s921 + $0x18] sm:$0xf]
        %v1174 = vld [vmem:[%s921 + $0x1c] sm:$0xf]
        %v1175 = vld [vmem:[%s921 + $0x20] sm:$0xf]
        %v1176 = vld [vmem:[%s921 + $0x24] sm:$0xf]
        %v1177 = vld [vmem:[%s921 + $0x28] sm:$0xf]
        %v1178 = vld [vmem:[%s921 + $0x2c] sm:$0xf]
        %v1179 = vld [vmem:[%s921 + $0x30] sm:$0xf]
        %v1180 = vld [vmem:[%s921 + $0x34] sm:$0xf]
        %v1181 = vld [vmem:[%s921 + $0x38] sm:$0xf]
        %v1182 = vld [vmem:[%s921 + $0x3c] sm:$0xf]
        %v1183 = vld [vmem:[%s930] sm:$0x1]
        %v1184 = vld [vmem:[%s1085] sm:$0x1]
        %v1185 = vld [vmem:[%s939] sm:$0x1]
        %v1186 = vld [vmem:[%s949] sm:$0xff]
        %v1187 = vld [vmem:[%s949 + $0x8] sm:$0xff]
        %v1188 = vld [vmem:[%s949 + $0x10] sm:$0xff]
        %v1189 = vld [vmem:[%s949 + $0x18] sm:$0xff]
        %v1190 = vld [vmem:[%s949 + $0x20] sm:$0xff]
        %v1191 = vld [vmem:[%s949 + $0x28] sm:$0xff]
        %v1192 = vld [vmem:[%s949 + $0x30] sm:$0xff]
        %v1193 = vld [vmem:[%s949 + $0x38] sm:$0xff]
        %v1194 = vld [vmem:[%s949 + $0x40] sm:$0xff]
        %v1195 = vld [vmem:[%s949 + $0x48] sm:$0xff]
        %v1196 = vld [vmem:[%s949 + $0x50] sm:$0xff]
        %v1197 = vld [vmem:[%s949 + $0x58] sm:$0xff]
        %v1198 = vld [vmem:[%s949 + $0x60] sm:$0xff]
        %v1199 = vld [vmem:[%s949 + $0x68] sm:$0xff]
        %v1200 = vld [vmem:[%s949 + $0x70] sm:$0xff]
        %v1201 = vld [vmem:[%s949 + $0x78] sm:$0xff]
        %v1202 = vld [vmem:[%s1089] sm:$0x3]
        %v1203 = vld [vmem:[%s959] sm:$0xf]
        %v1204 = vld [vmem:[%s959 + $0x4] sm:$0xf]
        %v1205 = vld [vmem:[%s959 + $0x8] sm:$0xf]
        %v1206 = vld [vmem:[%s959 + $0xc] sm:$0xf]
        %v1207 = vld [vmem:[%s959 + $0x10] sm:$0xf]
        %v1208 = vld [vmem:[%s959 + $0x14] sm:$0xf]
        %v1209 = vld [vmem:[%s959 + $0x18] sm:$0xf]
        %v1210 = vld [vmem:[%s959 + $0x1c] sm:$0xf]
        %v1211 = vld [vmem:[%s959 + $0x20] sm:$0xf]
        %v1212 = vld [vmem:[%s959 + $0x24] sm:$0xf]
        %v1213 = vld [vmem:[%s959 + $0x28] sm:$0xf]
        %v1214 = vld [vmem:[%s959 + $0x2c] sm:$0xf]
        %v1215 = vld [vmem:[%s959 + $0x30] sm:$0xf]
        %v1216 = vld [vmem:[%s959 + $0x34] sm:$0xf]
        %v1217 = vld [vmem:[%s959 + $0x38] sm:$0xf]
        %v1218 = vld [vmem:[%s959 + $0x3c] sm:$0xf]
        %v1219 = vld [vmem:[%s959 + $0x40] sm:$0xf]
        %v1220 = vld [vmem:[%s959 + $0x44] sm:$0xf]
        %v1221 = vld [vmem:[%s959 + $0x48] sm:$0xf]
        %v1222 = vld [vmem:[%s959 + $0x4c] sm:$0xf]
        %v1223 = vld [vmem:[%s959 + $0x50] sm:$0xf]
        %v1224 = vld [vmem:[%s959 + $0x54] sm:$0xf]
        %v1225 = vld [vmem:[%s959 + $0x58] sm:$0xf]
        %v1226 = vld [vmem:[%s959 + $0x5c] sm:$0xf]
        %v1227 = vld [vmem:[%s959 + $0x60] sm:$0xf]
        %v1228 = vld [vmem:[%s959 + $0x64] sm:$0xf]
        %v1229 = vld [vmem:[%s959 + $0x68] sm:$0xf]
        %v1230 = vld [vmem:[%s959 + $0x6c] sm:$0xf]
        %v1231 = vld [vmem:[%s959 + $0x70] sm:$0xf]
        %v1232 = vld [vmem:[%s959 + $0x74] sm:$0xf]
        %v1233 = vld [vmem:[%s959 + $0x78] sm:$0xf]
        %v1234 = vld [vmem:[%s959 + $0x7c] sm:$0xf]
        %v1235 = vld [vmem:[%s1092] sm:$0x1]
        %v1236 = vld [vmem:[%s1095] sm:$0x1]
        %v1237 = vld [vmem:[%s1098] sm:$0x1]
        %v1238 = vpack.c.bf16 %v1113, %v1112
        %v1239 = vpack.c.bf16 %v1115, %v1114
        %v1241 = vperm.slane %v1132, 0
        %v1259 = vunpack.c.l.b16 %v1116
        %v1260 = vunpack.c.l.b16 %v1117
        %v1261 = vunpack.c.l.b16 %v1118
        %v1262 = vunpack.c.l.b16 %v1119
        %v1263 = vunpack.c.l.b16 %v1120
        %v1264 = vunpack.c.l.b16 %v1121
        %v1265 = vunpack.c.l.b16 %v1122
        %v1266 = vunpack.c.l.b16 %v1123
        %v1267 = vunpack.c.l.b16 %v1124
        %v1268 = vunpack.c.l.b16 %v1125
        %v1269 = vunpack.c.l.b16 %v1126
        %v1270 = vunpack.c.l.b16 %v1127
        %v1271 = vunpack.c.l.b16 %v1128
        %v1272 = vunpack.c.l.b16 %v1129
        %v1273 = vunpack.c.l.b16 %v1130
        %v1274 = vunpack.c.l.b16 %v1131
        %v1275 = vpack.c.b16 %v1260, %v1259
        %v1276 = vpack.c.b16 %v1262, %v1261
        %v1277 = vpack.c.b16 %v1264, %v1263
        %v1278 = vpack.c.b16 %v1266, %v1265
        %v1279 = vpack.c.b16 %v1268, %v1267
        %v1280 = vpack.c.b16 %v1270, %v1269
        %v1281 = vpack.c.b16 %v1272, %v1271
        %v1282 = vpack.c.b16 %v1274, %v1273
        %1291 = vmatpush.bf16.msra.mxu0 %v1282
        %1292 = vmatpush.bf16.msra.mxu0 %v1281
        %1293 = vmatpush.bf16.msra.mxu0 %v1280
        %1294 = vmatpush.bf16.msra.mxu0 %v1279
        %1295 = vmatpush.bf16.msra.mxu0 %v1278
        %1296 = vmatpush.bf16.msra.mxu0 %v1277
        %1297 = vmatpush.bf16.msra.mxu0 %v1276
        %1298 = vmatpush.bf16.msra.mxu0 %v1275
        %1299 = vmatmul.bf16.gmra.mxu0 %v1238
        %v1300 = vpop.f32.mrf.mxu0
        %v1301 = vadd.f32 %v1241, %v1300
        %v1302 = vpop.f32.mrf.mxu0
        %v1303 = vadd.f32 %v1241, %v1302
        %1304 = vmatmul.bf16.gmra.mxu0 %v1239
        %v1305 = vpop.f32.mrf.mxu0
        %v1306 = vadd.f32 %v1241, %v1305
        %v1307 = vpop.f32.mrf.mxu0
        %v1308 = vadd.f32 %v1241, %v1307
        %1309 = vdwg.mxu0
        %v1311 = vperm.slane %v1149, 0
        %v1329 = vunpack.c.l.b16 %v1133
        %v1330 = vunpack.c.l.b16 %v1134
        %v1331 = vunpack.c.l.b16 %v1135
        %v1332 = vunpack.c.l.b16 %v1136
        %v1333 = vunpack.c.l.b16 %v1137
        %v1334 = vunpack.c.l.b16 %v1138
        %v1335 = vunpack.c.l.b16 %v1139
        %v1336 = vunpack.c.l.b16 %v1140
        %v1337 = vunpack.c.l.b16 %v1141
        %v1338 = vunpack.c.l.b16 %v1142
        %v1339 = vunpack.c.l.b16 %v1143
        %v1340 = vunpack.c.l.b16 %v1144
        %v1341 = vunpack.c.l.b16 %v1145
        %v1342 = vunpack.c.l.b16 %v1146
        %v1343 = vunpack.c.l.b16 %v1147
        %v1344 = vunpack.c.l.b16 %v1148
        %v1345 = vpack.c.b16 %v1330, %v1329
        %v1346 = vpack.c.b16 %v1332, %v1331
        %v1347 = vpack.c.b16 %v1334, %v1333
        %v1348 = vpack.c.b16 %v1336, %v1335
        %v1349 = vpack.c.b16 %v1338, %v1337
        %v1350 = vpack.c.b16 %v1340, %v1339
        %v1351 = vpack.c.b16 %v1342, %v1341
        %v1352 = vpack.c.b16 %v1344, %v1343
        %1361 = vmatpush.bf16.msra.mxu0 %v1352
        %1362 = vmatpush.bf16.msra.mxu0 %v1351
        %1363 = vmatpush.bf16.msra.mxu0 %v1350
        %1364 = vmatpush.bf16.msra.mxu0 %v1349
        %1365 = vmatpush.bf16.msra.mxu0 %v1348
        %1366 = vmatpush.bf16.msra.mxu0 %v1347
        %1367 = vmatpush.bf16.msra.mxu0 %v1346
        %1368 = vmatpush.bf16.msra.mxu0 %v1345
        %1369 = vmatmul.bf16.gmra.mxu0 %v1238
        %v1370 = vpop.f32.mrf.mxu0
        %v1371 = vadd.f32 %v1311, %v1370
        %v1372 = vpop.f32.mrf.mxu0
        %v1373 = vadd.f32 %v1311, %v1372
        %1374 = vmatmul.bf16.gmra.mxu0 %v1239
        %v1375 = vpop.f32.mrf.mxu0
        %v1376 = vadd.f32 %v1311, %v1375
        %v1377 = vpop.f32.mrf.mxu0
        %v1378 = vadd.f32 %v1311, %v1377
        %1379 = vdwg.mxu0
        %v1381 = vperm.slane %v1166, 0
        %v1399 = vunpack.c.l.b16 %v1150
        %v1400 = vunpack.c.l.b16 %v1151
        %v1401 = vunpack.c.l.b16 %v1152
        %v1402 = vunpack.c.l.b16 %v1153
        %v1403 = vunpack.c.l.b16 %v1154
        %v1404 = vunpack.c.l.b16 %v1155
        %v1405 = vunpack.c.l.b16 %v1156
        %v1406 = vunpack.c.l.b16 %v1157
        %v1407 = vunpack.c.l.b16 %v1158
        %v1408 = vunpack.c.l.b16 %v1159
        %v1409 = vunpack.c.l.b16 %v1160
        %v1410 = vunpack.c.l.b16 %v1161
        %v1411 = vunpack.c.l.b16 %v1162
        %v1412 = vunpack.c.l.b16 %v1163
        %v1413 = vunpack.c.l.b16 %v1164
        %v1414 = vunpack.c.l.b16 %v1165
        %v1415 = vpack.c.b16 %v1400, %v1399
        %v1416 = vpack.c.b16 %v1402, %v1401
        %v1417 = vpack.c.b16 %v1404, %v1403
        %v1418 = vpack.c.b16 %v1406, %v1405
        %v1419 = vpack.c.b16 %v1408, %v1407
        %v1420 = vpack.c.b16 %v1410, %v1409
        %v1421 = vpack.c.b16 %v1412, %v1411
        %v1422 = vpack.c.b16 %v1414, %v1413
        %1431 = vmatpush.bf16.msra.mxu0 %v1422
        %1432 = vmatpush.bf16.msra.mxu0 %v1421
        %1433 = vmatpush.bf16.msra.mxu0 %v1420
        %1434 = vmatpush.bf16.msra.mxu0 %v1419
        %1435 = vmatpush.bf16.msra.mxu0 %v1418
        %1436 = vmatpush.bf16.msra.mxu0 %v1417
        %1437 = vmatpush.bf16.msra.mxu0 %v1416
        %1438 = vmatpush.bf16.msra.mxu0 %v1415
        %1439 = vmatmul.bf16.gmra.mxu0 %v1238
        %v1440 = vpop.f32.mrf.mxu0
        %v1441 = vadd.f32 %v1381, %v1440
        %v1442 = vpop.f32.mrf.mxu0
        %v1443 = vadd.f32 %v1381, %v1442
        %1444 = vmatmul.bf16.gmra.mxu0 %v1239
        %v1445 = vpop.f32.mrf.mxu0
        %v1446 = vadd.f32 %v1381, %v1445
        %v1447 = vpop.f32.mrf.mxu0
        %v1448 = vadd.f32 %v1381, %v1447
        %1449 = vdwg.mxu0
        %v1451 = vperm.slane %v1183, 0
        %v1453 = vadd.f32 %v1451, 0.0
        %v1454 = vpack.c.bf16 %v1303, %v1301
        %v1455 = vpack.c.bf16 %v1308, %v1306
        %v1456 = vpack.c.bf16 %v1373, %v1371
        %v1457 = vpack.c.bf16 %v1378, %v1376
        %v1458 = vpack.c.bf16 %v1443, %v1441
        %v1459 = vpack.c.bf16 %v1448, %v1446
        %vm1460 = vcmask 261120
        %v1462 = vsel %vm1460, %v1454, 0
        %v1465 = vsel %vm1460, %v1455, 0
        %v1468 = vsel %vm1460, %v1456, 0
        %v1471 = vsel %vm1460, %v1457, 0
        %1473 = vmatpush.bf16.xpose.msra.mxu0 0
        %1474 = vmatpush.bf16.xpose.msra.mxu0 0
        %1475 = vmatpush.bf16.xpose.msra.mxu0 0
        %1476 = vmatpush.bf16.xpose.msra.mxu0 0
        %1477 = vmatpush.bf16.xpose.msra.mxu0 0
        %1478 = vmatpush.bf16.xpose.msra.mxu0 0
        %1479 = vmatpush.bf16.xpose.msra.mxu0 %v1471
        %1480 = vmatpush.bf16.xpose.msra.mxu0 %v1468
        %1481 = vmatmul.bf16.gmra.mxu0 %v1462
        %v1482 = vpop.f32.mrf.mxu0
        %v1483 = vadd.f32 0.0, %v1482
        %v1484 = vpop.f32.mrf.mxu0
        %v1485 = vadd.f32 0.0, %v1484
        %1486 = vmatmul.bf16.gmra.mxu0 %v1465
        %v1487 = vpop.f32.mrf.mxu0
        %v1488 = vadd.f32 0.0, %v1487
        %v1489 = vpop.f32.mrf.mxu0
        %v1490 = vadd.f32 0.0, %v1489
        %1491 = vdwg.mxu0
        %v1492 = vmul.f32 %v1483, 0.17677669
        %v1493 = vmul.f32 %v1485, 0.17677669
        %v1494 = vmul.f32 %v1488, 0.17677669
        %v1495 = vmul.f32 %v1490, 0.17677669
        %v1496 = vsel %vm1460, %v1492, -inf
        %1497 = vmax.xlane.f32.xlu0 %v1496
        %v1498 = vpop.xlane.xlu0 %1497
        %v1499 = vsel %vm1460, %v1493, -inf
        %1500 = vmax.xlane.f32.xlu0 %v1499
        %v1501 = vpop.xlane.xlu0 %1500
        %v1502 = vsel %vm1460, %v1494, -inf
        %1503 = vmax.xlane.f32.xlu0 %v1502
        %v1504 = vpop.xlane.xlu0 %1503
        %v1505 = vsel %vm1460, %v1495, -inf
        %1506 = vmax.xlane.f32.xlu0 %v1505
        %v1507 = vpop.xlane.xlu0 %1506
        %v1508 = vsub.f32 %v1492, %v1498
        %v1509 = vsub.f32 %v1493, %v1501
        %v1510 = vsub.f32 %v1494, %v1504
        %v1511 = vsub.f32 %v1495, %v1507
        %v1512 = vmul.f32 %v1508, 1.442695
        %v1513 = vpow.pop %v1512
        %v1514 = vmul.f32 %v1509, 1.442695
        %v1515 = vpow.pop %v1514
        %v1516 = vmul.f32 %v1510, 1.442695
        %v1517 = vpow.pop %v1516
        %v1518 = vmul.f32 %v1511, 1.442695
        %v1519 = vpow.pop %v1518
        %v1520 = vsel %vm1460, %v1513, 0.0
        %1521 = vadd.xlane.f32.xlu0 %v1520
        %v1522 = vpop.xlane.xlu0 %1521
        %v1523 = vsel %vm1460, %v1515, 0.0
        %1524 = vadd.xlane.f32.xlu0 %v1523
        %v1525 = vpop.xlane.xlu0 %1524
        %v1526 = vsel %vm1460, %v1517, 0.0
        %1527 = vadd.xlane.f32.xlu0 %v1526
        %v1528 = vpop.xlane.xlu0 %1527
        %v1529 = vsel %vm1460, %v1519, 0.0
        %1530 = vadd.xlane.f32.xlu0 %v1529
        %v1531 = vpop.xlane.xlu0 %1530
        %v1532 = vrcp.pop %v1522
        %v1533 = vrcp.pop %v1525
        %v1534 = vrcp.pop %v1528
        %v1535 = vrcp.pop %v1531
        %v1536 = vmul.f32 %v1513, %v1532
        %v1537 = vmul.f32 %v1515, %v1533
        %v1538 = vmul.f32 %v1517, %v1534
        %v1539 = vmul.f32 %v1519, %v1535
        %v1540 = vpack.c.bf16 %v1537, %v1536
        %v1541 = vpack.c.bf16 %v1539, %v1538
        %v1543 = vsel %vm1460, %v1540, 0
        %v1546 = vsel %vm1460, %v1541, 0
        %1548 = vmatpush.bf16.msra.mxu0 0
        %1549 = vmatpush.bf16.msra.mxu0 0
        %1550 = vmatpush.bf16.msra.mxu0 0
        %1551 = vmatpush.bf16.msra.mxu0 0
        %1552 = vmatpush.bf16.msra.mxu0 0
        %1553 = vmatpush.bf16.msra.mxu0 0
        %1554 = vmatpush.bf16.msra.mxu0 %v1459
        %1555 = vmatpush.bf16.msra.mxu0 %v1458
        %1556 = vmatmul.bf16.gmra.mxu0 %v1543
        %v1557 = vpop.f32.mrf.mxu0
        %v1558 = vadd.f32 0.0, %v1557
        %v1559 = vpop.f32.mrf.mxu0
        %v1560 = vadd.f32 0.0, %v1559
        %1561 = vmatmul.bf16.gmra.mxu0 %v1546
        %v1562 = vpop.f32.mrf.mxu0
        %v1563 = vadd.f32 0.0, %v1562
        %v1564 = vpop.f32.mrf.mxu0
        %v1565 = vadd.f32 0.0, %v1564
        %1566 = vdwg.mxu0
        %v1567 = vpack.c.bf16 %v1560, %v1558
        %v1568 = vpack.c.bf16 %v1565, %v1563
        %v1573 = vunpack.c.l.b16 %v1167
        %v1574 = vunpack.c.l.b16 %v1168
        %v1575 = vunpack.c.l.b16 %v1169
        %v1576 = vunpack.c.l.b16 %v1170
        %v1577 = vpack.c.b16 %v1574, %v1573
        %v1578 = vpack.c.b16 %v1576, %v1575
        %v1582 = vsel %vm1460, %v1567, 0
        %v1585 = vsel %vm1460, %v1568, 0
        %1587 = vmatpush.bf16.msra.mxu0 0
        %1588 = vmatpush.bf16.msra.mxu0 0
        %1589 = vmatpush.bf16.msra.mxu0 0
        %1590 = vmatpush.bf16.msra.mxu0 0
        %1591 = vmatpush.bf16.msra.mxu0 0
        %1592 = vmatpush.bf16.msra.mxu0 0
        %1593 = vmatpush.bf16.msra.mxu0 %v1578
        %1594 = vmatpush.bf16.msra.mxu0 %v1577
        %1595 = vmatmul.bf16.gmra.mxu0 %v1582
        %v1596 = vpop.f32.mrf.mxu0
        %v1597 = vadd.f32 0.0, %v1596
        %v1598 = vpop.f32.mrf.mxu0
        %v1599 = vadd.f32 0.0, %v1598
        %1600 = vmatmul.bf16.gmra.mxu0 %v1585
        %v1601 = vpop.f32.mrf.mxu0
        %v1602 = vadd.f32 0.0, %v1601
        %v1603 = vpop.f32.mrf.mxu0
        %v1604 = vadd.f32 0.0, %v1603
        %1605 = vdwg.mxu0
        %v1606 = vadd.f32 %v1453, %v1597
        %v1607 = vadd.f32 %v1453, %v1599
        %v1608 = vadd.f32 %v1453, %v1602
        %v1609 = vadd.f32 %v1453, %v1604
        %1612 = vrot.lane.b32.xlu0 %v1454, 96
        %v1613 = vpop.permute.xlu0 %1612
        %1614 = vrot.lane.b32.xlu0 %v1455, 96
        %v1615 = vpop.permute.xlu0 %1614
        %1618 = vrot.lane.b32.xlu0 %v1456, 96
        %v1619 = vpop.permute.xlu0 %1618
        %1620 = vrot.lane.b32.xlu0 %v1457, 96
        %v1621 = vpop.permute.xlu0 %1620
        %v1623 = vsel %vm1460, %v1613, 0
        %v1626 = vsel %vm1460, %v1615, 0
        %v1629 = vsel %vm1460, %v1619, 0
        %v1632 = vsel %vm1460, %v1621, 0
        %1634 = vmatpush.bf16.xpose.msra.mxu0 0
        %1635 = vmatpush.bf16.xpose.msra.mxu0 0
        %1636 = vmatpush.bf16.xpose.msra.mxu0 0
        %1637 = vmatpush.bf16.xpose.msra.mxu0 0
        %1638 = vmatpush.bf16.xpose.msra.mxu0 0
        %1639 = vmatpush.bf16.xpose.msra.mxu0 0
        %1640 = vmatpush.bf16.xpose.msra.mxu0 %v1632
        %1641 = vmatpush.bf16.xpose.msra.mxu0 %v1629
        %1642 = vmatmul.bf16.gmra.mxu0 %v1623
        %v1643 = vpop.f32.mrf.mxu0
        %v1644 = vadd.f32 0.0, %v1643
        %v1645 = vpop.f32.mrf.mxu0
        %v1646 = vadd.f32 0.0, %v1645
        %1647 = vmatmul.bf16.gmra.mxu0 %v1626
        %v1648 = vpop.f32.mrf.mxu0
        %v1649 = vadd.f32 0.0, %v1648
        %v1650 = vpop.f32.mrf.mxu0
        %v1651 = vadd.f32 0.0, %v1650
        %1652 = vdwg.mxu0
        %v1653 = vmul.f32 %v1644, 0.17677669
        %v1654 = vmul.f32 %v1646, 0.17677669
        %v1655 = vmul.f32 %v1649, 0.17677669
        %v1656 = vmul.f32 %v1651, 0.17677669
        %v1657 = vsel %vm1460, %v1653, -inf
        %1658 = vmax.xlane.f32.xlu0 %v1657
        %v1659 = vpop.xlane.xlu0 %1658
        %v1660 = vsel %vm1460, %v1654, -inf
        %1661 = vmax.xlane.f32.xlu0 %v1660
        %v1662 = vpop.xlane.xlu0 %1661
        %v1663 = vsel %vm1460, %v1655, -inf
        %1664 = vmax.xlane.f32.xlu0 %v1663
        %v1665 = vpop.xlane.xlu0 %1664
        %v1666 = vsel %vm1460, %v1656, -inf
        %1667 = vmax.xlane.f32.xlu0 %v1666
        %v1668 = vpop.xlane.xlu0 %1667
        %v1669 = vsub.f32 %v1653, %v1659
        %v1670 = vsub.f32 %v1654, %v1662
        %v1671 = vsub.f32 %v1655, %v1665
        %v1672 = vsub.f32 %v1656, %v1668
        %v1673 = vmul.f32 %v1669, 1.442695
        %v1674 = vpow.pop %v1673
        %v1675 = vmul.f32 %v1670, 1.442695
        %v1676 = vpow.pop %v1675
        %v1677 = vmul.f32 %v1671, 1.442695
        %v1678 = vpow.pop %v1677
        %v1679 = vmul.f32 %v1672, 1.442695
        %v1680 = vpow.pop %v1679
        %v1681 = vsel %vm1460, %v1674, 0.0
        %1682 = vadd.xlane.f32.xlu0 %v1681
        %v1683 = vpop.xlane.xlu0 %1682
        %v1684 = vsel %vm1460, %v1676, 0.0
        %1685 = vadd.xlane.f32.xlu0 %v1684
        %v1686 = vpop.xlane.xlu0 %1685
        %v1687 = vsel %vm1460, %v1678, 0.0
        %1688 = vadd.xlane.f32.xlu0 %v1687
        %v1689 = vpop.xlane.xlu0 %1688
        %v1690 = vsel %vm1460, %v1680, 0.0
        %1691 = vadd.xlane.f32.xlu0 %v1690
        %v1692 = vpop.xlane.xlu0 %1691
        %v1693 = vrcp.pop %v1683
        %v1694 = vrcp.pop %v1686
        %v1695 = vrcp.pop %v1689
        %v1696 = vrcp.pop %v1692
        %v1697 = vmul.f32 %v1674, %v1693
        %v1698 = vmul.f32 %v1676, %v1694
        %v1699 = vmul.f32 %v1678, %v1695
        %v1700 = vmul.f32 %v1680, %v1696
        %v1701 = vpack.c.bf16 %v1698, %v1697
        %v1702 = vpack.c.bf16 %v1700, %v1699
        %1705 = vrot.lane.b32.xlu0 %v1458, 96
        %v1706 = vpop.permute.xlu0 %1705
        %1707 = vrot.lane.b32.xlu0 %v1459, 96
        %v1708 = vpop.permute.xlu0 %1707
        %v1712 = vsel %vm1460, %v1701, 0
        %v1715 = vsel %vm1460, %v1702, 0
        %1717 = vmatpush.bf16.msra.mxu0 0
        %1718 = vmatpush.bf16.msra.mxu0 0
        %1719 = vmatpush.bf16.msra.mxu0 0
        %1720 = vmatpush.bf16.msra.mxu0 0
        %1721 = vmatpush.bf16.msra.mxu0 0
        %1722 = vmatpush.bf16.msra.mxu0 0
        %1723 = vmatpush.bf16.msra.mxu0 %v1708
        %1724 = vmatpush.bf16.msra.mxu0 %v1706
        %1725 = vmatmul.bf16.gmra.mxu0 %v1712
        %v1726 = vpop.f32.mrf.mxu0
        %v1727 = vadd.f32 0.0, %v1726
        %v1728 = vpop.f32.mrf.mxu0
        %v1729 = vadd.f32 0.0, %v1728
        %1730 = vmatmul.bf16.gmra.mxu0 %v1715
        %v1731 = vpop.f32.mrf.mxu0
        %v1732 = vadd.f32 0.0, %v1731
        %v1733 = vpop.f32.mrf.mxu0
        %v1734 = vadd.f32 0.0, %v1733
        %1735 = vdwg.mxu0
        %v1736 = vpack.c.bf16 %v1729, %v1727
        %v1737 = vpack.c.bf16 %v1734, %v1732
        %v1742 = vunpack.c.l.b16 %v1171
        %v1743 = vunpack.c.l.b16 %v1172
        %v1744 = vunpack.c.l.b16 %v1173
        %v1745 = vunpack.c.l.b16 %v1174
        %v1746 = vpack.c.b16 %v1743, %v1742
        %v1747 = vpack.c.b16 %v1745, %v1744
        %v1751 = vsel %vm1460, %v1736, 0
        %v1754 = vsel %vm1460, %v1737, 0
        %1756 = vmatpush.bf16.msra.mxu0 0
        %1757 = vmatpush.bf16.msra.mxu0 0
        %1758 = vmatpush.bf16.msra.mxu0 0
        %1759 = vmatpush.bf16.msra.mxu0 0
        %1760 = vmatpush.bf16.msra.mxu0 0
        %1761 = vmatpush.bf16.msra.mxu0 0
        %1762 = vmatpush.bf16.msra.mxu0 %v1747
        %1763 = vmatpush.bf16.msra.mxu0 %v1746
        %1764 = vmatmul.bf16.gmra.mxu0 %v1751
        %v1765 = vpop.f32.mrf.mxu0
        %v1766 = vadd.f32 0.0, %v1765
        %v1767 = vpop.f32.mrf.mxu0
        %v1768 = vadd.f32 0.0, %v1767
        %1769 = vmatmul.bf16.gmra.mxu0 %v1754
        %v1770 = vpop.f32.mrf.mxu0
        %v1771 = vadd.f32 0.0, %v1770
        %v1772 = vpop.f32.mrf.mxu0
        %v1773 = vadd.f32 0.0, %v1772
        %1774 = vdwg.mxu0
        %v1775 = vadd.f32 %v1606, %v1766
        %v1776 = vadd.f32 %v1607, %v1768
        %v1777 = vadd.f32 %v1608, %v1771
        %v1778 = vadd.f32 %v1609, %v1773
        %1779 = vrot.lane.b32.xlu0 %v1454, 64
        %v1780 = vpop.permute.xlu0 %1779
        %1781 = vrot.lane.b32.xlu0 %v1455, 64
        %v1782 = vpop.permute.xlu0 %1781
        %1783 = vrot.lane.b32.xlu0 %v1456, 64
        %v1784 = vpop.permute.xlu0 %1783
        %1785 = vrot.lane.b32.xlu0 %v1457, 64
        %v1786 = vpop.permute.xlu0 %1785
        %v1788 = vsel %vm1460, %v1780, 0
        %v1791 = vsel %vm1460, %v1782, 0
        %v1794 = vsel %vm1460, %v1784, 0
        %v1797 = vsel %vm1460, %v1786, 0
        %1799 = vmatpush.bf16.xpose.msra.mxu0 0
        %1800 = vmatpush.bf16.xpose.msra.mxu0 0
        %1801 = vmatpush.bf16.xpose.msra.mxu0 0
        %1802 = vmatpush.bf16.xpose.msra.mxu0 0
        %1803 = vmatpush.bf16.xpose.msra.mxu0 0
        %1804 = vmatpush.bf16.xpose.msra.mxu0 0
        %1805 = vmatpush.bf16.xpose.msra.mxu0 %v1797
        %1806 = vmatpush.bf16.xpose.msra.mxu0 %v1794
        %1807 = vmatmul.bf16.gmra.mxu0 %v1788
        %v1808 = vpop.f32.mrf.mxu0
        %v1809 = vadd.f32 0.0, %v1808
        %v1810 = vpop.f32.mrf.mxu0
        %v1811 = vadd.f32 0.0, %v1810
        %1812 = vmatmul.bf16.gmra.mxu0 %v1791
        %v1813 = vpop.f32.mrf.mxu0
        %v1814 = vadd.f32 0.0, %v1813
        %v1815 = vpop.f32.mrf.mxu0
        %v1816 = vadd.f32 0.0, %v1815
        %1817 = vdwg.mxu0
        %v1818 = vmul.f32 %v1809, 0.17677669
        %v1819 = vmul.f32 %v1811, 0.17677669
        %v1820 = vmul.f32 %v1814, 0.17677669
        %v1821 = vmul.f32 %v1816, 0.17677669
        %v1822 = vsel %vm1460, %v1818, -inf
        %1823 = vmax.xlane.f32.xlu0 %v1822
        %v1824 = vpop.xlane.xlu0 %1823
        %v1825 = vsel %vm1460, %v1819, -inf
        %1826 = vmax.xlane.f32.xlu0 %v1825
        %v1827 = vpop.xlane.xlu0 %1826
        %v1828 = vsel %vm1460, %v1820, -inf
        %1829 = vmax.xlane.f32.xlu0 %v1828
        %v1830 = vpop.xlane.xlu0 %1829
        %v1831 = vsel %vm1460, %v1821, -inf
        %1832 = vmax.xlane.f32.xlu0 %v1831
        %v1833 = vpop.xlane.xlu0 %1832
        %v1834 = vsub.f32 %v1818, %v1824
        %v1835 = vsub.f32 %v1819, %v1827
        %v1836 = vsub.f32 %v1820, %v1830
        %v1837 = vsub.f32 %v1821, %v1833
        %v1838 = vmul.f32 %v1834, 1.442695
        %v1839 = vpow.pop %v1838
        %v1840 = vmul.f32 %v1835, 1.442695
        %v1841 = vpow.pop %v1840
        %v1842 = vmul.f32 %v1836, 1.442695
        %v1843 = vpow.pop %v1842
        %v1844 = vmul.f32 %v1837, 1.442695
        %v1845 = vpow.pop %v1844
        %v1846 = vsel %vm1460, %v1839, 0.0
        %1847 = vadd.xlane.f32.xlu0 %v1846
        %v1848 = vpop.xlane.xlu0 %1847
        %v1849 = vsel %vm1460, %v1841, 0.0
        %1850 = vadd.xlane.f32.xlu0 %v1849
        %v1851 = vpop.xlane.xlu0 %1850
        %v1852 = vsel %vm1460, %v1843, 0.0
        %1853 = vadd.xlane.f32.xlu0 %v1852
        %v1854 = vpop.xlane.xlu0 %1853
        %v1855 = vsel %vm1460, %v1845, 0.0
        %1856 = vadd.xlane.f32.xlu0 %v1855
        %v1857 = vpop.xlane.xlu0 %1856
        %v1858 = vrcp.pop %v1848
        %v1859 = vrcp.pop %v1851
        %v1860 = vrcp.pop %v1854
        %v1861 = vrcp.pop %v1857
        %v1862 = vmul.f32 %v1839, %v1858
        %v1863 = vmul.f32 %v1841, %v1859
        %v1864 = vmul.f32 %v1843, %v1860
        %v1865 = vmul.f32 %v1845, %v1861
        %v1866 = vpack.c.bf16 %v1863, %v1862
        %v1867 = vpack.c.bf16 %v1865, %v1864
        %1868 = vrot.lane.b32.xlu0 %v1458, 64
        %v1869 = vpop.permute.xlu0 %1868
        %1870 = vrot.lane.b32.xlu0 %v1459, 64
        %v1871 = vpop.permute.xlu0 %1870
        %v1875 = vsel %vm1460, %v1866, 0
        %v1878 = vsel %vm1460, %v1867, 0
        %1880 = vmatpush.bf16.msra.mxu0 0
        %1881 = vmatpush.bf16.msra.mxu0 0
        %1882 = vmatpush.bf16.msra.mxu0 0
        %1883 = vmatpush.bf16.msra.mxu0 0
        %1884 = vmatpush.bf16.msra.mxu0 0
        %1885 = vmatpush.bf16.msra.mxu0 0
        %1886 = vmatpush.bf16.msra.mxu0 %v1871
        %1887 = vmatpush.bf16.msra.mxu0 %v1869
        %1888 = vmatmul.bf16.gmra.mxu0 %v1875
        %v1889 = vpop.f32.mrf.mxu0
        %v1890 = vadd.f32 0.0, %v1889
        %v1891 = vpop.f32.mrf.mxu0
        %v1892 = vadd.f32 0.0, %v1891
        %1893 = vmatmul.bf16.gmra.mxu0 %v1878
        %v1894 = vpop.f32.mrf.mxu0
        %v1895 = vadd.f32 0.0, %v1894
        %v1896 = vpop.f32.mrf.mxu0
        %v1897 = vadd.f32 0.0, %v1896
        %1898 = vdwg.mxu0
        %v1899 = vpack.c.bf16 %v1892, %v1890
        %v1900 = vpack.c.bf16 %v1897, %v1895
        %v1905 = vunpack.c.l.b16 %v1175
        %v1906 = vunpack.c.l.b16 %v1176
        %v1907 = vunpack.c.l.b16 %v1177
        %v1908 = vunpack.c.l.b16 %v1178
        %v1909 = vpack.c.b16 %v1906, %v1905
        %v1910 = vpack.c.b16 %v1908, %v1907
        %v1914 = vsel %vm1460, %v1899, 0
        %v1917 = vsel %vm1460, %v1900, 0
        %1919 = vmatpush.bf16.msra.mxu0 0
        %1920 = vmatpush.bf16.msra.mxu0 0
        %1921 = vmatpush.bf16.msra.mxu0 0
        %1922 = vmatpush.bf16.msra.mxu0 0
        %1923 = vmatpush.bf16.msra.mxu0 0
        %1924 = vmatpush.bf16.msra.mxu0 0
        %1925 = vmatpush.bf16.msra.mxu0 %v1910
        %1926 = vmatpush.bf16.msra.mxu0 %v1909
        %1927 = vmatmul.bf16.gmra.mxu0 %v1914
        %v1928 = vpop.f32.mrf.mxu0
        %v1929 = vadd.f32 0.0, %v1928
        %v1930 = vpop.f32.mrf.mxu0
        %v1931 = vadd.f32 0.0, %v1930
        %1932 = vmatmul.bf16.gmra.mxu0 %v1917
        %v1933 = vpop.f32.mrf.mxu0
        %v1934 = vadd.f32 0.0, %v1933
        %v1935 = vpop.f32.mrf.mxu0
        %v1936 = vadd.f32 0.0, %v1935
        %1937 = vdwg.mxu0
        %v1938 = vadd.f32 %v1775, %v1929
        %v1939 = vadd.f32 %v1776, %v1931
        %v1940 = vadd.f32 %v1777, %v1934
        %v1941 = vadd.f32 %v1778, %v1936
        %1942 = vrot.lane.b32.xlu0 %v1454, 32
        %v1943 = vpop.permute.xlu0 %1942
        %1944 = vrot.lane.b32.xlu0 %v1455, 32
        %v1945 = vpop.permute.xlu0 %1944
        %1946 = vrot.lane.b32.xlu0 %v1456, 32
        %v1947 = vpop.permute.xlu0 %1946
        %1948 = vrot.lane.b32.xlu0 %v1457, 32
        %v1949 = vpop.permute.xlu0 %1948
        %v1951 = vsel %vm1460, %v1943, 0
        %v1954 = vsel %vm1460, %v1945, 0
        %v1957 = vsel %vm1460, %v1947, 0
        %v1960 = vsel %vm1460, %v1949, 0
        %1962 = vmatpush.bf16.xpose.msra.mxu0 0
        %1963 = vmatpush.bf16.xpose.msra.mxu0 0
        %1964 = vmatpush.bf16.xpose.msra.mxu0 0
        %1965 = vmatpush.bf16.xpose.msra.mxu0 0
        %1966 = vmatpush.bf16.xpose.msra.mxu0 0
        %1967 = vmatpush.bf16.xpose.msra.mxu0 0
        %1968 = vmatpush.bf16.xpose.msra.mxu0 %v1960
        %1969 = vmatpush.bf16.xpose.msra.mxu0 %v1957
        %1970 = vmatmul.bf16.gmra.mxu0 %v1951
        %v1971 = vpop.f32.mrf.mxu0
        %v1972 = vadd.f32 0.0, %v1971
        %v1973 = vpop.f32.mrf.mxu0
        %v1974 = vadd.f32 0.0, %v1973
        %1975 = vmatmul.bf16.gmra.mxu0 %v1954
        %v1976 = vpop.f32.mrf.mxu0
        %v1977 = vadd.f32 0.0, %v1976
        %v1978 = vpop.f32.mrf.mxu0
        %v1979 = vadd.f32 0.0, %v1978
        %1980 = vdwg.mxu0
        %v1981 = vmul.f32 %v1972, 0.17677669
        %v1982 = vmul.f32 %v1974, 0.17677669
        %v1983 = vmul.f32 %v1977, 0.17677669
        %v1984 = vmul.f32 %v1979, 0.17677669
        %v1985 = vsel %vm1460, %v1981, -inf
        %1986 = vmax.xlane.f32.xlu0 %v1985
        %v1987 = vpop.xlane.xlu0 %1986
        %v1988 = vsel %vm1460, %v1982, -inf
        %1989 = vmax.xlane.f32.xlu0 %v1988
        %v1990 = vpop.xlane.xlu0 %1989
        %v1991 = vsel %vm1460, %v1983, -inf
        %1992 = vmax.xlane.f32.xlu0 %v1991
        %v1993 = vpop.xlane.xlu0 %1992
        %v1994 = vsel %vm1460, %v1984, -inf
        %1995 = vmax.xlane.f32.xlu0 %v1994
        %v1996 = vpop.xlane.xlu0 %1995
        %v1997 = vsub.f32 %v1981, %v1987
        %v1998 = vsub.f32 %v1982, %v1990
        %v1999 = vsub.f32 %v1983, %v1993
        %v2000 = vsub.f32 %v1984, %v1996
        %v2001 = vmul.f32 %v1997, 1.442695
        %v2002 = vpow.pop %v2001
        %v2003 = vmul.f32 %v1998, 1.442695
        %v2004 = vpow.pop %v2003
        %v2005 = vmul.f32 %v1999, 1.442695
        %v2006 = vpow.pop %v2005
        %v2007 = vmul.f32 %v2000, 1.442695
        %v2008 = vpow.pop %v2007
        %v2009 = vsel %vm1460, %v2002, 0.0
        %2010 = vadd.xlane.f32.xlu0 %v2009
        %v2011 = vpop.xlane.xlu0 %2010
        %v2012 = vsel %vm1460, %v2004, 0.0
        %2013 = vadd.xlane.f32.xlu0 %v2012
        %v2014 = vpop.xlane.xlu0 %2013
        %v2015 = vsel %vm1460, %v2006, 0.0
        %2016 = vadd.xlane.f32.xlu0 %v2015
        %v2017 = vpop.xlane.xlu0 %2016
        %v2018 = vsel %vm1460, %v2008, 0.0
        %2019 = vadd.xlane.f32.xlu0 %v2018
        %v2020 = vpop.xlane.xlu0 %2019
        %v2021 = vrcp.pop %v2011
        %v2022 = vrcp.pop %v2014
        %v2023 = vrcp.pop %v2017
        %v2024 = vrcp.pop %v2020
        %v2025 = vmul.f32 %v2002, %v2021
        %v2026 = vmul.f32 %v2004, %v2022
        %v2027 = vmul.f32 %v2006, %v2023
        %v2028 = vmul.f32 %v2008, %v2024
        %v2029 = vpack.c.bf16 %v2026, %v2025
        %v2030 = vpack.c.bf16 %v2028, %v2027
        %2031 = vrot.lane.b32.xlu0 %v1458, 32
        %v2032 = vpop.permute.xlu0 %2031
        %2033 = vrot.lane.b32.xlu0 %v1459, 32
        %v2034 = vpop.permute.xlu0 %2033
        %v2038 = vsel %vm1460, %v2029, 0
        %v2041 = vsel %vm1460, %v2030, 0
        %2043 = vmatpush.bf16.msra.mxu0 0
        %2044 = vmatpush.bf16.msra.mxu0 0
        %2045 = vmatpush.bf16.msra.mxu0 0
        %2046 = vmatpush.bf16.msra.mxu0 0
        %2047 = vmatpush.bf16.msra.mxu0 0
        %2048 = vmatpush.bf16.msra.mxu0 0
        %2049 = vmatpush.bf16.msra.mxu0 %v2034
        %2050 = vmatpush.bf16.msra.mxu0 %v2032
        %2051 = vmatmul.bf16.gmra.mxu0 %v2038
        %v2052 = vpop.f32.mrf.mxu0
        %v2053 = vadd.f32 0.0, %v2052
        %v2054 = vpop.f32.mrf.mxu0
        %v2055 = vadd.f32 0.0, %v2054
        %2056 = vmatmul.bf16.gmra.mxu0 %v2041
        %v2057 = vpop.f32.mrf.mxu0
        %v2058 = vadd.f32 0.0, %v2057
        %v2059 = vpop.f32.mrf.mxu0
        %v2060 = vadd.f32 0.0, %v2059
        %2061 = vdwg.mxu0
        %v2062 = vpack.c.bf16 %v2055, %v2053
        %v2063 = vpack.c.bf16 %v2060, %v2058
        %v2068 = vunpack.c.l.b16 %v1179
        %v2069 = vunpack.c.l.b16 %v1180
        %v2070 = vunpack.c.l.b16 %v1181
        %v2071 = vunpack.c.l.b16 %v1182
        %v2072 = vpack.c.b16 %v2069, %v2068
        %v2073 = vpack.c.b16 %v2071, %v2070
        %v2077 = vsel %vm1460, %v2062, 0
        %v2080 = vsel %vm1460, %v2063, 0
        %2082 = vmatpush.bf16.msra.mxu0 0
        %2083 = vmatpush.bf16.msra.mxu0 0
        %2084 = vmatpush.bf16.msra.mxu0 0
        %2085 = vmatpush.bf16.msra.mxu0 0
        %2086 = vmatpush.bf16.msra.mxu0 0
        %2087 = vmatpush.bf16.msra.mxu0 0
        %2088 = vmatpush.bf16.msra.mxu0 %v2073
        %2089 = vmatpush.bf16.msra.mxu0 %v2072
        %2090 = vmatmul.bf16.gmra.mxu0 %v2077
        %v2091 = vpop.f32.mrf.mxu0
        %v2092 = vadd.f32 0.0, %v2091
        %v2093 = vpop.f32.mrf.mxu0
        %v2094 = vadd.f32 0.0, %v2093
        %2095 = vmatmul.bf16.gmra.mxu0 %v2080
        %v2096 = vpop.f32.mrf.mxu0
        %v2097 = vadd.f32 0.0, %v2096
        %v2098 = vpop.f32.mrf.mxu0
        %v2099 = vadd.f32 0.0, %v2098
        %2100 = vdwg.mxu0
        %v2101 = vadd.f32 %v1938, %v2092
        %v2102 = vadd.f32 %v1939, %v2094
        %v2103 = vadd.f32 %v1940, %v2097
        %v2104 = vadd.f32 %v1941, %v2099
        %v2105 = vadd.f32 %v1112, %v2101
        %v2106 = vadd.f32 %v1113, %v2102
        %v2107 = vadd.f32 %v1114, %v2103
        %v2108 = vadd.f32 %v1115, %v2104
        %2109 = vadd.xlane.f32.xlu0 %v2105
        %v2110 = vpop.xlane.xlu0 %2109
        %2111 = vadd.xlane.f32.xlu0 %v2106
        %v2112 = vpop.xlane.xlu0 %2111
        %2113 = vadd.xlane.f32.xlu0 %v2107
        %v2114 = vpop.xlane.xlu0 %2113
        %2115 = vadd.xlane.f32.xlu0 %v2108
        %v2116 = vpop.xlane.xlu0 %2115
        %v2117 = vrcp.pop 128.0
        %v2118 = vmul.f32 128.0, %v2117
        %v2119 = vsub.f32 1.0, %v2118
        %v2120 = vmul.f32 %v2117, %v2119
        %v2121 = vadd.f32 %v2117, %v2120
        %vm2122 = vweird.f32 %v2117
        %v2123 = vsel %vm2122, %v2117, %v2121
        %v2124 = vmul.f32 %v2110, %v2123
        %v2125 = vmul.f32 %v2112, %v2123
        %v2126 = vmul.f32 %v2114, %v2123
        %v2127 = vmul.f32 %v2116, %v2123
        %v2128 = vsub.f32 %v2105, %v2124
        %v2129 = vsub.f32 %v2106, %v2125
        %v2130 = vsub.f32 %v2107, %v2126
        %v2131 = vsub.f32 %v2108, %v2127
        %v2132 = vmul.f32 %v2128, %v2128
        %v2133 = vmul.f32 %v2129, %v2129
        %v2134 = vmul.f32 %v2130, %v2130
        %v2135 = vmul.f32 %v2131, %v2131
        %2136 = vadd.xlane.f32.xlu0 %v2132
        %v2137 = vpop.xlane.xlu0 %2136
        %2138 = vadd.xlane.f32.xlu0 %v2133
        %v2139 = vpop.xlane.xlu0 %2138
        %2140 = vadd.xlane.f32.xlu0 %v2134
        %v2141 = vpop.xlane.xlu0 %2140
        %2142 = vadd.xlane.f32.xlu0 %v2135
        %v2143 = vpop.xlane.xlu0 %2142
        %v2144 = vmul.f32 %v2137, %v2123
        %v2145 = vmul.f32 %v2139, %v2123
        %v2146 = vmul.f32 %v2141, %v2123
        %v2147 = vmul.f32 %v2143, %v2123
        %v2148 = vadd.f32 %v2144, 1e-05
        %v2149 = vadd.f32 %v2145, 1e-05
        %v2150 = vadd.f32 %v2146, 1e-05
        %v2151 = vadd.f32 %v2147, 1e-05
        %v2152 = vrsqrt.pop %v2148
        %v2153 = vmul.f32 %v2152, %v2148
        %v2154 = vmul.f32 %v2153, %v2152
        %v2155 = vmul.f32 0.5, %v2154
        %v2156 = vsub.f32 1.5, %v2155
        %v2157 = vmul.f32 %v2152, %v2156
        %vm2158 = vweird.f32 %v2148
        %vm2159 = vweird.f32 %v2152
        %vm2160 = vmor %vm2158, %vm2159
        %v2161 = vsel %vm2160, %v2152, %v2157
        %v2162 = vrsqrt.pop %v2149
        %v2163 = vmul.f32 %v2162, %v2149
        %v2164 = vmul.f32 %v2163, %v2162
        %v2165 = vmul.f32 0.5, %v2164
        %v2166 = vsub.f32 1.5, %v2165
        %v2167 = vmul.f32 %v2162, %v2166
        %vm2168 = vweird.f32 %v2149
        %vm2169 = vweird.f32 %v2162
        %vm2170 = vmor %vm2168, %vm2169
        %v2171 = vsel %vm2170, %v2162, %v2167
        %v2172 = vrsqrt.pop %v2150
        %v2173 = vmul.f32 %v2172, %v2150
        %v2174 = vmul.f32 %v2173, %v2172
        %v2175 = vmul.f32 0.5, %v2174
        %v2176 = vsub.f32 1.5, %v2175
        %v2177 = vmul.f32 %v2172, %v2176
        %vm2178 = vweird.f32 %v2150
        %vm2179 = vweird.f32 %v2172
        %vm2180 = vmor %vm2178, %vm2179
        %v2181 = vsel %vm2180, %v2172, %v2177
        %v2182 = vrsqrt.pop %v2151
        %v2183 = vmul.f32 %v2182, %v2151
        %v2184 = vmul.f32 %v2183, %v2182
        %v2185 = vmul.f32 0.5, %v2184
        %v2186 = vsub.f32 1.5, %v2185
        %v2187 = vmul.f32 %v2182, %v2186
        %vm2188 = vweird.f32 %v2151
        %vm2189 = vweird.f32 %v2182
        %vm2190 = vmor %vm2188, %vm2189
        %v2191 = vsel %vm2190, %v2182, %v2187
        %v2192 = vmul.f32 %v2128, %v2161
        %v2193 = vmul.f32 %v2129, %v2171
        %v2194 = vmul.f32 %v2130, %v2181
        %v2195 = vmul.f32 %v2131, %v2191
        %v2197 = vperm.slane %v1184, 0
        %v2199 = vmul.f32 %v2192, %v2197
        %v2200 = vmul.f32 %v2193, %v2197
        %v2201 = vmul.f32 %v2194, %v2197
        %v2202 = vmul.f32 %v2195, %v2197
        %v2204 = vperm.slane %v1185, 0
        %v2206 = vadd.f32 %v2199, %v2204
        %v2207 = vadd.f32 %v2200, %v2204
        %v2208 = vadd.f32 %v2201, %v2204
        %v2209 = vadd.f32 %v2202, %v2204
        %v2210 = vpack.c.bf16 %v2207, %v2206
        %v2211 = vpack.c.bf16 %v2209, %v2208
        %v2213 = vperm.slane %v1202, 0
        %v2214 = vperm.slane %v1202, 1
        %v2233 = vunpack.c.l.b16 %v1186
        %v2234 = vunpack.c.h.b16 %v1186
        %v2235 = vunpack.c.l.b16 %v1187
        %v2236 = vunpack.c.h.b16 %v1187
        %v2237 = vunpack.c.l.b16 %v1188
        %v2238 = vunpack.c.h.b16 %v1188
        %v2239 = vunpack.c.l.b16 %v1189
        %v2240 = vunpack.c.h.b16 %v1189
        %v2241 = vunpack.c.l.b16 %v1190
        %v2242 = vunpack.c.h.b16 %v1190
        %v2243 = vunpack.c.l.b16 %v1191
        %v2244 = vunpack.c.h.b16 %v1191
        %v2245 = vunpack.c.l.b16 %v1192
        %v2246 = vunpack.c.h.b16 %v1192
        %v2247 = vunpack.c.l.b16 %v1193
        %v2248 = vunpack.c.h.b16 %v1193
        %v2249 = vunpack.c.l.b16 %v1194
        %v2250 = vunpack.c.h.b16 %v1194
        %v2251 = vunpack.c.l.b16 %v1195
        %v2252 = vunpack.c.h.b16 %v1195
        %v2253 = vunpack.c.l.b16 %v1196
        %v2254 = vunpack.c.h.b16 %v1196
        %v2255 = vunpack.c.l.b16 %v1197
        %v2256 = vunpack.c.h.b16 %v1197
        %v2257 = vunpack.c.l.b16 %v1198
        %v2258 = vunpack.c.h.b16 %v1198
        %v2259 = vunpack.c.l.b16 %v1199
        %v2260 = vunpack.c.h.b16 %v1199
        %v2261 = vunpack.c.l.b16 %v1200
        %v2262 = vunpack.c.h.b16 %v1200
        %v2263 = vunpack.c.l.b16 %v1201
        %v2264 = vunpack.c.h.b16 %v1201
        %v2265 = vpack.c.b16 %v2235, %v2233
        %v2266 = vpack.c.b16 %v2236, %v2234
        %v2267 = vpack.c.b16 %v2239, %v2237
        %v2268 = vpack.c.b16 %v2240, %v2238
        %v2269 = vpack.c.b16 %v2243, %v2241
        %v2270 = vpack.c.b16 %v2244, %v2242
        %v2271 = vpack.c.b16 %v2247, %v2245
        %v2272 = vpack.c.b16 %v2248, %v2246
        %v2273 = vpack.c.b16 %v2251, %v2249
        %v2274 = vpack.c.b16 %v2252, %v2250
        %v2275 = vpack.c.b16 %v2255, %v2253
        %v2276 = vpack.c.b16 %v2256, %v2254
        %v2277 = vpack.c.b16 %v2259, %v2257
        %v2278 = vpack.c.b16 %v2260, %v2258
        %v2279 = vpack.c.b16 %v2263, %v2261
        %v2280 = vpack.c.b16 %v2264, %v2262
        %2297 = vmatpush.bf16.msra.mxu0 %v2279
        %2298 = vmatpush.bf16.msra.mxu0 %v2277
        %2299 = vmatpush.bf16.msra.mxu0 %v2275
        %2300 = vmatpush.bf16.msra.mxu0 %v2273
        %2301 = vmatpush.bf16.msra.mxu0 %v2271
        %2302 = vmatpush.bf16.msra.mxu0 %v2269
        %2303 = vmatpush.bf16.msra.mxu0 %v2267
        %2304 = vmatpush.bf16.msra.mxu0 %v2265
        %2305 = vmatmul.bf16.gmra.mxu0 %v2210
        %v2306 = vpop.f32.mrf.mxu0
        %v2307 = vadd.f32 %v2213, %v2306
        %v2308 = vpop.f32.mrf.mxu0
        %v2309 = vadd.f32 %v2213, %v2308
        %2310 = vmatmul.bf16.gmra.mxu0 %v2211
        %v2311 = vpop.f32.mrf.mxu0
        %v2312 = vadd.f32 %v2213, %v2311
        %v2313 = vpop.f32.mrf.mxu0
        %v2314 = vadd.f32 %v2213, %v2313
        %2315 = vdwg.mxu0
        %2316 = vmatpush.bf16.msra.mxu0 %v2280
        %2317 = vmatpush.bf16.msra.mxu0 %v2278
        %2318 = vmatpush.bf16.msra.mxu0 %v2276
        %2319 = vmatpush.bf16.msra.mxu0 %v2274
        %2320 = vmatpush.bf16.msra.mxu0 %v2272
        %2321 = vmatpush.bf16.msra.mxu0 %v2270
        %2322 = vmatpush.bf16.msra.mxu0 %v2268
        %2323 = vmatpush.bf16.msra.mxu0 %v2266
        %2324 = vmatmul.bf16.gmra.mxu0 %v2210
        %v2325 = vpop.f32.mrf.mxu0
        %v2326 = vadd.f32 %v2214, %v2325
        %v2327 = vpop.f32.mrf.mxu0
        %v2328 = vadd.f32 %v2214, %v2327
        %2329 = vmatmul.bf16.gmra.mxu0 %v2211
        %v2330 = vpop.f32.mrf.mxu0
        %v2331 = vadd.f32 %v2214, %v2330
        %v2332 = vpop.f32.mrf.mxu0
        %v2333 = vadd.f32 %v2214, %v2332
        %2334 = vdwg.mxu0
        %v2335 = vmax.f32 %v2307, 0.0
        %v2336 = vmax.f32 %v2326, 0.0
        %v2337 = vmax.f32 %v2309, 0.0
        %v2338 = vmax.f32 %v2328, 0.0
        %v2339 = vmax.f32 %v2312, 0.0
        %v2340 = vmax.f32 %v2331, 0.0
        %v2341 = vmax.f32 %v2314, 0.0
        %v2342 = vmax.f32 %v2333, 0.0
        %v2343 = vpack.c.bf16 %v2337, %v2335
        %v2344 = vpack.c.bf16 %v2338, %v2336
        %v2345 = vpack.c.bf16 %v2341, %v2339
        %v2346 = vpack.c.bf16 %v2342, %v2340
        %v2348 = vperm.slane %v1235, 0
        %v2382 = vunpack.c.l.b16 %v1203
        %v2383 = vunpack.c.l.b16 %v1204
        %v2384 = vunpack.c.l.b16 %v1205
        %v2385 = vunpack.c.l.b16 %v1206
        %v2386 = vunpack.c.l.b16 %v1207
        %v2387 = vunpack.c.l.b16 %v1208
        %v2388 = vunpack.c.l.b16 %v1209
        %v2389 = vunpack.c.l.b16 %v1210
        %v2390 = vunpack.c.l.b16 %v1211
        %v2391 = vunpack.c.l.b16 %v1212
        %v2392 = vunpack.c.l.b16 %v1213
        %v2393 = vunpack.c.l.b16 %v1214
        %v2394 = vunpack.c.l.b16 %v1215
        %v2395 = vunpack.c.l.b16 %v1216
        %v2396 = vunpack.c.l.b16 %v1217
        %v2397 = vunpack.c.l.b16 %v1218
        %v2398 = vunpack.c.l.b16 %v1219
        %v2399 = vunpack.c.l.b16 %v1220
        %v2400 = vunpack.c.l.b16 %v1221
        %v2401 = vunpack.c.l.b16 %v1222
        %v2402 = vunpack.c.l.b16 %v1223
        %v2403 = vunpack.c.l.b16 %v1224
        %v2404 = vunpack.c.l.b16 %v1225
        %v2405 = vunpack.c.l.b16 %v1226
        %v2406 = vunpack.c.l.b16 %v1227
        %v2407 = vunpack.c.l.b16 %v1228
        %v2408 = vunpack.c.l.b16 %v1229
        %v2409 = vunpack.c.l.b16 %v1230
        %v2410 = vunpack.c.l.b16 %v1231
        %v2411 = vunpack.c.l.b16 %v1232
        %v2412 = vunpack.c.l.b16 %v1233
        %v2413 = vunpack.c.l.b16 %v1234
        %v2414 = vpack.c.b16 %v2383, %v2382
        %v2415 = vpack.c.b16 %v2385, %v2384
        %v2416 = vpack.c.b16 %v2387, %v2386
        %v2417 = vpack.c.b16 %v2389, %v2388
        %v2418 = vpack.c.b16 %v2391, %v2390
        %v2419 = vpack.c.b16 %v2393, %v2392
        %v2420 = vpack.c.b16 %v2395, %v2394
        %v2421 = vpack.c.b16 %v2397, %v2396
        %v2422 = vpack.c.b16 %v2399, %v2398
        %v2423 = vpack.c.b16 %v2401, %v2400
        %v2424 = vpack.c.b16 %v2403, %v2402
        %v2425 = vpack.c.b16 %v2405, %v2404
        %v2426 = vpack.c.b16 %v2407, %v2406
        %v2427 = vpack.c.b16 %v2409, %v2408
        %v2428 = vpack.c.b16 %v2411, %v2410
        %v2429 = vpack.c.b16 %v2413, %v2412
        %2446 = vmatpush.bf16.msra.mxu0 %v2421
        %2447 = vmatpush.bf16.msra.mxu0 %v2420
        %2448 = vmatpush.bf16.msra.mxu0 %v2419
        %2449 = vmatpush.bf16.msra.mxu0 %v2418
        %2450 = vmatpush.bf16.msra.mxu0 %v2417
        %2451 = vmatpush.bf16.msra.mxu0 %v2416
        %2452 = vmatpush.bf16.msra.mxu0 %v2415
        %2453 = vmatpush.bf16.msra.mxu0 %v2414
        %2454 = vmatmul.bf16.gmra.mxu0 %v2343
        %v2455 = vpop.f32.mrf.mxu0
        %v2456 = vadd.f32 %v2348, %v2455
        %v2457 = vpop.f32.mrf.mxu0
        %v2458 = vadd.f32 %v2348, %v2457
        %2459 = vmatmul.bf16.gmra.mxu0 %v2345
        %v2460 = vpop.f32.mrf.mxu0
        %v2461 = vadd.f32 %v2348, %v2460
        %v2462 = vpop.f32.mrf.mxu0
        %v2463 = vadd.f32 %v2348, %v2462
        %2464 = vdwg.mxu0
        %2465 = vmatpush.bf16.msra.mxu0 %v2429
        %2466 = vmatpush.bf16.msra.mxu0 %v2428
        %2467 = vmatpush.bf16.msra.mxu0 %v2427
        %2468 = vmatpush.bf16.msra.mxu0 %v2426
        %2469 = vmatpush.bf16.msra.mxu0 %v2425
        %2470 = vmatpush.bf16.msra.mxu0 %v2424
        %2471 = vmatpush.bf16.msra.mxu0 %v2423
        %2472 = vmatpush.bf16.msra.mxu0 %v2422
        %2473 = vmatmul.bf16.gmra.mxu0 %v2344
        %v2474 = vpop.f32.mrf.mxu0
        %v2475 = vadd.f32 %v2456, %v2474
        %v2476 = vpop.f32.mrf.mxu0
        %v2477 = vadd.f32 %v2458, %v2476
        %2478 = vmatmul.bf16.gmra.mxu0 %v2346
        %v2479 = vpop.f32.mrf.mxu0
        %v2480 = vadd.f32 %v2461, %v2479
        %v2481 = vpop.f32.mrf.mxu0
        %v2482 = vadd.f32 %v2463, %v2481
        %2483 = vdwg.mxu0
        %v2484 = vadd.f32 %v2206, %v2475
        %v2485 = vadd.f32 %v2207, %v2477
        %v2486 = vadd.f32 %v2208, %v2480
        %v2487 = vadd.f32 %v2209, %v2482
        %2488 = vadd.xlane.f32.xlu0 %v2484
        %v2489 = vpop.xlane.xlu0 %2488
        %2490 = vadd.xlane.f32.xlu0 %v2485
        %v2491 = vpop.xlane.xlu0 %2490
        %2492 = vadd.xlane.f32.xlu0 %v2486
        %v2493 = vpop.xlane.xlu0 %2492
        %2494 = vadd.xlane.f32.xlu0 %v2487
        %v2495 = vpop.xlane.xlu0 %2494
        %v2496 = vmul.f32 %v2489, %v2123
        %v2497 = vmul.f32 %v2491, %v2123
        %v2498 = vmul.f32 %v2493, %v2123
        %v2499 = vmul.f32 %v2495, %v2123
        %v2500 = vsub.f32 %v2484, %v2496
        %v2501 = vsub.f32 %v2485, %v2497
        %v2502 = vsub.f32 %v2486, %v2498
        %v2503 = vsub.f32 %v2487, %v2499
        %v2504 = vmul.f32 %v2500, %v2500
        %v2505 = vmul.f32 %v2501, %v2501
        %v2506 = vmul.f32 %v2502, %v2502
        %v2507 = vmul.f32 %v2503, %v2503
        %2508 = vadd.xlane.f32.xlu0 %v2504
        %v2509 = vpop.xlane.xlu0 %2508
        %2510 = vadd.xlane.f32.xlu0 %v2505
        %v2511 = vpop.xlane.xlu0 %2510
        %2512 = vadd.xlane.f32.xlu0 %v2506
        %v2513 = vpop.xlane.xlu0 %2512
        %2514 = vadd.xlane.f32.xlu0 %v2507
        %v2515 = vpop.xlane.xlu0 %2514
        %v2516 = vmul.f32 %v2509, %v2123
        %v2517 = vmul.f32 %v2511, %v2123
        %v2518 = vmul.f32 %v2513, %v2123
        %v2519 = vmul.f32 %v2515, %v2123
        %v2520 = vadd.f32 %v2516, 1e-05
        %v2521 = vadd.f32 %v2517, 1e-05
        %v2522 = vadd.f32 %v2518, 1e-05
        %v2523 = vadd.f32 %v2519, 1e-05
        %v2524 = vrsqrt.pop %v2520
        %v2525 = vmul.f32 %v2524, %v2520
        %v2526 = vmul.f32 %v2525, %v2524
        %v2527 = vmul.f32 0.5, %v2526
        %v2528 = vsub.f32 1.5, %v2527
        %v2529 = vmul.f32 %v2524, %v2528
        %vm2530 = vweird.f32 %v2520
        %vm2531 = vweird.f32 %v2524
        %vm2532 = vmor %vm2530, %vm2531
        %v2533 = vsel %vm2532, %v2524, %v2529
        %v2534 = vrsqrt.pop %v2521
        %v2535 = vmul.f32 %v2534, %v2521
        %v2536 = vmul.f32 %v2535, %v2534
        %v2537 = vmul.f32 0.5, %v2536
        %v2538 = vsub.f32 1.5, %v2537
        %v2539 = vmul.f32 %v2534, %v2538
        %vm2540 = vweird.f32 %v2521
        %vm2541 = vweird.f32 %v2534
        %vm2542 = vmor %vm2540, %vm2541
        %v2543 = vsel %vm2542, %v2534, %v2539
        %v2544 = vrsqrt.pop %v2522
        %v2545 = vmul.f32 %v2544, %v2522
        %v2546 = vmul.f32 %v2545, %v2544
        %v2547 = vmul.f32 0.5, %v2546
        %v2548 = vsub.f32 1.5, %v2547
        %v2549 = vmul.f32 %v2544, %v2548
        %vm2550 = vweird.f32 %v2522
        %vm2551 = vweird.f32 %v2544
        %vm2552 = vmor %vm2550, %vm2551
        %v2553 = vsel %vm2552, %v2544, %v2549
        %v2554 = vrsqrt.pop %v2523
        %v2555 = vmul.f32 %v2554, %v2523
        %v2556 = vmul.f32 %v2555, %v2554
        %v2557 = vmul.f32 0.5, %v2556
        %v2558 = vsub.f32 1.5, %v2557
        %v2559 = vmul.f32 %v2554, %v2558
        %vm2560 = vweird.f32 %v2523
        %vm2561 = vweird.f32 %v2554
        %vm2562 = vmor %vm2560, %vm2561
        %v2563 = vsel %vm2562, %v2554, %v2559
        %v2564 = vmul.f32 %v2500, %v2533
        %v2565 = vmul.f32 %v2501, %v2543
        %v2566 = vmul.f32 %v2502, %v2553
        %v2567 = vmul.f32 %v2503, %v2563
        %v2569 = vperm.slane %v1236, 0
        %v2571 = vmul.f32 %v2564, %v2569
        %v2572 = vmul.f32 %v2565, %v2569
        %v2573 = vmul.f32 %v2566, %v2569
        %v2574 = vmul.f32 %v2567, %v2569
        %v2576 = vperm.slane %v1237, 0
        %v2578 = vadd.f32 %v2571, %v2576
        %v2579 = vadd.f32 %v2572, %v2576
        %v2580 = vadd.f32 %v2573, %v2576
        %v2581 = vadd.f32 %v2574, %v2576
        %2582 = vst [vmem:[#allocation2] sm:$0xff] %v2578
        %2583 = vst [vmem:[#allocation2 + $0x8] sm:$0xff] %v2579
        %2584 = vst [vmem:[#allocation2 + $0x10] sm:$0xff] %v2580
        %2585 = vst [vmem:[#allocation2 + $0x18] sm:$0xff] %v2581
        %p2586 = scmp.eq.s32.totalorder %s56, 1
        // Predicated region
        $region145: #{tpu_custom_call.1} parent=95 // pred_check
          %p2587 = pneg %p2586
        $region146: #{tpu_custom_call.1} parent=95 // pred_check_branch
          %2589 = sbr.rel (%p2587) target = $region148
        $region147: #{tpu_custom_call.1} parent=95 // pred_region
          %v2590 = vld [vmem:[%s17] sm:$0x1]
          %v2591 = vld [vmem:[%s18] sm:$0x1]
          %2592 = vadd.xlane.f32.xlu0 %v2578
          %v2593 = vpop.xlane.xlu0 %2592
          %2594 = vadd.xlane.f32.xlu0 %v2579
          %v2595 = vpop.xlane.xlu0 %2594
          %2596 = vadd.xlane.f32.xlu0 %v2580
          %v2597 = vpop.xlane.xlu0 %2596
          %2598 = vadd.xlane.f32.xlu0 %v2581
          %v2599 = vpop.xlane.xlu0 %2598
          %v2600 = vmul.f32 %v2593, %v2123
          %v2601 = vmul.f32 %v2595, %v2123
          %v2602 = vmul.f32 %v2597, %v2123
          %v2603 = vmul.f32 %v2599, %v2123
          %v2604 = vsub.f32 %v2578, %v2600
          %v2605 = vsub.f32 %v2579, %v2601
          %v2606 = vsub.f32 %v2580, %v2602
          %v2607 = vsub.f32 %v2581, %v2603
          %v2608 = vmul.f32 %v2604, %v2604
          %v2609 = vmul.f32 %v2605, %v2605
          %v2610 = vmul.f32 %v2606, %v2606
          %v2611 = vmul.f32 %v2607, %v2607
          %2612 = vadd.xlane.f32.xlu0 %v2608
          %v2613 = vpop.xlane.xlu0 %2612
          %2614 = vadd.xlane.f32.xlu0 %v2609
          %v2615 = vpop.xlane.xlu0 %2614
          %2616 = vadd.xlane.f32.xlu0 %v2610
          %v2617 = vpop.xlane.xlu0 %2616
          %2618 = vadd.xlane.f32.xlu0 %v2611
          %v2619 = vpop.xlane.xlu0 %2618
          %v2620 = vmul.f32 %v2613, %v2123
          %v2621 = vmul.f32 %v2615, %v2123
          %v2622 = vmul.f32 %v2617, %v2123
          %v2623 = vmul.f32 %v2619, %v2123
          %v2624 = vadd.f32 %v2620, 1e-05
          %v2625 = vadd.f32 %v2621, 1e-05
          %v2626 = vadd.f32 %v2622, 1e-05
          %v2627 = vadd.f32 %v2623, 1e-05
          %v2628 = vrsqrt.pop %v2624
          %v2629 = vmul.f32 %v2628, %v2624
          %v2630 = vmul.f32 %v2629, %v2628
          %v2631 = vmul.f32 0.5, %v2630
          %v2632 = vsub.f32 1.5, %v2631
          %v2633 = vmul.f32 %v2628, %v2632
          %vm2634 = vweird.f32 %v2624
          %vm2635 = vweird.f32 %v2628
          %vm2636 = vmor %vm2634, %vm2635
          %v2637 = vsel %vm2636, %v2628, %v2633
          %v2638 = vrsqrt.pop %v2625
          %v2639 = vmul.f32 %v2638, %v2625
          %v2640 = vmul.f32 %v2639, %v2638
          %v2641 = vmul.f32 0.5, %v2640
          %v2642 = vsub.f32 1.5, %v2641
          %v2643 = vmul.f32 %v2638, %v2642
          %vm2644 = vweird.f32 %v2625
          %vm2645 = vweird.f32 %v2638
          %vm2646 = vmor %vm2644, %vm2645
          %v2647 = vsel %vm2646, %v2638, %v2643
          %v2648 = vrsqrt.pop %v2626
          %v2649 = vmul.f32 %v2648, %v2626
          %v2650 = vmul.f32 %v2649, %v2648
          %v2651 = vmul.f32 0.5, %v2650
          %v2652 = vsub.f32 1.5, %v2651
          %v2653 = vmul.f32 %v2648, %v2652
          %vm2654 = vweird.f32 %v2626
          %vm2655 = vweird.f32 %v2648
          %vm2656 = vmor %vm2654, %vm2655
          %v2657 = vsel %vm2656, %v2648, %v2653
          %v2658 = vrsqrt.pop %v2627
          %v2659 = vmul.f32 %v2658, %v2627
          %v2660 = vmul.f32 %v2659, %v2658
          %v2661 = vmul.f32 0.5, %v2660
          %v2662 = vsub.f32 1.5, %v2661
          %v2663 = vmul.f32 %v2658, %v2662
          %vm2664 = vweird.f32 %v2627
          %vm2665 = vweird.f32 %v2658
          %vm2666 = vmor %vm2664, %vm2665
          %v2667 = vsel %vm2666, %v2658, %v2663
          %v2668 = vmul.f32 %v2604, %v2637
          %v2669 = vmul.f32 %v2605, %v2647
          %v2670 = vmul.f32 %v2606, %v2657
          %v2671 = vmul.f32 %v2607, %v2667
          %v2673 = vperm.slane %v2590, 0
          %v2675 = vmul.f32 %v2668, %v2673
          %v2676 = vmul.f32 %v2669, %v2673
          %v2677 = vmul.f32 %v2670, %v2673
          %v2678 = vmul.f32 %v2671, %v2673
          %v2680 = vperm.slane %v2591, 0
          %v2682 = vadd.f32 %v2675, %v2680
          %v2683 = vadd.f32 %v2676, %v2680
          %v2684 = vadd.f32 %v2677, %v2680
          %v2685 = vadd.f32 %v2678, %v2680
          %2686 = vst [vmem:[%s1079] sm:$0xff] %v2682
          %2687 = vst [vmem:[%s1079 + $0x8] sm:$0xff] %v2683
          %2688 = vst [vmem:[%s1079 + $0x10] sm:$0xff] %v2684
          %2689 = vst [vmem:[%s1079 + $0x18] sm:$0xff] %v2685
        $region148: #{tpu_custom_call.1} parent=95 // pred_fallthru
          _
        %s2690 = sand.u32 %s555, 1
        %s2691 = scalar_lea.sflag [#allocation5], %s2690
        %s2692 = sand.u32 %s555, 1
        %s2693 = smul.addr %s2692, 32
        %s2694 = scalar_lea.vmem [#allocation21], %s2693
        // Predicated region
        $region149: #{tpu_custom_call.1} parent=95 // pred_check
          %p2695 = pneg %p565
        $region150: #{tpu_custom_call.1} parent=95 // pred_check_branch
          %2697 = sbr.rel (%p2695) target = $region152
        $region151: #{tpu_custom_call.1} parent=95 // pred_region
          %2699 = vsyncadd %s2691, 0
          %s2700 = smul.addr %s55, 4
          %s2701 = smul.addr %s2700, 8
          %s2702 = scalar_lea.hbm %s19, %s2701
          %s2703 = sshll.u32 %s2694, 4
          %s2704 = int_to_ptr.vmem [resolvable:$true] %s2703
          %s2705 = sshll.u32 %s2702, 4
          %s2706 = int_to_ptr.hbm [resolvable:$true] %s2705
          %2711 = dma.vmem_to_hbm [thread:$0]  %s2704, 512, %s2706, %s2691, 128, 128, 8
        $region152: #{tpu_custom_call.1} parent=95 // pred_fallthru
          _
      $region96: #{tpu_custom_call.1} parent=5 // pred_fallthru
        _
      %p2712 = scmp.le.s32.totalorder 2, %s46
      // Predicated region
      $region153: #{tpu_custom_call.1} parent=5 // pred_check
        %p2713 = pneg %p2712
      $region154: #{tpu_custom_call.1} parent=5 // pred_check_branch
        %2715 = sbr.rel (%p2713) target = $region156
      $region155: #{tpu_custom_call.1} parent=5 // pred_region
        %s2716 = ssub.s32 %s46, 2
        // Predicated region
        $region157: #{tpu_custom_call.1} parent=155 // pred_check
          %p2717 = pneg %p571
        $region158: #{tpu_custom_call.1} parent=155 // pred_check_branch
          %2719 = sbr.rel (%p2717) target = $region160
        $region159: #{tpu_custom_call.1} parent=155 // pred_region
          %s2720 = sand.u32 %s556, 1
          %s2721 = scalar_lea.sflag [#allocation5], %s2720
          %s2722 = sand.u32 %s556, 1
          %s2723 = smul.addr %s2722, 32
          %s2724 = scalar_lea.vmem [#allocation21], %s2723
          %2726 = dma.done %s2721, 512
        $region160: #{tpu_custom_call.1} parent=155 // pred_fallthru
          _
      $region156: #{tpu_custom_call.1} parent=5 // pred_fallthru
        _
    $region6: #{tpu_custom_call.1} parent=1 // loop_footer
      %s50 = sadd.s32 1, %s46
    $region7: #{tpu_custom_call.1} parent=1 // loop_footer_branch
      %45 = sbr.rel target = $region3
    $region8: #{tpu_custom_call.1} parent=1 // loop_exit
      _
    %2727 = vsyncpa [#allocation4], 1
    %s2728 = scalar_lea.sflag [#allocation4], 1
    %2729 = vsyncpa %s2728, 1
    %2730 = vsyncpa [#allocation7], 1
    %s2731 = scalar_lea.sflag [#allocation7], 1
    %2732 = vsyncpa %s2731, 1
    %2733 = vsyncpa [#allocation10], 1
    %s2734 = scalar_lea.sflag [#allocation10], 1
    %2735 = vsyncpa %s2734, 1
    %2736 = vsyncpa [#allocation13], 1
    %s2737 = scalar_lea.sflag [#allocation13], 1
    %2738 = vsyncpa %s2737, 1
    %2739 = vsyncpa [#allocation16], 1
    %s2740 = scalar_lea.sflag [#allocation16], 1
    %2741 = vsyncpa %s2740, 1
    %2742 = vsyncpa [#allocation19], 1
    %s2743 = scalar_lea.sflag [#allocation19], 1
    %2744 = vsyncpa %s2743, 1
    %2745 = vsyncpa [#allocation5], 1
    %s2746 = scalar_lea.sflag [#allocation5], 1
    %2747 = vsyncpa %s2746, 1

</llo_original>
